<compile_context>
chip_gen: v7x
topology: tpu7x:2x2x1
jax: 0.10.0
libtpu: 0.0.40
codegen_flags: <defaults>
</compile_context>

<pallas_src>
import math
from functools import partial

import jax
import jax.numpy as jnp
from jax import lax
from jax.experimental import pallas as pl
from jax.experimental.pallas import tpu as pltpu

VMEM = pltpu.MemorySpace.VMEM


def _vspec():
    return pl.BlockSpec(memory_space=VMEM)


def _layer_norm(x, gamma, beta, eps=1e-5):
    mu = jnp.mean(x, axis=-1, keepdims=True)
    var = jnp.mean((x - mu) ** 2, axis=-1, keepdims=True)
    return (x - mu) * lax.rsqrt(var + eps) * gamma + beta


# ------------------------------------------------------------------
# Kernel 1: EmbeddingBag(mean) * sqrt(E)  fused with  positional-encoding broadcast
# ------------------------------------------------------------------
def _embed_pos_kernel(idx_ref, starts_ref, counts_ref, weight_ref, pe_ref, out_ref, *,
                      scale):
    T = idx_ref.shape[0]
    V, E = weight_ref.shape
    B = pe_ref.shape[0]

    # token gather as a one-hot matmul: (T, V) @ (V, E) -> (T, E)
    onehot = (idx_ref[...] ==
              lax.broadcasted_iota(jnp.int32, (T, V), 1)).astype(jnp.float32)
    rows = jnp.dot(onehot, weight_ref[...], preferred_element_type=jnp.float32)

    # bag membership: member[b, t] = starts[b] <= t < starts[b] + counts[b]
    t = lax.broadcasted_iota(jnp.int32, (B, T), 1)
    starts = starts_ref[...]                                  # (B, 1) int32
    counts = counts_ref[...]                                  # (B, 1) int32
    member = ((t >= starts) & (t < starts + counts)).astype(jnp.float32)
    bag_sum = jnp.dot(member, rows, preferred_element_type=jnp.float32)   # (B, E)

    denom = jnp.maximum(counts, 1).astype(jnp.float32)        # empty bags -> zeros
    emb = bag_sum * (scale * pl.reciprocal(denom, approx=True))

    # PyTorch broadcast (B, E) + pe[:B, None, :]  ->  (L=B, N=B, E)
    out_ref[...] = emb[None, :, :] + pe_ref[...][:, None, :]


def embed_pos(idx_col, starts_col, counts_col, weight, pe, scale):
    B, E = pe.shape
    return pl.pallas_call(
        partial(_embed_pos_kernel, scale=scale),
        out_shape=jax.ShapeDtypeStruct((B, B, E), jnp.float32),
        in_specs=[_vspec()] * 5,
        out_specs=_vspec(),
    )(idx_col, starts_col, counts_col, weight, pe)


# ------------------------------------------------------------------
# Kernel 2: one fused TransformerEncoderLayer (post-norm, relu FFN, eval dropout)
# ------------------------------------------------------------------
def _encoder_layer_kernel(x_ref, mask_ref, wqkv_ref, bqkv_ref, wo_ref, bo_ref,
                          g1_ref, be1_ref, wf1_ref, bf1_ref, wf2_ref, bf2_ref,
                          g2_ref, be2_ref, out_ref, *, num_heads):
    LN_, E = x_ref.shape
    H = num_heads
    Dh = E // H
    inv_sqrt_dh = 1.0 / math.sqrt(Dh)

    x = x_ref[...]                            # (L*N, E), resident in VMEM for whole layer
    mask = mask_ref[...]                      # additive: 0 same-batch row, -1e30 otherwise

    # fused QKV in-projection: (L*N, E) @ (E, 3E)
    qkv = jnp.dot(x, wqkv_ref[...], preferred_element_type=jnp.float32) + bqkv_ref[...]

    # per-head attention on the full (L*N, L*N) score matrix with a same-batch mask;
    # head outputs are folded straight into the out-projection (no concat / transpose).
    y = bo_ref[...]
    for h in range(H):                        # static unroll, H is tiny
        qh = qkv[:, h * Dh:(h + 1) * Dh]
        kh = qkv[:, E + h * Dh:E + (h + 1) * Dh]
        vh = qkv[:, 2 * E + h * Dh:2 * E + (h + 1) * Dh]
        s = lax.dot_general(qh, kh, (((1,), (1,)), ((), ())),
                            preferred_element_type=jnp.float32) * inv_sqrt_dh + mask
        s = s - jnp.max(s, axis=-1, keepdims=True)
        p = jnp.exp(s)
        p = p * pl.reciprocal(jnp.sum(p, axis=-1, keepdims=True), approx=True)
        oh = jnp.dot(p, vh, preferred_element_type=jnp.float32)            # (L*N, Dh)
        y = y + jnp.dot(oh, wo_ref[h * Dh:(h + 1) * Dh, :],
                        preferred_element_type=jnp.float32)

    # residual + LayerNorm1 (post-norm, PyTorch default)
    h1 = _layer_norm(x + y, g1_ref[...], be1_ref[...])

    # FFN(relu) + residual + LayerNorm2
    f = jnp.maximum(
        jnp.dot(h1, wf1_ref[...], preferred_element_type=jnp.float32) + bf1_ref[...], 0.0)
    f = jnp.dot(f, wf2_ref[...], preferred_element_type=jnp.float32) + bf2_ref[...]
    out_ref[...] = _layer_norm(h1 + f, g2_ref[...], be2_ref[...])


def encoder_layer(x2d, batch_mask, layer, *, num_heads):
    return pl.pallas_call(
        partial(_encoder_layer_kernel, num_heads=num_heads),
        out_shape=jax.ShapeDtypeStruct(x2d.shape, jnp.float32),
        in_specs=[_vspec()] * 14,
        out_specs=_vspec(),
    )(x2d, batch_mask,
      layer["w_qkv"], layer["b_qkv"], layer["w_o"], layer["b_o"],
      layer["ln1_g"], layer["ln1_b"],
      layer["w_ff1"], layer["b_ff1"], layer["w_ff2"], layer["b_ff2"],
      layer["ln2_g"], layer["ln2_b"])


# ------------------------------------------------------------------
# Kernel 3: mean over batch dim (axis=1) + final classifier linear
# ------------------------------------------------------------------
def _mean_linear_kernel(x_ref, w_ref, b_ref, out_ref):
    m = jnp.mean(x_ref[...], axis=1)                                       # (L, E)
    out_ref[...] = jnp.dot(m, w_ref[...], preferred_element_type=jnp.float32) + b_ref[...]


def mean_linear(x, w, b):
    return pl.pallas_call(
        _mean_linear_kernel,
        out_shape=jax.ShapeDtypeStruct((x.shape[0], w.shape[1]), jnp.float32),
        in_specs=[_vspec()] * 3,
        out_specs=_vspec(),
    )(x, w, b)


# ------------------------------------------------------------------
# Parameters / positional encoding table (deterministic, synthetic)
# ------------------------------------------------------------------
def make_positional_encoding(vocab_size, embed_dim):
    position = jnp.arange(vocab_size, dtype=jnp.float32)[:, None]
    div_term = jnp.exp(jnp.arange(0, embed_dim, 2, dtype=jnp.float32)
                       * (-math.log(10000.0) / embed_dim))
    pe = jnp.zeros((vocab_size, embed_dim), jnp.float32)
    pe = pe.at[:, 0::2].set(jnp.sin(position * div_term))
    pe = pe.at[:, 1::2].set(jnp.cos(position * div_term))
    return pe


def init_params(key, vocab_size, embed_dim, num_class, depth, dim_feedforward):
    initrange = 0.1
    keys = jax.random.split(key, 2 + depth)

    def u(k, shape, bound):
        return jax.random.uniform(k, shape, jnp.float32, -bound, bound)

    params = {
        "embedding": u(keys[0], (vocab_size, embed_dim), initrange),
        "linear_w": u(keys[1], (embed_dim, num_class), initrange),   # (in, out)
        "linear_b": jnp.zeros((1, num_class), jnp.float32),
        "layers": [],
    }
    for d in range(depth):
        lk = jax.random.split(keys[2 + d], 4)
        b_in = 1.0 / math.sqrt(embed_dim)
        b_ff = 1.0 / math.sqrt(dim_feedforward)
        params["layers"].append({
            "w_qkv": u(lk[0], (embed_dim, 3 * embed_dim), b_in),     # in_proj_weight.T
            "b_qkv": jnp.zeros((1, 3 * embed_dim), jnp.float32),
            "w_o":   u(lk[1], (embed_dim, embed_dim), b_in),
            "b_o":   jnp.zeros((1, embed_dim), jnp.float32),
            "w_ff1": u(lk[2], (embed_dim, dim_feedforward), b_in),
            "b_ff1": jnp.zeros((1, dim_feedforward), jnp.float32),
            "w_ff2": u(lk[3], (dim_feedforward, embed_dim), b_ff),
            "b_ff2": jnp.zeros((1, embed_dim), jnp.float32),
            "ln1_g": jnp.ones((1, embed_dim), jnp.float32),
            "ln1_b": jnp.zeros((1, embed_dim), jnp.float32),
            "ln2_g": jnp.ones((1, embed_dim), jnp.float32),
            "ln2_b": jnp.zeros((1, embed_dim), jnp.float32),
        })
    return params


# ------------------------------------------------------------------
# Full forward pass (only free reshapes between the 2 + depth pallas_calls)
# ------------------------------------------------------------------
def transformer_net_forward(indices, offsets, params, pe, *, num_heads):
    total_len = indices.shape[0]
    num_bags = offsets.shape[0]
    embed_dim = params["embedding"].shape[1]

    starts = offsets.astype(jnp.int32)
    ends = jnp.concatenate([starts[1:], jnp.array([total_len], dtype=jnp.int32)])
    counts = ends - starts

    # EmbeddingBag(mean)*sqrt(E) + positional-encoding broadcast  ->  (L=B, N=B, E)
    x = embed_pos(indices.astype(jnp.int32).reshape(total_len, 1),
                  starts.reshape(num_bags, 1),
                  counts.reshape(num_bags, 1),
                  params["embedding"],
                  pe[:num_bags],
                  float(math.sqrt(embed_dim)))
    L, N, E = x.shape
    h = x.reshape(L * N, E)                    # free reshape; row index = l*N + n

    # additive same-batch attention mask (constant, folded by XLA once)
    r = jnp.arange(L * N, dtype=jnp.int32)
    same = (r[:, None] % N) == (r[None, :] % N)
    batch_mask = jnp.where(same, 0.0, -1e30).astype(jnp.float32)

    for layer in params["layers"]:
        h = encoder_layer(h, batch_mask, layer, num_heads=num_heads)

    # mean over dim=1 then classifier linear
    return mean_linear(h.reshape(L, N, E), params["linear_w"], params["linear_b"])


if __name__ == "__main__":
    vocab_size, embed_dim, num_class, num_heads, depth = 32, 32, 4, 2, 2
    dim_feedforward = 2048   # PyTorch TransformerEncoderLayer default

    key = jax.random.PRNGKey(0)
    pkey, xkey = jax.random.split(key)

    params = init_params(pkey, vocab_size, embed_dim, num_class, depth, dim_feedforward)
    pe = make_positional_encoding(vocab_size, embed_dim)

    num_bags, bag_size = 8, 3
    total_len = num_bags * bag_size
    x = jax.random.randint(xkey, (total_len,), 0, vocab_size, dtype=jnp.int32)
    offsets = jnp.arange(0, total_len, bag_size, dtype=jnp.int32)

    fwd = jax.jit(partial(transformer_net_forward, num_heads=num_heads))
    out = fwd(x, offsets, params, pe)
    out = jax.block_until_ready(out)

    assert out.shape == (num_bags, num_class), out.shape
    assert bool(jnp.all(jnp.isfinite(out)))
    print("KERNEL_OK")
</pallas_src>

<mosaic_0001>
module attributes {stable_mosaic.version = 11 : i64} {
  func.func @_embed_pos_kernel(%arg0: memref<24x1xi32, #tpu.memory_space<vmem>>, %arg1: memref<8x1xi32, #tpu.memory_space<vmem>>, %arg2: memref<8x1xi32, #tpu.memory_space<vmem>>, %arg3: memref<32x32xf32, #tpu.memory_space<vmem>>, %arg4: memref<8x32xf32, #tpu.memory_space<vmem>>, %arg5: memref<8x8x32xf32, #tpu.memory_space<vmem>>) attributes {dimension_semantics = [], scalar_prefetch = 0 : i64, scratch_operands = 0 : i64, tpu.core_type = #tpu.core_type<tc>} {
    %c0 = arith.constant 0 : index
    %c0_0 = arith.constant 0 : index
    %0 = vector.load %arg0[%c0, %c0_0] : memref<24x1xi32, #tpu.memory_space<vmem>>, vector<24x1xi32>
    %1 = tpu.iota {dimensions = array<i32: 1>} : vector<24x32xi32>
    %2 = vector.broadcast %0 : vector<24x1xi32> to vector<24x32xi32>
    %3 = arith.cmpi eq, %2, %1 : vector<24x32xi32>
    %4 = arith.extui %3 : vector<24x32xi1> to vector<24x32xi32>
    %5 = arith.sitofp %4 : vector<24x32xi32> to vector<24x32xf32>
    %c0_1 = arith.constant 0 : index
    %c0_2 = arith.constant 0 : index
    %6 = vector.load %arg3[%c0_1, %c0_2] : memref<32x32xf32, #tpu.memory_space<vmem>>, vector<32x32xf32>
    %cst = arith.constant dense<0.000000e+00> : vector<24x32xf32>
    %7 = tpu.matmul %5, %6, %cst {dimension_numbers = #tpu.dot_dimension_numbers<[1], [0], [0], [1], [0, 0, 1, 1], [], []>} : vector<24x32xf32>, vector<32x32xf32>, vector<24x32xf32> -> vector<24x32xf32>
    %8 = tpu.iota {dimensions = array<i32: 1>} : vector<8x24xi32>
    %c0_3 = arith.constant 0 : index
    %c0_4 = arith.constant 0 : index
    %9 = vector.load %arg1[%c0_3, %c0_4] : memref<8x1xi32, #tpu.memory_space<vmem>>, vector<8x1xi32>
    %c0_5 = arith.constant 0 : index
    %c0_6 = arith.constant 0 : index
    %10 = vector.load %arg2[%c0_5, %c0_6] : memref<8x1xi32, #tpu.memory_space<vmem>>, vector<8x1xi32>
    %11 = vector.broadcast %9 : vector<8x1xi32> to vector<8x24xi32>
    %12 = arith.cmpi sge, %8, %11 : vector<8x24xi32>
    %13 = arith.addi %9, %10 : vector<8x1xi32>
    %14 = vector.broadcast %13 : vector<8x1xi32> to vector<8x24xi32>
    %15 = arith.cmpi slt, %8, %14 : vector<8x24xi32>
    %16 = arith.andi %12, %15 : vector<8x24xi1>
    %17 = arith.extui %16 : vector<8x24xi1> to vector<8x24xi32>
    %18 = arith.sitofp %17 : vector<8x24xi32> to vector<8x24xf32>
    %cst_7 = arith.constant dense<0.000000e+00> : vector<8x32xf32>
    %19 = tpu.matmul %18, %7, %cst_7 {dimension_numbers = #tpu.dot_dimension_numbers<[1], [0], [0], [1], [0, 0, 1, 1], [], []>} : vector<8x24xf32>, vector<24x32xf32>, vector<8x32xf32> -> vector<8x32xf32>
    %c1_i32 = arith.constant 1 : i32
    %20 = vector.broadcast %c1_i32 : i32 to vector<8x1xi32>
    %21 = arith.maxsi %10, %20 : vector<8x1xi32>
    %22 = arith.sitofp %21 : vector<8x1xi32> to vector<8x1xf32>
    %23 = tpu.reciprocal %22 {approx = true} : vector<8x1xf32> -> vector<8x1xf32>
    %cst_8 = arith.constant 5.65685415 : f32
    %24 = vector.broadcast %cst_8 : f32 to vector<8x1xf32>
    %25 = arith.mulf %24, %23 : vector<8x1xf32>
    %26 = vector.broadcast %25 : vector<8x1xf32> to vector<8x32xf32>
    %27 = arith.mulf %19, %26 : vector<8x32xf32>
    %28 = vector.shape_cast %27 : vector<8x32xf32> to vector<1x8x32xf32>
    %c0_9 = arith.constant 0 : index
    %c0_10 = arith.constant 0 : index
    %29 = vector.load %arg4[%c0_9, %c0_10] : memref<8x32xf32, #tpu.memory_space<vmem>>, vector<8x32xf32>
    %30 = vector.shape_cast %29 : vector<8x32xf32> to vector<8x1x32xf32>
    %31 = vector.broadcast %28 : vector<1x8x32xf32> to vector<8x8x32xf32>
    %32 = vector.broadcast %30 : vector<8x1x32xf32> to vector<8x8x32xf32>
    %33 = arith.addf %31, %32 : vector<8x8x32xf32>
    %c0_11 = arith.constant 0 : index
    %c0_12 = arith.constant 0 : index
    %c0_13 = arith.constant 0 : index
    %34 = vector.load %arg5[%c0_11, %c0_12, %c0_13] : memref<8x8x32xf32, #tpu.memory_space<vmem>>, vector<8x8x32xf32>
    tpu.vector_store %arg5[%c0_11, %c0_12, %c0_13], %33 {strides = array<i32>} : memref<8x8x32xf32, #tpu.memory_space<vmem>>, vector<8x8x32xf32>,
    return
  }
}

module attributes {stable_mosaic.version = 11 : i64} {
  func.func @_mean_linear_kernel(%arg0: memref<8x8x32xf32, #tpu.memory_space<vmem>>, %arg1: memref<32x4xf32, #tpu.memory_space<vmem>>, %arg2: memref<1x4xf32, #tpu.memory_space<vmem>>, %arg3: memref<8x4xf32, #tpu.memory_space<vmem>>) attributes {dimension_semantics = [], scalar_prefetch = 0 : i64, scratch_operands = 0 : i64, tpu.core_type = #tpu.core_type<tc>} {
    %c0 = arith.constant 0 : index
    %c0_0 = arith.constant 0 : index
    %c0_1 = arith.constant 0 : index
    %0 = vector.load %arg0[%c0, %c0_0, %c0_1] : memref<8x8x32xf32, #tpu.memory_space<vmem>>, vector<8x8x32xf32>
    %cst = arith.constant dense<0.000000e+00> : vector<8x32xf32>
    %1 = vector.multi_reduction <add>, %0, %cst [1] : vector<8x8x32xf32> to vector<8x32xf32>
    %cst_2 = arith.constant 8.000000e+00 : f32
    %2 = vector.broadcast %cst_2 : f32 to vector<8x32xf32>
    %3 = arith.divf %1, %2 : vector<8x32xf32>
    %c0_3 = arith.constant 0 : index
    %c0_4 = arith.constant 0 : index
    %4 = vector.load %arg1[%c0_3, %c0_4] : memref<32x4xf32, #tpu.memory_space<vmem>>, vector<32x4xf32>
    %cst_5 = arith.constant dense<0.000000e+00> : vector<8x4xf32>
    %5 = tpu.matmul %3, %4, %cst_5 {dimension_numbers = #tpu.dot_dimension_numbers<[1], [0], [0], [1], [0, 0, 1, 1], [], []>} : vector<8x32xf32>, vector<32x4xf32>, vector<8x4xf32> -> vector<8x4xf32>
    %c0_6 = arith.constant 0 : index
    %c0_7 = arith.constant 0 : index
    %6 = vector.load %arg2[%c0_6, %c0_7] : memref<1x4xf32, #tpu.memory_space<vmem>>, vector<1x4xf32>
    %7 = vector.broadcast %6 : vector<1x4xf32> to vector<8x4xf32>
    %8 = arith.addf %5, %7 : vector<8x4xf32>
    %c0_8 = arith.constant 0 : index
    %c0_9 = arith.constant 0 : index
    %9 = vector.load %arg3[%c0_8, %c0_9] : memref<8x4xf32, #tpu.memory_space<vmem>>, vector<8x4xf32>
    tpu.vector_store %arg3[%c0_8, %c0_9], %8 {strides = array<i32>} : memref<8x4xf32, #tpu.memory_space<vmem>>, vector<8x4xf32>,
    return
  }
}

module attributes {stable_mosaic.version = 11 : i64} {
  func.func @_encoder_layer_kernel(%arg0: memref<64x32xf32, #tpu.memory_space<vmem>>, %arg1: memref<64x64xf32, #tpu.memory_space<vmem>>, %arg2: memref<32x96xf32, #tpu.memory_space<vmem>>, %arg3: memref<1x96xf32, #tpu.memory_space<vmem>>, %arg4: memref<32x32xf32, #tpu.memory_space<vmem>>, %arg5: memref<1x32xf32, #tpu.memory_space<vmem>>, %arg6: memref<1x32xf32, #tpu.memory_space<vmem>>, %arg7: memref<1x32xf32, #tpu.memory_space<vmem>>, %arg8: memref<32x2048xf32, #tpu.memory_space<vmem>>, %arg9: memref<1x2048xf32, #tpu.memory_space<vmem>>, %arg10: memref<2048x32xf32, #tpu.memory_space<vmem>>, %arg11: memref<1x32xf32, #tpu.memory_space<vmem>>, %arg12: memref<1x32xf32, #tpu.memory_space<vmem>>, %arg13: memref<1x32xf32, #tpu.memory_space<vmem>>, %arg14: memref<64x32xf32, #tpu.memory_space<vmem>>) attributes {dimension_semantics = [], scalar_prefetch = 0 : i64, scratch_operands = 0 : i64, tpu.core_type = #tpu.core_type<tc>} {
    %c0 = arith.constant 0 : index
    %c0_0 = arith.constant 0 : index
    %0 = vector.load %arg0[%c0, %c0_0] : memref<64x32xf32, #tpu.memory_space<vmem>>, vector<64x32xf32>
    %c0_1 = arith.constant 0 : index
    %c0_2 = arith.constant 0 : index
    %1 = vector.load %arg1[%c0_1, %c0_2] : memref<64x64xf32, #tpu.memory_space<vmem>>, vector<64x64xf32>
    %c0_3 = arith.constant 0 : index
    %c0_4 = arith.constant 0 : index
    %2 = vector.load %arg2[%c0_3, %c0_4] : memref<32x96xf32, #tpu.memory_space<vmem>>, vector<32x96xf32>
    %cst = arith.constant dense<0.000000e+00> : vector<64x96xf32>
    %3 = tpu.matmul %0, %2, %cst {dimension_numbers = #tpu.dot_dimension_numbers<[1], [0], [0], [1], [0, 0, 1, 1], [], []>} : vector<64x32xf32>, vector<32x96xf32>, vector<64x96xf32> -> vector<64x96xf32>
    %c0_5 = arith.constant 0 : index
    %c0_6 = arith.constant 0 : index
    %4 = vector.load %arg3[%c0_5, %c0_6] : memref<1x96xf32, #tpu.memory_space<vmem>>, vector<1x96xf32>
    %5 = vector.broadcast %4 : vector<1x96xf32> to vector<64x96xf32>
    %6 = arith.addf %3, %5 : vector<64x96xf32>
    %c0_7 = arith.constant 0 : index
    %c0_8 = arith.constant 0 : index
    %7 = vector.load %arg5[%c0_7, %c0_8] : memref<1x32xf32, #tpu.memory_space<vmem>>, vector<1x32xf32>
    %8 = vector.extract_strided_slice %6 {offsets = [0, 0], sizes = [64, 16], strides = [1, 1]} : vector<64x96xf32> to vector<64x16xf32>
    %9 = vector.extract_strided_slice %6 {offsets = [0, 32], sizes = [64, 16], strides = [1, 1]} : vector<64x96xf32> to vector<64x16xf32>
    %10 = vector.extract_strided_slice %6 {offsets = [0, 64], sizes = [64, 16], strides = [1, 1]} : vector<64x96xf32> to vector<64x16xf32>
    %cst_9 = arith.constant dense<0.000000e+00> : vector<64x64xf32>
    %11 = tpu.matmul %8, %9, %cst_9 {dimension_numbers = #tpu.dot_dimension_numbers<[1], [1], [0], [0], [0, 0, 1, 0], [], []>} : vector<64x16xf32>, vector<64x16xf32>, vector<64x64xf32> -> vector<64x64xf32>
    %cst_10 = arith.constant 2.500000e-01 : f32
    %12 = vector.broadcast %cst_10 : f32 to vector<64x64xf32>
    %13 = arith.mulf %11, %12 : vector<64x64xf32>
    %14 = arith.addf %13, %1 : vector<64x64xf32>
    %cst_11 = arith.constant dense<0xFF800000> : vector<64xf32>
    %15 = vector.multi_reduction <maximumf>, %14, %cst_11 [1] : vector<64x64xf32> to vector<64xf32>
    %16 = vector.shape_cast %15 : vector<64xf32> to vector<64x1xf32>
    %17 = vector.broadcast %16 : vector<64x1xf32> to vector<64x64xf32>
    %18 = arith.subf %14, %17 : vector<64x64xf32>
    %19 = math.exp %18 : vector<64x64xf32>
    %cst_12 = arith.constant dense<0.000000e+00> : vector<64xf32>
    %20 = vector.multi_reduction <add>, %19, %cst_12 [1] : vector<64x64xf32> to vector<64xf32>
    %21 = vector.shape_cast %20 : vector<64xf32> to vector<64x1xf32>
    %22 = tpu.reciprocal %21 {approx = true} : vector<64x1xf32> -> vector<64x1xf32>
    %23 = vector.broadcast %22 : vector<64x1xf32> to vector<64x64xf32>
    %24 = arith.mulf %19, %23 : vector<64x64xf32>
    %cst_13 = arith.constant dense<0.000000e+00> : vector<64x16xf32>
    %25 = tpu.matmul %24, %10, %cst_13 {dimension_numbers = #tpu.dot_dimension_numbers<[1], [0], [0], [1], [0, 0, 1, 1], [], []>} : vector<64x64xf32>, vector<64x16xf32>, vector<64x16xf32> -> vector<64x16xf32>
    %c0_14 = arith.constant 0 : index
    %c0_15 = arith.constant 0 : index
    %26 = vector.load %arg4[%c0_14, %c0_15] : memref<32x32xf32, #tpu.memory_space<vmem>>, vector<16x32xf32>
    %cst_16 = arith.constant dense<0.000000e+00> : vector<64x32xf32>
    %27 = tpu.matmul %25, %26, %cst_16 {dimension_numbers = #tpu.dot_dimension_numbers<[1], [0], [0], [1], [0, 0, 1, 1], [], []>} : vector<64x16xf32>, vector<16x32xf32>, vector<64x32xf32> -> vector<64x32xf32>
    %28 = vector.broadcast %7 : vector<1x32xf32> to vector<64x32xf32>
    %29 = arith.addf %28, %27 : vector<64x32xf32>
    %30 = vector.extract_strided_slice %6 {offsets = [0, 16], sizes = [64, 16], strides = [1, 1]} : vector<64x96xf32> to vector<64x16xf32>
    %31 = vector.extract_strided_slice %6 {offsets = [0, 48], sizes = [64, 16], strides = [1, 1]} : vector<64x96xf32> to vector<64x16xf32>
    %32 = vector.extract_strided_slice %6 {offsets = [0, 80], sizes = [64, 16], strides = [1, 1]} : vector<64x96xf32> to vector<64x16xf32>
    %cst_17 = arith.constant dense<0.000000e+00> : vector<64x64xf32>
    %33 = tpu.matmul %30, %31, %cst_17 {dimension_numbers = #tpu.dot_dimension_numbers<[1], [1], [0], [0], [0, 0, 1, 0], [], []>} : vector<64x16xf32>, vector<64x16xf32>, vector<64x64xf32> -> vector<64x64xf32>
    %cst_18 = arith.constant 2.500000e-01 : f32
    %34 = vector.broadcast %cst_18 : f32 to vector<64x64xf32>
    %35 = arith.mulf %33, %34 : vector<64x64xf32>
    %36 = arith.addf %35, %1 : vector<64x64xf32>
    %cst_19 = arith.constant dense<0xFF800000> : vector<64xf32>
    %37 = vector.multi_reduction <maximumf>, %36, %cst_19 [1] : vector<64x64xf32> to vector<64xf32>
    %38 = vector.shape_cast %37 : vector<64xf32> to vector<64x1xf32>
    %39 = vector.broadcast %38 : vector<64x1xf32> to vector<64x64xf32>
    %40 = arith.subf %36, %39 : vector<64x64xf32>
    %41 = math.exp %40 : vector<64x64xf32>
    %cst_20 = arith.constant dense<0.000000e+00> : vector<64xf32>
    %42 = vector.multi_reduction <add>, %41, %cst_20 [1] : vector<64x64xf32> to vector<64xf32>
    %43 = vector.shape_cast %42 : vector<64xf32> to vector<64x1xf32>
    %44 = tpu.reciprocal %43 {approx = true} : vector<64x1xf32> -> vector<64x1xf32>
    %45 = vector.broadcast %44 : vector<64x1xf32> to vector<64x64xf32>
    %46 = arith.mulf %41, %45 : vector<64x64xf32>
    %cst_21 = arith.constant dense<0.000000e+00> : vector<64x16xf32>
    %47 = tpu.matmul %46, %32, %cst_21 {dimension_numbers = #tpu.dot_dimension_numbers<[1], [0], [0], [1], [0, 0, 1, 1], [], []>} : vector<64x64xf32>, vector<64x16xf32>, vector<64x16xf32> -> vector<64x16xf32>
    %c16 = arith.constant 16 : index
    %c0_22 = arith.constant 0 : index
    %48 = vector.load %arg4[%c16, %c0_22] : memref<32x32xf32, #tpu.memory_space<vmem>>, vector<16x32xf32>
    %cst_23 = arith.constant dense<0.000000e+00> : vector<64x32xf32>
    %49 = tpu.matmul %47, %48, %cst_23 {dimension_numbers = #tpu.dot_dimension_numbers<[1], [0], [0], [1], [0, 0, 1, 1], [], []>} : vector<64x16xf32>, vector<16x32xf32>, vector<64x32xf32> -> vector<64x32xf32>
    %50 = arith.addf %29, %49 : vector<64x32xf32>
    %51 = arith.addf %0, %50 : vector<64x32xf32>
    %c0_24 = arith.constant 0 : index
    %c0_25 = arith.constant 0 : index
    %52 = vector.load %arg6[%c0_24, %c0_25] : memref<1x32xf32, #tpu.memory_space<vmem>>, vector<1x32xf32>
    %c0_26 = arith.constant 0 : index
    %c0_27 = arith.constant 0 : index
    %53 = vector.load %arg7[%c0_26, %c0_27] : memref<1x32xf32, #tpu.memory_space<vmem>>, vector<1x32xf32>
    %cst_28 = arith.constant dense<0.000000e+00> : vector<64xf32>
    %54 = vector.multi_reduction <add>, %51, %cst_28 [1] : vector<64x32xf32> to vector<64xf32>
    %55 = vector.shape_cast %54 : vector<64xf32> to vector<64x1xf32>
    %cst_29 = arith.constant 3.200000e+01 : f32
    %56 = vector.broadcast %cst_29 : f32 to vector<64x1xf32>
    %57 = arith.divf %55, %56 : vector<64x1xf32>
    %58 = vector.broadcast %57 : vector<64x1xf32> to vector<64x32xf32>
    %59 = arith.subf %51, %58 : vector<64x32xf32>
    %60 = arith.mulf %59, %59 : vector<64x32xf32>
    %cst_30 = arith.constant dense<0.000000e+00> : vector<64xf32>
    %61 = vector.multi_reduction <add>, %60, %cst_30 [1] : vector<64x32xf32> to vector<64xf32>
    %62 = vector.shape_cast %61 : vector<64xf32> to vector<64x1xf32>
    %cst_31 = arith.constant 3.200000e+01 : f32
    %63 = vector.broadcast %cst_31 : f32 to vector<64x1xf32>
    %64 = arith.divf %62, %63 : vector<64x1xf32>
    %65 = vector.broadcast %57 : vector<64x1xf32> to vector<64x32xf32>
    %66 = arith.subf %51, %65 : vector<64x32xf32>
    %cst_32 = arith.constant 9.99999974E-6 : f32
    %67 = vector.broadcast %cst_32 : f32 to vector<64x1xf32>
    %68 = arith.addf %64, %67 : vector<64x1xf32>
    %69 = math.rsqrt %68 : vector<64x1xf32>
    %70 = vector.broadcast %69 : vector<64x1xf32> to vector<64x32xf32>
    %71 = arith.mulf %66, %70 : vector<64x32xf32>
    %72 = vector.broadcast %52 : vector<1x32xf32> to vector<64x32xf32>
    %73 = arith.mulf %71, %72 : vector<64x32xf32>
    %74 = vector.broadcast %53 : vector<1x32xf32> to vector<64x32xf32>
    %75 = arith.addf %73, %74 : vector<64x32xf32>
    %c0_33 = arith.constant 0 : index
    %c0_34 = arith.constant 0 : index
    %76 = vector.load %arg8[%c0_33, %c0_34] : memref<32x2048xf32, #tpu.memory_space<vmem>>, vector<32x2048xf32>
    %cst_35 = arith.constant dense<0.000000e+00> : vector<64x2048xf32>
    %77 = tpu.matmul %75, %76, %cst_35 {dimension_numbers = #tpu.dot_dimension_numbers<[1], [0], [0], [1], [0, 0, 1, 1], [], []>} : vector<64x32xf32>, vector<32x2048xf32>, vector<64x2048xf32> -> vector<64x2048xf32>
    %c0_36 = arith.constant 0 : index
    %c0_37 = arith.constant 0 : index
    %78 = vector.load %arg9[%c0_36, %c0_37] : memref<1x2048xf32, #tpu.memory_space<vmem>>, vector<1x2048xf32>
    %79 = vector.broadcast %78 : vector<1x2048xf32> to vector<64x2048xf32>
    %80 = arith.addf %77, %79 : vector<64x2048xf32>
    %cst_38 = arith.constant 0.000000e+00 : f32
    %81 = vector.broadcast %cst_38 : f32 to vector<64x2048xf32>
    %82 = arith.maximumf %80, %81 : vector<64x2048xf32>
    %c0_39 = arith.constant 0 : index
    %c0_40 = arith.constant 0 : index
    %83 = vector.load %arg10[%c0_39, %c0_40] : memref<2048x32xf32, #tpu.memory_space<vmem>>, vector<2048x32xf32>
    %cst_41 = arith.constant dense<0.000000e+00> : vector<64x32xf32>
    %84 = tpu.matmul %82, %83, %cst_41 {dimension_numbers = #tpu.dot_dimension_numbers<[1], [0], [0], [1], [0, 0, 1, 1], [], []>} : vector<64x2048xf32>, vector<2048x32xf32>, vector<64x32xf32> -> vector<64x32xf32>
    %c0_42 = arith.constant 0 : index
    %c0_43 = arith.constant 0 : index
    %85 = vector.load %arg11[%c0_42, %c0_43] : memref<1x32xf32, #tpu.memory_space<vmem>>, vector<1x32xf32>
    %86 = vector.broadcast %85 : vector<1x32xf32> to vector<64x32xf32>
    %87 = arith.addf %84, %86 : vector<64x32xf32>
    %88 = arith.addf %75, %87 : vector<64x32xf32>
    %c0_44 = arith.constant 0 : index
    %c0_45 = arith.constant 0 : index
    %89 = vector.load %arg12[%c0_44, %c0_45] : memref<1x32xf32, #tpu.memory_space<vmem>>, vector<1x32xf32>
    %c0_46 = arith.constant 0 : index
    %c0_47 = arith.constant 0 : index
    %90 = vector.load %arg13[%c0_46, %c0_47] : memref<1x32xf32, #tpu.memory_space<vmem>>, vector<1x32xf32>
    %cst_48 = arith.constant dense<0.000000e+00> : vector<64xf32>
    %91 = vector.multi_reduction <add>, %88, %cst_48 [1] : vector<64x32xf32> to vector<64xf32>
    %92 = vector.shape_cast %91 : vector<64xf32> to vector<64x1xf32>
    %cst_49 = arith.constant 3.200000e+01 : f32
    %93 = vector.broadcast %cst_49 : f32 to vector<64x1xf32>
    %94 = arith.divf %92, %93 : vector<64x1xf32>
    %95 = vector.broadcast %94 : vector<64x1xf32> to vector<64x32xf32>
    %96 = arith.subf %88, %95 : vector<64x32xf32>
    %97 = arith.mulf %96, %96 : vector<64x32xf32>
    %cst_50 = arith.constant dense<0.000000e+00> : vector<64xf32>
    %98 = vector.multi_reduction <add>, %97, %cst_50 [1] : vector<64x32xf32> to vector<64xf32>
    %99 = vector.shape_cast %98 : vector<64xf32> to vector<64x1xf32>
    %cst_51 = arith.constant 3.200000e+01 : f32
    %100 = vector.broadcast %cst_51 : f32 to vector<64x1xf32>
    %101 = arith.divf %99, %100 : vector<64x1xf32>
    %102 = vector.broadcast %94 : vector<64x1xf32> to vector<64x32xf32>
    %103 = arith.subf %88, %102 : vector<64x32xf32>
    %cst_52 = arith.constant 9.99999974E-6 : f32
    %104 = vector.broadcast %cst_52 : f32 to vector<64x1xf32>
    %105 = arith.addf %101, %104 : vector<64x1xf32>
    %106 = math.rsqrt %105 : vector<64x1xf32>
    %107 = vector.broadcast %106 : vector<64x1xf32> to vector<64x32xf32>
    %108 = arith.mulf %103, %107 : vector<64x32xf32>
    %109 = vector.broadcast %89 : vector<1x32xf32> to vector<64x32xf32>
    %110 = arith.mulf %108, %109 : vector<64x32xf32>
    %111 = vector.broadcast %90 : vector<1x32xf32> to vector<64x32xf32>
    %112 = arith.addf %110, %111 : vector<64x32xf32>
    %c0_53 = arith.constant 0 : index
    %c0_54 = arith.constant 0 : index
    %113 = vector.load %arg14[%c0_53, %c0_54] : memref<64x32xf32, #tpu.memory_space<vmem>>, vector<64x32xf32>
    tpu.vector_store %arg14[%c0_53, %c0_54], %112 {strides = array<i32>} : memref<64x32xf32, #tpu.memory_space<vmem>>, vector<64x32xf32>,
    return
  }
}

</mosaic_0001>

<llo_original>
// kernel: transformer_net_forward.4
$region0: #{transformer_net_forward.4}
  #allocation0 [shape = 'u32[]', space=smem, size = 0x4, offset = 0x4, fixed_abs, tag = 'smem constant byte address 0x4 - core index']
  #allocation1 [shape = 'u32[144,128]{1,0:T(1,128)}', space=vmem, size = 0x12000, scoped, tag = 'internal scratch']
  %s0 = inlined_call_operand.vmem [shape: s32[24,1], index: 0, kind: input, shape index: {}]
  %s1 = inlined_call_operand.vmem [shape: s32[8,1], index: 1, kind: input, shape index: {}]
  %s2 = inlined_call_operand.vmem [shape: s32[8,1], index: 2, kind: input, shape index: {}]
  %s3 = inlined_call_operand.vmem [shape: f32[32,32], index: 3, kind: input, shape index: {}]
  %s4 = inlined_call_operand.vmem [shape: f32[8,32], index: 4, kind: input, shape index: {}]
  %s5 = inlined_call_operand.vmem [shape: f32[8,8,32], index: 5, kind: output, shape index: {}]
  %s6 = sld [smem:[#allocation0]]
  $region30: #{transformer_net_forward.4} parent=0
    _
  %s8 = ssub.s32 1, %s6
  %s9 = scalar_select 0, %s8, %s6
  // Predicated region
  $region2: #{transformer_net_forward.4} parent=0 // pred_check
    _
  $region3: #{transformer_net_forward.4} parent=0 // pred_check_branch
    %11 = sbr.rel (0) target = $region5
  $region4: #{transformer_net_forward.4} parent=0 // pred_region
    _
  $region5: #{transformer_net_forward.4} parent=0 // pred_fallthru
    _
  // Predicated region
  $region6: #{transformer_net_forward.4} parent=0 // pred_check
    _
  $region7: #{transformer_net_forward.4} parent=0 // pred_check_branch
    %13 = sbr.rel (0) target = $region9
  $region8: #{transformer_net_forward.4} parent=0 // pred_region
    _
  $region9: #{transformer_net_forward.4} parent=0 // pred_fallthru
    _
  // Predicated region
  $region10: #{transformer_net_forward.4} parent=0 // pred_check
    _
  $region11: #{transformer_net_forward.4} parent=0 // pred_check_branch
    %15 = sbr.rel (0) target = $region13
  $region12: #{transformer_net_forward.4} parent=0 // pred_region
    _
  $region13: #{transformer_net_forward.4} parent=0 // pred_fallthru
    _
  // Predicated region
  $region14: #{transformer_net_forward.4} parent=0 // pred_check
    _
  $region15: #{transformer_net_forward.4} parent=0 // pred_check_branch
    %17 = sbr.rel (0) target = $region17
  $region16: #{transformer_net_forward.4} parent=0 // pred_region
    _
  $region17: #{transformer_net_forward.4} parent=0 // pred_fallthru
    _
  // Predicated region
  $region18: #{transformer_net_forward.4} parent=0 // pred_check
    _
  $region19: #{transformer_net_forward.4} parent=0 // pred_check_branch
    %19 = sbr.rel (0) target = $region21
  $region20: #{transformer_net_forward.4} parent=0 // pred_region
    _
  $region21: #{transformer_net_forward.4} parent=0 // pred_fallthru
    _
  %v20 = vld [vmem:[%s0] sm:$0xff]
  %v21 = vld [vmem:[%s0 + $0x8] sm:$0xff]
  %v22 = vld [vmem:[%s0 + $0x10] sm:$0xff]
  %v23 = vlaneseq
  %v24 = vand.u32 %v23, 127
  %25 = vset.pattern.permute.xlu0 0
  %26 = vperm.xlu0 %25, %v20
  %v27 = vpop.permute.xlu0 %26
  %28 = vset.pattern.permute.xlu0 0
  %29 = vperm.xlu0 %28, %v21
  %v30 = vpop.permute.xlu0 %29
  %31 = vset.pattern.permute.xlu0 0
  %32 = vperm.xlu0 %31, %v22
  %v33 = vpop.permute.xlu0 %32
  %vm34 = vcmp.eq.s32.totalorder %v27, %v24
  %vm35 = vcmp.eq.s32.totalorder %v30, %v24
  %vm36 = vcmp.eq.s32.totalorder %v33, %v24
  %v37 = vsel %vm34, 1, 0
  %v38 = vsel %vm35, 1, 0
  %v39 = vsel %vm36, 1, 0
  %v40 = vcvt.s32.f32 %v37
  %v41 = vcvt.s32.f32 %v38
  %v42 = vcvt.s32.f32 %v39
  %v43 = vld [vmem:[%s3] sm:$0xff]
  %v44 = vld [vmem:[%s3 + $0x8] sm:$0xff]
  %v45 = vld [vmem:[%s3 + $0x10] sm:$0xff]
  %v46 = vld [vmem:[%s3 + $0x18] sm:$0xff]
  %vm47 = vcmask 261120
  %v49 = vsel %vm47, %v40, 0
  %v52 = vsel %vm47, %v41, 0
  %v55 = vsel %vm47, %v42, 0
  %57 = vmatprep.subr.mxu0 0.0
  %58 = vmatpush1.msra.mxu0 %v43
  %59 = vmatprep.subr.mxu0 0.0
  %60 = vmatpush1.msra.mxu0 %v44
  %61 = vmatprep.subr.mxu0 0.0
  %62 = vmatpush1.msra.mxu0 %v45
  %63 = vmatprep.subr.mxu0 0.0
  %64 = vmatpush1.msra.mxu0 %v46
  %65 = vmatprep.subr.mxu0 0.0
  %66 = vmatpush1.msra.mxu0 0.0
  %67 = vmatprep.subr.mxu0 0.0
  %68 = vmatpush1.msra.mxu0 0.0
  %69 = vmatprep.subr.mxu0 0.0
  %70 = vmatpush1.msra.mxu0 0.0
  %71 = vmatprep.subr.mxu0 0.0
  %72 = vmatpush1.msra.mxu0 0.0
  %73 = vmatprep.subr.mxu0 0.0
  %74 = vmatpush1.msra.mxu0 0.0
  %75 = vmatprep.subr.mxu0 0.0
  %76 = vmatpush1.msra.mxu0 0.0
  %77 = vmatprep.subr.mxu0 0.0
  %78 = vmatpush1.msra.mxu0 0.0
  %79 = vmatprep.subr.mxu0 0.0
  %80 = vmatpush1.msra.mxu0 0.0
  %81 = vmatprep.subr.mxu0 0.0
  %82 = vmatpush1.msra.mxu0 0.0
  %83 = vmatprep.subr.mxu0 0.0
  %84 = vmatpush1.msra.mxu0 0.0
  %85 = vmatprep.subr.mxu0 0.0
  %86 = vmatpush1.msra.mxu0 0.0
  %87 = vmatprep.subr.mxu0 0.0
  %88 = vmatpush1.msra.mxu0 0.0
  %89 = vmatprep.subr.mxu0 0.0
  %90 = vmatpush1.msra.mxu0 0.0
  %91 = vmatprep.subr.mxu0 0.0
  %92 = vmatpush1.msra.mxu0 0.0
  %93 = vmatprep.subr.mxu0 0.0
  %94 = vmatpush1.msra.mxu0 0.0
  %95 = vmatprep.subr.mxu0 0.0
  %96 = vmatpush1.msra.mxu0 0.0
  %97 = vmatprep.subr.mxu0 0.0
  %98 = vmatpush1.msra.mxu0 0.0
  %99 = vmatprep.subr.mxu0 0.0
  %100 = vmatpush1.msra.mxu0 0.0
  %101 = vmatprep.subr.mxu0 0.0
  %102 = vmatpush1.msra.mxu0 0.0
  %103 = vmatprep.subr.mxu0 0.0
  %104 = vmatpush1.msra.mxu0 0.0
  %105 = vmatprep.subr.mxu0 0.0
  %106 = vmatpush1.msra.mxu0 0.0
  %107 = vmatprep.subr.mxu0 0.0
  %108 = vmatpush1.msra.mxu0 0.0
  %109 = vmatprep.subr.mxu0 0.0
  %110 = vmatpush1.msra.mxu0 0.0
  %111 = vmatprep.subr.mxu0 0.0
  %112 = vmatpush1.msra.mxu0 0.0
  %113 = vmatprep.subr.mxu0 0.0
  %114 = vmatpush1.msra.mxu0 0.0
  %115 = vmatprep.subr.mxu0 0.0
  %116 = vmatpush1.msra.mxu0 0.0
  %117 = vmatprep.subr.mxu0 0.0
  %118 = vmatpush1.msra.mxu0 0.0
  %119 = vmatprep.subr.mxu0 0.0
  %120 = vmatpush1.msra.mxu0 0.0
  %121 = vmatprep.mubr.f32.mxu0 0.0
  %122 = vmatmul.mubr.f32.gmra.mrb[0].mxu0 %v49
  %v123 = vpop.f32.mrb[0].mxu0
  %v124 = vadd.f32 0.0, %v123
  %v125 = vpop.f32.mrb[0].mxu0
  %126 = vmatprep.mubr.f32.mxu0 0.0
  %127 = vmatmul.mubr.f32.gmra.mrb[0].mxu0 %v52
  %v128 = vpop.f32.mrb[0].mxu0
  %v129 = vadd.f32 0.0, %v128
  %v130 = vpop.f32.mrb[0].mxu0
  %131 = vmatprep.mubr.f32.mxu0 0.0
  %132 = vmatmul.mubr.f32.gmra.mrb[0].mxu0 %v55
  %v133 = vpop.f32.mrb[0].mxu0
  %v134 = vadd.f32 0.0, %v133
  %v135 = vpop.f32.mrb[0].mxu0
  %136 = vdwg.mxu0
  %v137 = vld [vmem:[%s1] sm:$0xff]
  %v138 = vld [vmem:[%s2] sm:$0xff]
  %139 = vset.pattern.permute.xlu0 0
  %140 = vperm.xlu0 %139, %v137
  %v141 = vpop.permute.xlu0 %140
  %vm142 = vcmp.ge.s32.totalorder %v24, %v141
  %v143 = vadd.s32 %v137, %v138
  %144 = vset.pattern.permute.xlu0 0
  %145 = vperm.xlu0 %144, %v143
  %v146 = vpop.permute.xlu0 %145
  %vm147 = vcmp.lt.s32.totalorder %v24, %v146
  %vm148 = vmand %vm142, %vm147
  %v149 = vsel %vm148, 1, 0
  %v150 = vcvt.s32.f32 %v149
  %vm151 = vcmask 195584
  %v153 = vsel %vm151, %v150, 0
  %155 = vmatprep.subr.mxu0 0.0
  %156 = vmatpush1.msra.mxu0 %v124
  %157 = vmatprep.subr.mxu0 0.0
  %158 = vmatpush1.msra.mxu0 %v129
  %159 = vmatprep.subr.mxu0 0.0
  %160 = vmatpush1.msra.mxu0 %v134
  %161 = vmatprep.subr.mxu0 0.0
  %162 = vmatpush1.msra.mxu0 0.0
  %163 = vmatprep.subr.mxu0 0.0
  %164 = vmatpush1.msra.mxu0 0.0
  %165 = vmatprep.subr.mxu0 0.0
  %166 = vmatpush1.msra.mxu0 0.0
  %167 = vmatprep.subr.mxu0 0.0
  %168 = vmatpush1.msra.mxu0 0.0
  %169 = vmatprep.subr.mxu0 0.0
  %170 = vmatpush1.msra.mxu0 0.0
  %171 = vmatprep.subr.mxu0 0.0
  %172 = vmatpush1.msra.mxu0 0.0
  %173 = vmatprep.subr.mxu0 0.0
  %174 = vmatpush1.msra.mxu0 0.0
  %175 = vmatprep.subr.mxu0 0.0
  %176 = vmatpush1.msra.mxu0 0.0
  %177 = vmatprep.subr.mxu0 0.0
  %178 = vmatpush1.msra.mxu0 0.0
  %179 = vmatprep.subr.mxu0 0.0
  %180 = vmatpush1.msra.mxu0 0.0
  %181 = vmatprep.subr.mxu0 0.0
  %182 = vmatpush1.msra.mxu0 0.0
  %183 = vmatprep.subr.mxu0 0.0
  %184 = vmatpush1.msra.mxu0 0.0
  %185 = vmatprep.subr.mxu0 0.0
  %186 = vmatpush1.msra.mxu0 0.0
  %187 = vmatprep.subr.mxu0 0.0
  %188 = vmatpush1.msra.mxu0 0.0
  %189 = vmatprep.subr.mxu0 0.0
  %190 = vmatpush1.msra.mxu0 0.0
  %191 = vmatprep.subr.mxu0 0.0
  %192 = vmatpush1.msra.mxu0 0.0
  %193 = vmatprep.subr.mxu0 0.0
  %194 = vmatpush1.msra.mxu0 0.0
  %195 = vmatprep.subr.mxu0 0.0
  %196 = vmatpush1.msra.mxu0 0.0
  %197 = vmatprep.subr.mxu0 0.0
  %198 = vmatpush1.msra.mxu0 0.0
  %199 = vmatprep.subr.mxu0 0.0
  %200 = vmatpush1.msra.mxu0 0.0
  %201 = vmatprep.subr.mxu0 0.0
  %202 = vmatpush1.msra.mxu0 0.0
  %203 = vmatprep.subr.mxu0 0.0
  %204 = vmatpush1.msra.mxu0 0.0
  %205 = vmatprep.subr.mxu0 0.0
  %206 = vmatpush1.msra.mxu0 0.0
  %207 = vmatprep.subr.mxu0 0.0
  %208 = vmatpush1.msra.mxu0 0.0
  %209 = vmatprep.subr.mxu0 0.0
  %210 = vmatpush1.msra.mxu0 0.0
  %211 = vmatprep.subr.mxu0 0.0
  %212 = vmatpush1.msra.mxu0 0.0
  %213 = vmatprep.subr.mxu0 0.0
  %214 = vmatpush1.msra.mxu0 0.0
  %215 = vmatprep.subr.mxu0 0.0
  %216 = vmatpush1.msra.mxu0 0.0
  %217 = vmatprep.subr.mxu0 0.0
  %218 = vmatpush1.msra.mxu0 0.0
  %219 = vmatprep.mubr.f32.mxu0 0.0
  %220 = vmatmul.mubr.f32.gmra.mrb[0].mxu0 %v153
  %v221 = vpop.f32.mrb[0].mxu0
  %v222 = vadd.f32 0.0, %v221
  %v223 = vpop.f32.mrb[0].mxu0
  %224 = vdwg.mxu0
  %vm225 = vcmp.gt.s32.totalorder %v138, 1
  %v226 = vsel %vm225, %v138, 1
  %v227 = vcvt.s32.f32 %v226
  %v228 = vrcp.pop %v227
  %v229 = vmul.f32 %v228, 5.656854
  %231 = vset.pattern.permute.xlu0 0
  %232 = vperm.xlu0 %231, %v229
  %v233 = vpop.permute.xlu0 %232
  %v235 = vmul.f32 %v222, %v233
  %v236 = vld [vmem:[%s4] sm:$0xff]
  %v238 = vcombine.high %v236, %v236
  %v240 = vunpack.c.l.s4 1966171168
  %v241 = vunpack.c.0.s8 %v240
  %v242 = vlaneseq
  %v243 = vshrl.u32 %v242, 7
  %v244 = vsub.s32 %v241, %v243
  %v245 = vrot.slane %v236, %v244
  %v247 = vunpack.c.l.s4 1966171168
  %v248 = vunpack.c.0.s8 %v247
  %v249 = vlaneseq
  %v250 = vshrl.u32 %v249, 7
  %v251 = vsub.s32 %v248, %v250
  %v252 = vrot.slane %v238, %v251
  %v253 = vcombine.high %v245, %v245
  %v254 = vcombine.high %v252, %v252
  %v256 = vunpack.c.l.s4 1966171168
  %v257 = vunpack.c.0.s8 %v256
  %v258 = vlaneseq
  %v259 = vshrl.u32 %v258, 7
  %v260 = vsub.s32 %v257, %v259
  %v261 = vrot.slane %v245, %v260
  %v263 = vunpack.c.l.s4 1966171168
  %v264 = vunpack.c.0.s8 %v263
  %v265 = vlaneseq
  %v266 = vshrl.u32 %v265, 7
  %v267 = vsub.s32 %v264, %v266
  %v268 = vrot.slane %v252, %v267
  %v270 = vunpack.c.l.s4 1966171168
  %v271 = vunpack.c.0.s8 %v270
  %v272 = vlaneseq
  %v273 = vshrl.u32 %v272, 7
  %v274 = vsub.s32 %v271, %v273
  %v275 = vrot.slane %v253, %v274
  %v277 = vunpack.c.l.s4 1966171168
  %v278 = vunpack.c.0.s8 %v277
  %v279 = vlaneseq
  %v280 = vshrl.u32 %v279, 7
  %v281 = vsub.s32 %v278, %v280
  %v282 = vrot.slane %v254, %v281
  %v283 = vcombine.high %v261, %v261
  %v284 = vcombine.high %v268, %v268
  %v285 = vcombine.high %v275, %v275
  %v286 = vcombine.high %v282, %v282
  %v287 = vlaneseq
  %v288 = vshrl.u32 %v287, 7
  %v289 = vsub.s32 0, %v288
  %v290 = vrot.slane %v261, %v289
  %v291 = vlaneseq
  %v292 = vshrl.u32 %v291, 7
  %v293 = vsub.s32 0, %v292
  %v294 = vrot.slane %v275, %v293
  %v295 = vlaneseq
  %v296 = vshrl.u32 %v295, 7
  %v297 = vsub.s32 0, %v296
  %v298 = vrot.slane %v283, %v297
  %v299 = vlaneseq
  %v300 = vshrl.u32 %v299, 7
  %v301 = vsub.s32 0, %v300
  %v302 = vrot.slane %v285, %v301
  %v303 = vlaneseq
  %v304 = vshrl.u32 %v303, 7
  %v305 = vsub.s32 0, %v304
  %v306 = vrot.slane %v268, %v305
  %v307 = vlaneseq
  %v308 = vshrl.u32 %v307, 7
  %v309 = vsub.s32 0, %v308
  %v310 = vrot.slane %v282, %v309
  %v311 = vlaneseq
  %v312 = vshrl.u32 %v311, 7
  %v313 = vsub.s32 0, %v312
  %v314 = vrot.slane %v284, %v313
  %v315 = vlaneseq
  %v316 = vshrl.u32 %v315, 7
  %v317 = vsub.s32 0, %v316
  %v318 = vrot.slane %v286, %v317
  %v327 = vadd.f32 %v235, %v290
  %v328 = vadd.f32 %v235, %v294
  %v329 = vadd.f32 %v235, %v298
  %v330 = vadd.f32 %v235, %v302
  %v331 = vadd.f32 %v235, %v306
  %v332 = vadd.f32 %v235, %v310
  %v333 = vadd.f32 %v235, %v314
  %v334 = vadd.f32 %v235, %v318
  %335 = vst.msk [vmem:[%s5] sm:$0xff] %vm47, %v327
  %336 = vst.msk [vmem:[%s5 + $0x8] sm:$0xff] %vm47, %v328
  %337 = vst.msk [vmem:[%s5 + $0x10] sm:$0xff] %vm47, %v329
  %338 = vst.msk [vmem:[%s5 + $0x18] sm:$0xff] %vm47, %v330
  %339 = vst.msk [vmem:[%s5 + $0x20] sm:$0xff] %vm47, %v331
  %340 = vst.msk [vmem:[%s5 + $0x28] sm:$0xff] %vm47, %v332
  %341 = vst.msk [vmem:[%s5 + $0x30] sm:$0xff] %vm47, %v333
  %342 = vst.msk [vmem:[%s5 + $0x38] sm:$0xff] %vm47, %v334
  // Predicated region
  $region22: #{transformer_net_forward.4} parent=0 // pred_check
    _
  $region23: #{transformer_net_forward.4} parent=0 // pred_check_branch
    %344 = sbr.rel (0) target = $region25
  $region24: #{transformer_net_forward.4} parent=0 // pred_region
    _
  $region25: #{transformer_net_forward.4} parent=0 // pred_fallthru
    _
  // Predicated region
  $region26: #{transformer_net_forward.4} parent=0 // pred_check
    _
  $region27: #{transformer_net_forward.4} parent=0 // pred_check_branch
    %346 = sbr.rel (0) target = $region29
  $region28: #{transformer_net_forward.4} parent=0 // pred_region
    _
  $region29: #{transformer_net_forward.4} parent=0 // pred_fallthru
    _

// kernel: transformer_net_forward.7
$region0: #{transformer_net_forward.7}
  #allocation0 [shape = 'u32[]', space=smem, size = 0x4, offset = 0x4, fixed_abs, tag = 'smem constant byte address 0x4 - core index']
  #allocation1 [shape = 'u32[144,128]{1,0:T(1,128)}', space=vmem, size = 0x12000, scoped, tag = 'internal scratch']
  %s0 = inlined_call_operand.vmem [shape: f32[8,8,32], index: 0, kind: input, shape index: {}]
  %s1 = inlined_call_operand.vmem [shape: f32[32,4], index: 1, kind: input, shape index: {}]
  %s2 = inlined_call_operand.vmem [shape: f32[1,4], index: 2, kind: input, shape index: {}]
  %s3 = inlined_call_operand.vmem [shape: f32[8,4], index: 3, kind: output, shape index: {}]
  %s4 = sld [smem:[#allocation0]]
  $region22: #{transformer_net_forward.7} parent=0
    _
  %s6 = ssub.s32 1, %s4
  %s7 = scalar_select 0, %s6, %s4
  // Predicated region
  $region2: #{transformer_net_forward.7} parent=0 // pred_check
    _
  $region3: #{transformer_net_forward.7} parent=0 // pred_check_branch
    %9 = sbr.rel (0) target = $region5
  $region4: #{transformer_net_forward.7} parent=0 // pred_region
    _
  $region5: #{transformer_net_forward.7} parent=0 // pred_fallthru
    _
  // Predicated region
  $region6: #{transformer_net_forward.7} parent=0 // pred_check
    _
  $region7: #{transformer_net_forward.7} parent=0 // pred_check_branch
    %11 = sbr.rel (0) target = $region9
  $region8: #{transformer_net_forward.7} parent=0 // pred_region
    _
  $region9: #{transformer_net_forward.7} parent=0 // pred_fallthru
    _
  // Predicated region
  $region10: #{transformer_net_forward.7} parent=0 // pred_check
    _
  $region11: #{transformer_net_forward.7} parent=0 // pred_check_branch
    %13 = sbr.rel (0) target = $region13
  $region12: #{transformer_net_forward.7} parent=0 // pred_region
    _
  $region13: #{transformer_net_forward.7} parent=0 // pred_fallthru
    _
  %v14 = vld [vmem:[%s0] sm:$0xff]
  %v15 = vld [vmem:[%s0 + $0x8] sm:$0xff]
  %v16 = vld [vmem:[%s0 + $0x10] sm:$0xff]
  %v17 = vld [vmem:[%s0 + $0x18] sm:$0xff]
  %v18 = vld [vmem:[%s0 + $0x20] sm:$0xff]
  %v19 = vld [vmem:[%s0 + $0x28] sm:$0xff]
  %v20 = vld [vmem:[%s0 + $0x30] sm:$0xff]
  %v21 = vld [vmem:[%s0 + $0x38] sm:$0xff]
  %vm22 = vcmask 261120
  %v23 = vsel %vm22, %v14, 0.0
  %v24 = vrot.slane %v23, 4
  %v25 = vadd.f32 %v23, %v24
  %v26 = vrot.slane %v25, 2
  %v27 = vadd.f32 %v25, %v26
  %v28 = vrot.slane %v27, 1
  %v29 = vadd.f32 %v27, %v28
  %v30 = vsel %vm22, %v15, 0.0
  %v31 = vrot.slane %v30, 4
  %v32 = vadd.f32 %v30, %v31
  %v33 = vrot.slane %v32, 2
  %v34 = vadd.f32 %v32, %v33
  %v35 = vrot.slane %v34, 1
  %v36 = vadd.f32 %v34, %v35
  %v37 = vsel %vm22, %v16, 0.0
  %v38 = vrot.slane %v37, 4
  %v39 = vadd.f32 %v37, %v38
  %v40 = vrot.slane %v39, 2
  %v41 = vadd.f32 %v39, %v40
  %v42 = vrot.slane %v41, 1
  %v43 = vadd.f32 %v41, %v42
  %v44 = vsel %vm22, %v17, 0.0
  %v45 = vrot.slane %v44, 4
  %v46 = vadd.f32 %v44, %v45
  %v47 = vrot.slane %v46, 2
  %v48 = vadd.f32 %v46, %v47
  %v49 = vrot.slane %v48, 1
  %v50 = vadd.f32 %v48, %v49
  %v51 = vsel %vm22, %v18, 0.0
  %v52 = vrot.slane %v51, 4
  %v53 = vadd.f32 %v51, %v52
  %v54 = vrot.slane %v53, 2
  %v55 = vadd.f32 %v53, %v54
  %v56 = vrot.slane %v55, 1
  %v57 = vadd.f32 %v55, %v56
  %v58 = vsel %vm22, %v19, 0.0
  %v59 = vrot.slane %v58, 4
  %v60 = vadd.f32 %v58, %v59
  %v61 = vrot.slane %v60, 2
  %v62 = vadd.f32 %v60, %v61
  %v63 = vrot.slane %v62, 1
  %v64 = vadd.f32 %v62, %v63
  %v65 = vsel %vm22, %v20, 0.0
  %v66 = vrot.slane %v65, 4
  %v67 = vadd.f32 %v65, %v66
  %v68 = vrot.slane %v67, 2
  %v69 = vadd.f32 %v67, %v68
  %v70 = vrot.slane %v69, 1
  %v71 = vadd.f32 %v69, %v70
  %v72 = vsel %vm22, %v21, 0.0
  %v73 = vrot.slane %v72, 4
  %v74 = vadd.f32 %v72, %v73
  %v75 = vrot.slane %v74, 2
  %v76 = vadd.f32 %v74, %v75
  %v77 = vrot.slane %v76, 1
  %v78 = vadd.f32 %v76, %v77
  %v79 = vrcp.pop 8.0
  %v80 = vmul.f32 %v29, %v79
  %v81 = vmul.f32 %v36, %v79
  %v82 = vmul.f32 %v43, %v79
  %v83 = vmul.f32 %v50, %v79
  %v84 = vmul.f32 %v57, %v79
  %v85 = vmul.f32 %v64, %v79
  %v86 = vmul.f32 %v71, %v79
  %v87 = vmul.f32 %v78, %v79
  %v88 = vld [vmem:[%s1] sm:$0xff]
  %v89 = vld [vmem:[%s1 + $0x8] sm:$0xff]
  %v90 = vld [vmem:[%s1 + $0x10] sm:$0xff]
  %v91 = vld [vmem:[%s1 + $0x18] sm:$0xff]
  %v92 = vld [vmem:[%s2] sm:$0x1]
  %v94 = vlaneseq
  %v95 = vshrl.u32 %v94, 7
  %v96 = vsub.s32 0, %v95
  %v97 = vrot.slane %v92, %v96
  %vm107 = vcmask 1041409
  %v108 = vsel %vm107, %v81, %v80
  %vm109 = vcmask 1042434
  %v110 = vsel %vm109, %v82, %v108
  %vm111 = vcmask 1043459
  %v112 = vsel %vm111, %v83, %v110
  %vm113 = vcmask 1044484
  %v114 = vsel %vm113, %v84, %v112
  %vm115 = vcmask 1045509
  %v116 = vsel %vm115, %v85, %v114
  %vm117 = vcmask 1046534
  %v118 = vsel %vm117, %v86, %v116
  %vm119 = vcmask 1047559
  %v120 = vsel %vm119, %v87, %v118
  %v121 = vsel %vm22, %v120, 0
  %123 = vmatprep.subr.mxu0 0.0
  %124 = vmatpush1.msra.mxu0 %v88
  %125 = vmatprep.subr.mxu0 0.0
  %126 = vmatpush1.msra.mxu0 %v89
  %127 = vmatprep.subr.mxu0 0.0
  %128 = vmatpush1.msra.mxu0 %v90
  %129 = vmatprep.subr.mxu0 0.0
  %130 = vmatpush1.msra.mxu0 %v91
  %131 = vmatprep.subr.mxu0 0.0
  %132 = vmatpush1.msra.mxu0 0.0
  %133 = vmatprep.subr.mxu0 0.0
  %134 = vmatpush1.msra.mxu0 0.0
  %135 = vmatprep.subr.mxu0 0.0
  %136 = vmatpush1.msra.mxu0 0.0
  %137 = vmatprep.subr.mxu0 0.0
  %138 = vmatpush1.msra.mxu0 0.0
  %139 = vmatprep.subr.mxu0 0.0
  %140 = vmatpush1.msra.mxu0 0.0
  %141 = vmatprep.subr.mxu0 0.0
  %142 = vmatpush1.msra.mxu0 0.0
  %143 = vmatprep.subr.mxu0 0.0
  %144 = vmatpush1.msra.mxu0 0.0
  %145 = vmatprep.subr.mxu0 0.0
  %146 = vmatpush1.msra.mxu0 0.0
  %147 = vmatprep.subr.mxu0 0.0
  %148 = vmatpush1.msra.mxu0 0.0
  %149 = vmatprep.subr.mxu0 0.0
  %150 = vmatpush1.msra.mxu0 0.0
  %151 = vmatprep.subr.mxu0 0.0
  %152 = vmatpush1.msra.mxu0 0.0
  %153 = vmatprep.subr.mxu0 0.0
  %154 = vmatpush1.msra.mxu0 0.0
  %155 = vmatprep.subr.mxu0 0.0
  %156 = vmatpush1.msra.mxu0 0.0
  %157 = vmatprep.subr.mxu0 0.0
  %158 = vmatpush1.msra.mxu0 0.0
  %159 = vmatprep.subr.mxu0 0.0
  %160 = vmatpush1.msra.mxu0 0.0
  %161 = vmatprep.subr.mxu0 0.0
  %162 = vmatpush1.msra.mxu0 0.0
  %163 = vmatprep.subr.mxu0 0.0
  %164 = vmatpush1.msra.mxu0 0.0
  %165 = vmatprep.subr.mxu0 0.0
  %166 = vmatpush1.msra.mxu0 0.0
  %167 = vmatprep.subr.mxu0 0.0
  %168 = vmatpush1.msra.mxu0 0.0
  %169 = vmatprep.subr.mxu0 0.0
  %170 = vmatpush1.msra.mxu0 0.0
  %171 = vmatprep.subr.mxu0 0.0
  %172 = vmatpush1.msra.mxu0 0.0
  %173 = vmatprep.subr.mxu0 0.0
  %174 = vmatpush1.msra.mxu0 0.0
  %175 = vmatprep.subr.mxu0 0.0
  %176 = vmatpush1.msra.mxu0 0.0
  %177 = vmatprep.subr.mxu0 0.0
  %178 = vmatpush1.msra.mxu0 0.0
  %179 = vmatprep.subr.mxu0 0.0
  %180 = vmatpush1.msra.mxu0 0.0
  %181 = vmatprep.subr.mxu0 0.0
  %182 = vmatpush1.msra.mxu0 0.0
  %183 = vmatprep.subr.mxu0 0.0
  %184 = vmatpush1.msra.mxu0 0.0
  %185 = vmatprep.subr.mxu0 0.0
  %186 = vmatpush1.msra.mxu0 0.0
  %187 = vmatprep.mubr.f32.mxu0 0.0
  %188 = vmatmul.mubr.f32.gmra.mrb[0].mxu0 %v121
  %v189 = vpop.f32.mrb[0].mxu0
  %v190 = vadd.f32 %v97, %v189
  %v191 = vpop.f32.mrb[0].mxu0
  %192 = vdwg.mxu0
  %vm193 = vcmask 31744
  %194 = vst.msk [vmem:[%s3] sm:$0xff] %vm193, %v190
  // Predicated region
  $region14: #{transformer_net_forward.7} parent=0 // pred_check
    _
  $region15: #{transformer_net_forward.7} parent=0 // pred_check_branch
    %196 = sbr.rel (0) target = $region17
  $region16: #{transformer_net_forward.7} parent=0 // pred_region
    _
  $region17: #{transformer_net_forward.7} parent=0 // pred_fallthru
    _
  // Predicated region
  $region18: #{transformer_net_forward.7} parent=0 // pred_check
    _
  $region19: #{transformer_net_forward.7} parent=0 // pred_check_branch
    %198 = sbr.rel (0) target = $region21
  $region20: #{transformer_net_forward.7} parent=0 // pred_region
    _
  $region21: #{transformer_net_forward.7} parent=0 // pred_fallthru
    _

// kernel: transformer_net_forward.5
$region0: #{transformer_net_forward.5}
  #allocation0 [shape = 'u32[]', space=smem, size = 0x4, offset = 0x4, fixed_abs, tag = 'smem constant byte address 0x4 - core index']
  #allocation1 [shape = 'u32[144,128]{1,0:T(1,128)}', space=vmem, size = 0x12000, scoped, tag = 'internal scratch']
  %s0 = inlined_call_operand.vmem [shape: f32[64,32], index: 0, kind: input, shape index: {}]
  %s1 = inlined_call_operand.vmem [shape: f32[64,64], index: 1, kind: input, shape index: {}]
  %s2 = inlined_call_operand.vmem [shape: f32[32,96], index: 2, kind: input, shape index: {}]
  %s3 = inlined_call_operand.vmem [shape: f32[1,96], index: 3, kind: input, shape index: {}]
  %s4 = inlined_call_operand.vmem [shape: f32[32,32], index: 4, kind: input, shape index: {}]
  %s5 = inlined_call_operand.vmem [shape: f32[1,32], index: 5, kind: input, shape index: {}]
  %s6 = inlined_call_operand.vmem [shape: f32[1,32], index: 6, kind: input, shape index: {}]
  %s7 = inlined_call_operand.vmem [shape: f32[1,32], index: 7, kind: input, shape index: {}]
  %s8 = inlined_call_operand.vmem [shape: f32[32,2048], index: 8, kind: input, shape index: {}]
  %s9 = inlined_call_operand.vmem [shape: f32[1,2048], index: 9, kind: input, shape index: {}]
  %s10 = inlined_call_operand.vmem [shape: f32[2048,32], index: 10, kind: input, shape index: {}]
  %s11 = inlined_call_operand.vmem [shape: f32[1,32], index: 11, kind: input, shape index: {}]
  %s12 = inlined_call_operand.vmem [shape: f32[1,32], index: 12, kind: input, shape index: {}]
  %s13 = inlined_call_operand.vmem [shape: f32[1,32], index: 13, kind: input, shape index: {}]
  %s14 = inlined_call_operand.vmem [shape: f32[64,32], index: 14, kind: output, shape index: {}]
  %s15 = sld [smem:[#allocation0]]
  $region66: #{transformer_net_forward.5} parent=0
    _
  %s17 = ssub.s32 1, %s15
  %s18 = scalar_select 0, %s17, %s15
  // Predicated region
  $region2: #{transformer_net_forward.5} parent=0 // pred_check
    _
  $region3: #{transformer_net_forward.5} parent=0 // pred_check_branch
    %20 = sbr.rel (0) target = $region5
  $region4: #{transformer_net_forward.5} parent=0 // pred_region
    _
  $region5: #{transformer_net_forward.5} parent=0 // pred_fallthru
    _
  // Predicated region
  $region6: #{transformer_net_forward.5} parent=0 // pred_check
    _
  $region7: #{transformer_net_forward.5} parent=0 // pred_check_branch
    %22 = sbr.rel (0) target = $region9
  $region8: #{transformer_net_forward.5} parent=0 // pred_region
    _
  $region9: #{transformer_net_forward.5} parent=0 // pred_fallthru
    _
  // Predicated region
  $region10: #{transformer_net_forward.5} parent=0 // pred_check
    _
  $region11: #{transformer_net_forward.5} parent=0 // pred_check_branch
    %24 = sbr.rel (0) target = $region13
  $region12: #{transformer_net_forward.5} parent=0 // pred_region
    _
  $region13: #{transformer_net_forward.5} parent=0 // pred_fallthru
    _
  // Predicated region
  $region14: #{transformer_net_forward.5} parent=0 // pred_check
    _
  $region15: #{transformer_net_forward.5} parent=0 // pred_check_branch
    %26 = sbr.rel (0) target = $region17
  $region16: #{transformer_net_forward.5} parent=0 // pred_region
    _
  $region17: #{transformer_net_forward.5} parent=0 // pred_fallthru
    _
  // Predicated region
  $region18: #{transformer_net_forward.5} parent=0 // pred_check
    _
  $region19: #{transformer_net_forward.5} parent=0 // pred_check_branch
    %28 = sbr.rel (0) target = $region21
  $region20: #{transformer_net_forward.5} parent=0 // pred_region
    _
  $region21: #{transformer_net_forward.5} parent=0 // pred_fallthru
    _
  // Predicated region
  $region22: #{transformer_net_forward.5} parent=0 // pred_check
    _
  $region23: #{transformer_net_forward.5} parent=0 // pred_check_branch
    %30 = sbr.rel (0) target = $region25
  $region24: #{transformer_net_forward.5} parent=0 // pred_region
    _
  $region25: #{transformer_net_forward.5} parent=0 // pred_fallthru
    _
  // Predicated region
  $region26: #{transformer_net_forward.5} parent=0 // pred_check
    _
  $region27: #{transformer_net_forward.5} parent=0 // pred_check_branch
    %32 = sbr.rel (0) target = $region29
  $region28: #{transformer_net_forward.5} parent=0 // pred_region
    _
  $region29: #{transformer_net_forward.5} parent=0 // pred_fallthru
    _
  // Predicated region
  $region30: #{transformer_net_forward.5} parent=0 // pred_check
    _
  $region31: #{transformer_net_forward.5} parent=0 // pred_check_branch
    %34 = sbr.rel (0) target = $region33
  $region32: #{transformer_net_forward.5} parent=0 // pred_region
    _
  $region33: #{transformer_net_forward.5} parent=0 // pred_fallthru
    _
  // Predicated region
  $region34: #{transformer_net_forward.5} parent=0 // pred_check
    _
  $region35: #{transformer_net_forward.5} parent=0 // pred_check_branch
    %36 = sbr.rel (0) target = $region37
  $region36: #{transformer_net_forward.5} parent=0 // pred_region
    _
  $region37: #{transformer_net_forward.5} parent=0 // pred_fallthru
    _
  // Predicated region
  $region38: #{transformer_net_forward.5} parent=0 // pred_check
    _
  $region39: #{transformer_net_forward.5} parent=0 // pred_check_branch
    %38 = sbr.rel (0) target = $region41
  $region40: #{transformer_net_forward.5} parent=0 // pred_region
    _
  $region41: #{transformer_net_forward.5} parent=0 // pred_fallthru
    _
  // Predicated region
  $region42: #{transformer_net_forward.5} parent=0 // pred_check
    _
  $region43: #{transformer_net_forward.5} parent=0 // pred_check_branch
    %40 = sbr.rel (0) target = $region45
  $region44: #{transformer_net_forward.5} parent=0 // pred_region
    _
  $region45: #{transformer_net_forward.5} parent=0 // pred_fallthru
    _
  // Predicated region
  $region46: #{transformer_net_forward.5} parent=0 // pred_check
    _
  $region47: #{transformer_net_forward.5} parent=0 // pred_check_branch
    %42 = sbr.rel (0) target = $region49
  $region48: #{transformer_net_forward.5} parent=0 // pred_region
    _
  $region49: #{transformer_net_forward.5} parent=0 // pred_fallthru
    _
  // Predicated region
  $region50: #{transformer_net_forward.5} parent=0 // pred_check
    _
  $region51: #{transformer_net_forward.5} parent=0 // pred_check_branch
    %44 = sbr.rel (0) target = $region53
  $region52: #{transformer_net_forward.5} parent=0 // pred_region
    _
  $region53: #{transformer_net_forward.5} parent=0 // pred_fallthru
    _
  // Predicated region
  $region54: #{transformer_net_forward.5} parent=0 // pred_check
    _
  $region55: #{transformer_net_forward.5} parent=0 // pred_check_branch
    %46 = sbr.rel (0) target = $region57
  $region56: #{transformer_net_forward.5} parent=0 // pred_region
    _
  $region57: #{transformer_net_forward.5} parent=0 // pred_fallthru
    _
  %v47 = vld [vmem:[%s0] sm:$0xff]
  %v48 = vld [vmem:[%s0 + $0x8] sm:$0xff]
  %v49 = vld [vmem:[%s0 + $0x10] sm:$0xff]
  %v50 = vld [vmem:[%s0 + $0x18] sm:$0xff]
  %v51 = vld [vmem:[%s0 + $0x20] sm:$0xff]
  %v52 = vld [vmem:[%s0 + $0x28] sm:$0xff]
  %v53 = vld [vmem:[%s0 + $0x30] sm:$0xff]
  %v54 = vld [vmem:[%s0 + $0x38] sm:$0xff]
  %v55 = vld [vmem:[%s1] sm:$0xff]
  %v56 = vld [vmem:[%s1 + $0x8] sm:$0xff]
  %v57 = vld [vmem:[%s1 + $0x10] sm:$0xff]
  %v58 = vld [vmem:[%s1 + $0x18] sm:$0xff]
  %v59 = vld [vmem:[%s1 + $0x20] sm:$0xff]
  %v60 = vld [vmem:[%s1 + $0x28] sm:$0xff]
  %v61 = vld [vmem:[%s1 + $0x30] sm:$0xff]
  %v62 = vld [vmem:[%s1 + $0x38] sm:$0xff]
  %v63 = vld [vmem:[%s2] sm:$0xff]
  %v64 = vld [vmem:[%s2 + $0x8] sm:$0xff]
  %v65 = vld [vmem:[%s2 + $0x10] sm:$0xff]
  %v66 = vld [vmem:[%s2 + $0x18] sm:$0xff]
  %v67 = vld [vmem:[%s3] sm:$0x1]
  %v69 = vlaneseq
  %v70 = vshrl.u32 %v69, 7
  %v71 = vsub.s32 0, %v70
  %v72 = vrot.slane %v67, %v71
  %vm74 = vcmask 261120
  %v76 = vsel %vm74, %v47, 0
  %v79 = vsel %vm74, %v48, 0
  %v82 = vsel %vm74, %v49, 0
  %v85 = vsel %vm74, %v50, 0
  %v88 = vsel %vm74, %v51, 0
  %v91 = vsel %vm74, %v52, 0
  %v94 = vsel %vm74, %v53, 0
  %v97 = vsel %vm74, %v54, 0
  %99 = vmatprep.subr.mxu0 0.0
  %100 = vmatpush1.msra.mxu0 %v63
  %101 = vmatprep.subr.mxu0 0.0
  %102 = vmatpush1.msra.mxu0 %v64
  %103 = vmatprep.subr.mxu0 0.0
  %104 = vmatpush1.msra.mxu0 %v65
  %105 = vmatprep.subr.mxu0 0.0
  %106 = vmatpush1.msra.mxu0 %v66
  %107 = vmatprep.subr.mxu0 0.0
  %108 = vmatpush1.msra.mxu0 0.0
  %109 = vmatprep.subr.mxu0 0.0
  %110 = vmatpush1.msra.mxu0 0.0
  %111 = vmatprep.subr.mxu0 0.0
  %112 = vmatpush1.msra.mxu0 0.0
  %113 = vmatprep.subr.mxu0 0.0
  %114 = vmatpush1.msra.mxu0 0.0
  %115 = vmatprep.subr.mxu0 0.0
  %116 = vmatpush1.msra.mxu0 0.0
  %117 = vmatprep.subr.mxu0 0.0
  %118 = vmatpush1.msra.mxu0 0.0
  %119 = vmatprep.subr.mxu0 0.0
  %120 = vmatpush1.msra.mxu0 0.0
  %121 = vmatprep.subr.mxu0 0.0
  %122 = vmatpush1.msra.mxu0 0.0
  %123 = vmatprep.subr.mxu0 0.0
  %124 = vmatpush1.msra.mxu0 0.0
  %125 = vmatprep.subr.mxu0 0.0
  %126 = vmatpush1.msra.mxu0 0.0
  %127 = vmatprep.subr.mxu0 0.0
  %128 = vmatpush1.msra.mxu0 0.0
  %129 = vmatprep.subr.mxu0 0.0
  %130 = vmatpush1.msra.mxu0 0.0
  %131 = vmatprep.subr.mxu0 0.0
  %132 = vmatpush1.msra.mxu0 0.0
  %133 = vmatprep.subr.mxu0 0.0
  %134 = vmatpush1.msra.mxu0 0.0
  %135 = vmatprep.subr.mxu0 0.0
  %136 = vmatpush1.msra.mxu0 0.0
  %137 = vmatprep.subr.mxu0 0.0
  %138 = vmatpush1.msra.mxu0 0.0
  %139 = vmatprep.subr.mxu0 0.0
  %140 = vmatpush1.msra.mxu0 0.0
  %141 = vmatprep.subr.mxu0 0.0
  %142 = vmatpush1.msra.mxu0 0.0
  %143 = vmatprep.subr.mxu0 0.0
  %144 = vmatpush1.msra.mxu0 0.0
  %145 = vmatprep.subr.mxu0 0.0
  %146 = vmatpush1.msra.mxu0 0.0
  %147 = vmatprep.subr.mxu0 0.0
  %148 = vmatpush1.msra.mxu0 0.0
  %149 = vmatprep.subr.mxu0 0.0
  %150 = vmatpush1.msra.mxu0 0.0
  %151 = vmatprep.subr.mxu0 0.0
  %152 = vmatpush1.msra.mxu0 0.0
  %153 = vmatprep.subr.mxu0 0.0
  %154 = vmatpush1.msra.mxu0 0.0
  %155 = vmatprep.subr.mxu0 0.0
  %156 = vmatpush1.msra.mxu0 0.0
  %157 = vmatprep.subr.mxu0 0.0
  %158 = vmatpush1.msra.mxu0 0.0
  %159 = vmatprep.subr.mxu0 0.0
  %160 = vmatpush1.msra.mxu0 0.0
  %161 = vmatprep.subr.mxu0 0.0
  %162 = vmatpush1.msra.mxu0 0.0
  %163 = vmatprep.mubr.f32.mxu0 0.0
  %164 = vmatmul.mubr.f32.gmra.mrb[0].mxu0 %v76
  %v165 = vpop.f32.mrb[0].mxu0
  %v166 = vadd.f32 %v72, %v165
  %v167 = vpop.f32.mrb[0].mxu0
  %168 = vmatprep.mubr.f32.mxu0 0.0
  %169 = vmatmul.mubr.f32.gmra.mrb[0].mxu0 %v79
  %v170 = vpop.f32.mrb[0].mxu0
  %v171 = vadd.f32 %v72, %v170
  %v172 = vpop.f32.mrb[0].mxu0
  %173 = vmatprep.mubr.f32.mxu0 0.0
  %174 = vmatmul.mubr.f32.gmra.mrb[0].mxu0 %v82
  %v175 = vpop.f32.mrb[0].mxu0
  %v176 = vadd.f32 %v72, %v175
  %v177 = vpop.f32.mrb[0].mxu0
  %178 = vmatprep.mubr.f32.mxu0 0.0
  %179 = vmatmul.mubr.f32.gmra.mrb[0].mxu0 %v85
  %v180 = vpop.f32.mrb[0].mxu0
  %v181 = vadd.f32 %v72, %v180
  %v182 = vpop.f32.mrb[0].mxu0
  %183 = vmatprep.mubr.f32.mxu0 0.0
  %184 = vmatmul.mubr.f32.gmra.mrb[0].mxu0 %v88
  %v185 = vpop.f32.mrb[0].mxu0
  %v186 = vadd.f32 %v72, %v185
  %v187 = vpop.f32.mrb[0].mxu0
  %188 = vmatprep.mubr.f32.mxu0 0.0
  %189 = vmatmul.mubr.f32.gmra.mrb[0].mxu0 %v91
  %v190 = vpop.f32.mrb[0].mxu0
  %v191 = vadd.f32 %v72, %v190
  %v192 = vpop.f32.mrb[0].mxu0
  %193 = vmatprep.mubr.f32.mxu0 0.0
  %194 = vmatmul.mubr.f32.gmra.mrb[0].mxu0 %v94
  %v195 = vpop.f32.mrb[0].mxu0
  %v196 = vadd.f32 %v72, %v195
  %v197 = vpop.f32.mrb[0].mxu0
  %198 = vmatprep.mubr.f32.mxu0 0.0
  %199 = vmatmul.mubr.f32.gmra.mrb[0].mxu0 %v97
  %v200 = vpop.f32.mrb[0].mxu0
  %v201 = vadd.f32 %v72, %v200
  %v202 = vpop.f32.mrb[0].mxu0
  %203 = vdwg.mxu0
  %v204 = vld [vmem:[%s5] sm:$0x1]
  %213 = vrot.lane.b32.xlu0 %v166, 96
  %v214 = vpop.permute.xlu0 %213
  %215 = vrot.lane.b32.xlu0 %v171, 96
  %v216 = vpop.permute.xlu0 %215
  %217 = vrot.lane.b32.xlu0 %v176, 96
  %v218 = vpop.permute.xlu0 %217
  %219 = vrot.lane.b32.xlu0 %v181, 96
  %v220 = vpop.permute.xlu0 %219
  %221 = vrot.lane.b32.xlu0 %v186, 96
  %v222 = vpop.permute.xlu0 %221
  %223 = vrot.lane.b32.xlu0 %v191, 96
  %v224 = vpop.permute.xlu0 %223
  %225 = vrot.lane.b32.xlu0 %v196, 96
  %v226 = vpop.permute.xlu0 %225
  %227 = vrot.lane.b32.xlu0 %v201, 96
  %v228 = vpop.permute.xlu0 %227
  %vm229 = vcmask 130048
  %v230 = vsel %vm229, %v166, 0
  %v232 = vsel %vm229, %v171, 0
  %v234 = vsel %vm229, %v176, 0
  %v236 = vsel %vm229, %v181, 0
  %v238 = vsel %vm229, %v186, 0
  %v240 = vsel %vm229, %v191, 0
  %v242 = vsel %vm229, %v196, 0
  %v244 = vsel %vm229, %v201, 0
  %v246 = vsel %vm229, %v214, 0
  %v248 = vsel %vm229, %v216, 0
  %v250 = vsel %vm229, %v218, 0
  %v252 = vsel %vm229, %v220, 0
  %v254 = vsel %vm229, %v222, 0
  %v256 = vsel %vm229, %v224, 0
  %v258 = vsel %vm229, %v226, 0
  %v260 = vsel %vm229, %v228, 0
  %262 = vmatprep.subr.mxu0 0.0
  %263 = vmatpush1.xpose.msra.mxu0 %v246
  %264 = vmatprep.subr.mxu0 0.0
  %265 = vmatpush1.xpose.msra.mxu0 %v248
  %266 = vmatprep.subr.mxu0 0.0
  %267 = vmatpush1.xpose.msra.mxu0 %v250
  %268 = vmatprep.subr.mxu0 0.0
  %269 = vmatpush1.xpose.msra.mxu0 %v252
  %270 = vmatprep.subr.mxu0 0.0
  %271 = vmatpush1.xpose.msra.mxu0 %v254
  %272 = vmatprep.subr.mxu0 0.0
  %273 = vmatpush1.xpose.msra.mxu0 %v256
  %274 = vmatprep.subr.mxu0 0.0
  %275 = vmatpush1.xpose.msra.mxu0 %v258
  %276 = vmatprep.subr.mxu0 0.0
  %277 = vmatpush1.xpose.msra.mxu0 %v260
  %278 = vmatprep.subr.mxu0 0.0
  %279 = vmatpush1.xpose.msra.mxu0 0.0
  %280 = vmatprep.subr.mxu0 0.0
  %281 = vmatpush1.xpose.msra.mxu0 0.0
  %282 = vmatprep.subr.mxu0 0.0
  %283 = vmatpush1.xpose.msra.mxu0 0.0
  %284 = vmatprep.subr.mxu0 0.0
  %285 = vmatpush1.xpose.msra.mxu0 0.0
  %286 = vmatprep.subr.mxu0 0.0
  %287 = vmatpush1.xpose.msra.mxu0 0.0
  %288 = vmatprep.subr.mxu0 0.0
  %289 = vmatpush1.xpose.msra.mxu0 0.0
  %290 = vmatprep.subr.mxu0 0.0
  %291 = vmatpush1.xpose.msra.mxu0 0.0
  %292 = vmatprep.subr.mxu0 0.0
  %293 = vmatpush1.xpose.msra.mxu0 0.0
  %294 = vmatprep.subr.mxu0 0.0
  %295 = vmatpush1.xpose.msra.mxu0 0.0
  %296 = vmatprep.subr.mxu0 0.0
  %297 = vmatpush1.xpose.msra.mxu0 0.0
  %298 = vmatprep.subr.mxu0 0.0
  %299 = vmatpush1.xpose.msra.mxu0 0.0
  %300 = vmatprep.subr.mxu0 0.0
  %301 = vmatpush1.xpose.msra.mxu0 0.0
  %302 = vmatprep.subr.mxu0 0.0
  %303 = vmatpush1.xpose.msra.mxu0 0.0
  %304 = vmatprep.subr.mxu0 0.0
  %305 = vmatpush1.xpose.msra.mxu0 0.0
  %306 = vmatprep.subr.mxu0 0.0
  %307 = vmatpush1.xpose.msra.mxu0 0.0
  %308 = vmatprep.subr.mxu0 0.0
  %309 = vmatpush1.xpose.msra.mxu0 0.0
  %310 = vmatprep.subr.mxu0 0.0
  %311 = vmatpush1.xpose.msra.mxu0 0.0
  %312 = vmatprep.subr.mxu0 0.0
  %313 = vmatpush1.xpose.msra.mxu0 0.0
  %314 = vmatprep.subr.mxu0 0.0
  %315 = vmatpush1.xpose.msra.mxu0 0.0
  %316 = vmatprep.subr.mxu0 0.0
  %317 = vmatpush1.xpose.msra.mxu0 0.0
  %318 = vmatprep.subr.mxu0 0.0
  %319 = vmatpush1.xpose.msra.mxu0 0.0
  %320 = vmatprep.subr.mxu0 0.0
  %321 = vmatpush1.xpose.msra.mxu0 0.0
  %322 = vmatprep.subr.mxu0 0.0
  %323 = vmatpush1.xpose.msra.mxu0 0.0
  %324 = vmatprep.subr.mxu0 0.0
  %325 = vmatpush1.xpose.msra.mxu0 0.0
  %326 = vmatprep.mubr.f32.mxu0 0.0
  %327 = vmatmul.mubr.f32.gmra.mrb[0].mxu0 %v230
  %v328 = vpop.f32.mrb[0].mxu0
  %v329 = vadd.f32 0.0, %v328
  %v330 = vpop.f32.mrb[0].mxu0
  %331 = vmatprep.mubr.f32.mxu0 0.0
  %332 = vmatmul.mubr.f32.gmra.mrb[0].mxu0 %v232
  %v333 = vpop.f32.mrb[0].mxu0
  %v334 = vadd.f32 0.0, %v333
  %v335 = vpop.f32.mrb[0].mxu0
  %336 = vmatprep.mubr.f32.mxu0 0.0
  %337 = vmatmul.mubr.f32.gmra.mrb[0].mxu0 %v234
  %v338 = vpop.f32.mrb[0].mxu0
  %v339 = vadd.f32 0.0, %v338
  %v340 = vpop.f32.mrb[0].mxu0
  %341 = vmatprep.mubr.f32.mxu0 0.0
  %342 = vmatmul.mubr.f32.gmra.mrb[0].mxu0 %v236
  %v343 = vpop.f32.mrb[0].mxu0
  %v344 = vadd.f32 0.0, %v343
  %v345 = vpop.f32.mrb[0].mxu0
  %346 = vmatprep.mubr.f32.mxu0 0.0
  %347 = vmatmul.mubr.f32.gmra.mrb[0].mxu0 %v238
  %v348 = vpop.f32.mrb[0].mxu0
  %v349 = vadd.f32 0.0, %v348
  %v350 = vpop.f32.mrb[0].mxu0
  %351 = vmatprep.mubr.f32.mxu0 0.0
  %352 = vmatmul.mubr.f32.gmra.mrb[0].mxu0 %v240
  %v353 = vpop.f32.mrb[0].mxu0
  %v354 = vadd.f32 0.0, %v353
  %v355 = vpop.f32.mrb[0].mxu0
  %356 = vmatprep.mubr.f32.mxu0 0.0
  %357 = vmatmul.mubr.f32.gmra.mrb[0].mxu0 %v242
  %v358 = vpop.f32.mrb[0].mxu0
  %v359 = vadd.f32 0.0, %v358
  %v360 = vpop.f32.mrb[0].mxu0
  %361 = vmatprep.mubr.f32.mxu0 0.0
  %362 = vmatmul.mubr.f32.gmra.mrb[0].mxu0 %v244
  %v363 = vpop.f32.mrb[0].mxu0
  %v364 = vadd.f32 0.0, %v363
  %v365 = vpop.f32.mrb[0].mxu0
  %366 = vdwg.mxu0
  %v367 = vmul.f32 %v329, 0.25
  %v368 = vmul.f32 %v334, 0.25
  %v369 = vmul.f32 %v339, 0.25
  %v370 = vmul.f32 %v344, 0.25
  %v371 = vmul.f32 %v349, 0.25
  %v372 = vmul.f32 %v354, 0.25
  %v373 = vmul.f32 %v359, 0.25
  %v374 = vmul.f32 %v364, 0.25
  %v375 = vadd.f32 %v367, %v55
  %v376 = vadd.f32 %v368, %v56
  %v377 = vadd.f32 %v369, %v57
  %v378 = vadd.f32 %v370, %v58
  %v379 = vadd.f32 %v371, %v59
  %v380 = vadd.f32 %v372, %v60
  %v381 = vadd.f32 %v373, %v61
  %v382 = vadd.f32 %v374, %v62
  %vm383 = vcmask 523264
  %v384 = vsel %vm383, %v375, -inf
  %385 = vmax.xlane.f32.xlu0 %v384
  %v386 = vpop.xlane.xlu0 %385
  %v387 = vsel %vm383, %v376, -inf
  %388 = vmax.xlane.f32.xlu0 %v387
  %v389 = vpop.xlane.xlu0 %388
  %v390 = vsel %vm383, %v377, -inf
  %391 = vmax.xlane.f32.xlu0 %v390
  %v392 = vpop.xlane.xlu0 %391
  %v393 = vsel %vm383, %v378, -inf
  %394 = vmax.xlane.f32.xlu0 %v393
  %v395 = vpop.xlane.xlu0 %394
  %v396 = vsel %vm383, %v379, -inf
  %397 = vmax.xlane.f32.xlu0 %v396
  %v398 = vpop.xlane.xlu0 %397
  %v399 = vsel %vm383, %v380, -inf
  %400 = vmax.xlane.f32.xlu0 %v399
  %v401 = vpop.xlane.xlu0 %400
  %v402 = vsel %vm383, %v381, -inf
  %403 = vmax.xlane.f32.xlu0 %v402
  %v404 = vpop.xlane.xlu0 %403
  %v405 = vsel %vm383, %v382, -inf
  %406 = vmax.xlane.f32.xlu0 %v405
  %v407 = vpop.xlane.xlu0 %406
  %v408 = vsub.f32 %v375, %v386
  %v409 = vsub.f32 %v376, %v389
  %v410 = vsub.f32 %v377, %v392
  %v411 = vsub.f32 %v378, %v395
  %v412 = vsub.f32 %v379, %v398
  %v413 = vsub.f32 %v380, %v401
  %v414 = vsub.f32 %v381, %v404
  %v415 = vsub.f32 %v382, %v407
  %v416 = vmul.f32 %v408, 1.442695
  %v417 = vpow.pop %v416
  %v418 = vmul.f32 %v409, 1.442695
  %v419 = vpow.pop %v418
  %v420 = vmul.f32 %v410, 1.442695
  %v421 = vpow.pop %v420
  %v422 = vmul.f32 %v411, 1.442695
  %v423 = vpow.pop %v422
  %v424 = vmul.f32 %v412, 1.442695
  %v425 = vpow.pop %v424
  %v426 = vmul.f32 %v413, 1.442695
  %v427 = vpow.pop %v426
  %v428 = vmul.f32 %v414, 1.442695
  %v429 = vpow.pop %v428
  %v430 = vmul.f32 %v415, 1.442695
  %v431 = vpow.pop %v430
  %v432 = vsel %vm383, %v417, 0.0
  %433 = vadd.xlane.f32.xlu0 %v432
  %v434 = vpop.xlane.xlu0 %433
  %v435 = vsel %vm383, %v419, 0.0
  %436 = vadd.xlane.f32.xlu0 %v435
  %v437 = vpop.xlane.xlu0 %436
  %v438 = vsel %vm383, %v421, 0.0
  %439 = vadd.xlane.f32.xlu0 %v438
  %v440 = vpop.xlane.xlu0 %439
  %v441 = vsel %vm383, %v423, 0.0
  %442 = vadd.xlane.f32.xlu0 %v441
  %v443 = vpop.xlane.xlu0 %442
  %v444 = vsel %vm383, %v425, 0.0
  %445 = vadd.xlane.f32.xlu0 %v444
  %v446 = vpop.xlane.xlu0 %445
  %v447 = vsel %vm383, %v427, 0.0
  %448 = vadd.xlane.f32.xlu0 %v447
  %v449 = vpop.xlane.xlu0 %448
  %v450 = vsel %vm383, %v429, 0.0
  %451 = vadd.xlane.f32.xlu0 %v450
  %v452 = vpop.xlane.xlu0 %451
  %v453 = vsel %vm383, %v431, 0.0
  %454 = vadd.xlane.f32.xlu0 %v453
  %v455 = vpop.xlane.xlu0 %454
  %v456 = vrcp.pop %v434
  %v457 = vrcp.pop %v437
  %v458 = vrcp.pop %v440
  %v459 = vrcp.pop %v443
  %v460 = vrcp.pop %v446
  %v461 = vrcp.pop %v449
  %v462 = vrcp.pop %v452
  %v463 = vrcp.pop %v455
  %v464 = vmul.f32 %v417, %v456
  %v465 = vmul.f32 %v419, %v457
  %v466 = vmul.f32 %v421, %v458
  %v467 = vmul.f32 %v423, %v459
  %v468 = vmul.f32 %v425, %v460
  %v469 = vmul.f32 %v427, %v461
  %v470 = vmul.f32 %v429, %v462
  %v471 = vmul.f32 %v431, %v463
  %472 = vrot.lane.b32.xlu0 %v166, 64
  %v473 = vpop.permute.xlu0 %472
  %474 = vrot.lane.b32.xlu0 %v171, 64
  %v475 = vpop.permute.xlu0 %474
  %476 = vrot.lane.b32.xlu0 %v176, 64
  %v477 = vpop.permute.xlu0 %476
  %478 = vrot.lane.b32.xlu0 %v181, 64
  %v479 = vpop.permute.xlu0 %478
  %480 = vrot.lane.b32.xlu0 %v186, 64
  %v481 = vpop.permute.xlu0 %480
  %482 = vrot.lane.b32.xlu0 %v191, 64
  %v483 = vpop.permute.xlu0 %482
  %484 = vrot.lane.b32.xlu0 %v196, 64
  %v485 = vpop.permute.xlu0 %484
  %486 = vrot.lane.b32.xlu0 %v201, 64
  %v487 = vpop.permute.xlu0 %486
  %v497 = vsel %vm383, %v464, 0
  %v500 = vsel %vm383, %v465, 0
  %v503 = vsel %vm383, %v466, 0
  %v506 = vsel %vm383, %v467, 0
  %v509 = vsel %vm383, %v468, 0
  %v512 = vsel %vm383, %v469, 0
  %v515 = vsel %vm383, %v470, 0
  %v518 = vsel %vm383, %v471, 0
  %520 = vmatprep.subr.mxu0 0.0
  %521 = vmatpush1.msra.mxu0 %v473
  %522 = vmatprep.subr.mxu0 0.0
  %523 = vmatpush1.msra.mxu0 %v475
  %524 = vmatprep.subr.mxu0 0.0
  %525 = vmatpush1.msra.mxu0 %v477
  %526 = vmatprep.subr.mxu0 0.0
  %527 = vmatpush1.msra.mxu0 %v479
  %528 = vmatprep.subr.mxu0 0.0
  %529 = vmatpush1.msra.mxu0 %v481
  %530 = vmatprep.subr.mxu0 0.0
  %531 = vmatpush1.msra.mxu0 %v483
  %532 = vmatprep.subr.mxu0 0.0
  %533 = vmatpush1.msra.mxu0 %v485
  %534 = vmatprep.subr.mxu0 0.0
  %535 = vmatpush1.msra.mxu0 %v487
  %536 = vmatprep.subr.mxu0 0.0
  %537 = vmatpush1.msra.mxu0 0.0
  %538 = vmatprep.subr.mxu0 0.0
  %539 = vmatpush1.msra.mxu0 0.0
  %540 = vmatprep.subr.mxu0 0.0
  %541 = vmatpush1.msra.mxu0 0.0
  %542 = vmatprep.subr.mxu0 0.0
  %543 = vmatpush1.msra.mxu0 0.0
  %544 = vmatprep.subr.mxu0 0.0
  %545 = vmatpush1.msra.mxu0 0.0
  %546 = vmatprep.subr.mxu0 0.0
  %547 = vmatpush1.msra.mxu0 0.0
  %548 = vmatprep.subr.mxu0 0.0
  %549 = vmatpush1.msra.mxu0 0.0
  %550 = vmatprep.subr.mxu0 0.0
  %551 = vmatpush1.msra.mxu0 0.0
  %552 = vmatprep.subr.mxu0 0.0
  %553 = vmatpush1.msra.mxu0 0.0
  %554 = vmatprep.subr.mxu0 0.0
  %555 = vmatpush1.msra.mxu0 0.0
  %556 = vmatprep.subr.mxu0 0.0
  %557 = vmatpush1.msra.mxu0 0.0
  %558 = vmatprep.subr.mxu0 0.0
  %559 = vmatpush1.msra.mxu0 0.0
  %560 = vmatprep.subr.mxu0 0.0
  %561 = vmatpush1.msra.mxu0 0.0
  %562 = vmatprep.subr.mxu0 0.0
  %563 = vmatpush1.msra.mxu0 0.0
  %564 = vmatprep.subr.mxu0 0.0
  %565 = vmatpush1.msra.mxu0 0.0
  %566 = vmatprep.subr.mxu0 0.0
  %567 = vmatpush1.msra.mxu0 0.0
  %568 = vmatprep.subr.mxu0 0.0
  %569 = vmatpush1.msra.mxu0 0.0
  %570 = vmatprep.subr.mxu0 0.0
  %571 = vmatpush1.msra.mxu0 0.0
  %572 = vmatprep.subr.mxu0 0.0
  %573 = vmatpush1.msra.mxu0 0.0
  %574 = vmatprep.subr.mxu0 0.0
  %575 = vmatpush1.msra.mxu0 0.0
  %576 = vmatprep.subr.mxu0 0.0
  %577 = vmatpush1.msra.mxu0 0.0
  %578 = vmatprep.subr.mxu0 0.0
  %579 = vmatpush1.msra.mxu0 0.0
  %580 = vmatprep.subr.mxu0 0.0
  %581 = vmatpush1.msra.mxu0 0.0
  %582 = vmatprep.subr.mxu0 0.0
  %583 = vmatpush1.msra.mxu0 0.0
  %584 = vmatprep.mubr.f32.mxu0 0.0
  %585 = vmatmul.mubr.f32.gmra.mrb[0].mxu0 %v497
  %v586 = vpop.f32.mrb[0].mxu0
  %v587 = vadd.f32 0.0, %v586
  %v588 = vpop.f32.mrb[0].mxu0
  %589 = vmatprep.mubr.f32.mxu0 0.0
  %590 = vmatmul.mubr.f32.gmra.mrb[0].mxu0 %v500
  %v591 = vpop.f32.mrb[0].mxu0
  %v592 = vadd.f32 0.0, %v591
  %v593 = vpop.f32.mrb[0].mxu0
  %594 = vmatprep.mubr.f32.mxu0 0.0
  %595 = vmatmul.mubr.f32.gmra.mrb[0].mxu0 %v503
  %v596 = vpop.f32.mrb[0].mxu0
  %v597 = vadd.f32 0.0, %v596
  %v598 = vpop.f32.mrb[0].mxu0
  %599 = vmatprep.mubr.f32.mxu0 0.0
  %600 = vmatmul.mubr.f32.gmra.mrb[0].mxu0 %v506
  %v601 = vpop.f32.mrb[0].mxu0
  %v602 = vadd.f32 0.0, %v601
  %v603 = vpop.f32.mrb[0].mxu0
  %604 = vmatprep.mubr.f32.mxu0 0.0
  %605 = vmatmul.mubr.f32.gmra.mrb[0].mxu0 %v509
  %v606 = vpop.f32.mrb[0].mxu0
  %v607 = vadd.f32 0.0, %v606
  %v608 = vpop.f32.mrb[0].mxu0
  %609 = vmatprep.mubr.f32.mxu0 0.0
  %610 = vmatmul.mubr.f32.gmra.mrb[0].mxu0 %v512
  %v611 = vpop.f32.mrb[0].mxu0
  %v612 = vadd.f32 0.0, %v611
  %v613 = vpop.f32.mrb[0].mxu0
  %614 = vmatprep.mubr.f32.mxu0 0.0
  %615 = vmatmul.mubr.f32.gmra.mrb[0].mxu0 %v515
  %v616 = vpop.f32.mrb[0].mxu0
  %v617 = vadd.f32 0.0, %v616
  %v618 = vpop.f32.mrb[0].mxu0
  %619 = vmatprep.mubr.f32.mxu0 0.0
  %620 = vmatmul.mubr.f32.gmra.mrb[0].mxu0 %v518
  %v621 = vpop.f32.mrb[0].mxu0
  %v622 = vadd.f32 0.0, %v621
  %v623 = vpop.f32.mrb[0].mxu0
  %624 = vdwg.mxu0
  %v625 = vld [vmem:[%s4] sm:$0xff]
  %v626 = vld [vmem:[%s4 + $0x8] sm:$0xff]
  %v628 = vsel %vm229, %v587, 0
  %v631 = vsel %vm229, %v592, 0
  %v634 = vsel %vm229, %v597, 0
  %v637 = vsel %vm229, %v602, 0
  %v640 = vsel %vm229, %v607, 0
  %v643 = vsel %vm229, %v612, 0
  %v646 = vsel %vm229, %v617, 0
  %v649 = vsel %vm229, %v622, 0
  %651 = vmatprep.subr.mxu0 0.0
  %652 = vmatpush1.msra.mxu0 %v625
  %653 = vmatprep.subr.mxu0 0.0
  %654 = vmatpush1.msra.mxu0 %v626
  %655 = vmatprep.subr.mxu0 0.0
  %656 = vmatpush1.msra.mxu0 0.0
  %657 = vmatprep.subr.mxu0 0.0
  %658 = vmatpush1.msra.mxu0 0.0
  %659 = vmatprep.subr.mxu0 0.0
  %660 = vmatpush1.msra.mxu0 0.0
  %661 = vmatprep.subr.mxu0 0.0
  %662 = vmatpush1.msra.mxu0 0.0
  %663 = vmatprep.subr.mxu0 0.0
  %664 = vmatpush1.msra.mxu0 0.0
  %665 = vmatprep.subr.mxu0 0.0
  %666 = vmatpush1.msra.mxu0 0.0
  %667 = vmatprep.subr.mxu0 0.0
  %668 = vmatpush1.msra.mxu0 0.0
  %669 = vmatprep.subr.mxu0 0.0
  %670 = vmatpush1.msra.mxu0 0.0
  %671 = vmatprep.subr.mxu0 0.0
  %672 = vmatpush1.msra.mxu0 0.0
  %673 = vmatprep.subr.mxu0 0.0
  %674 = vmatpush1.msra.mxu0 0.0
  %675 = vmatprep.subr.mxu0 0.0
  %676 = vmatpush1.msra.mxu0 0.0
  %677 = vmatprep.subr.mxu0 0.0
  %678 = vmatpush1.msra.mxu0 0.0
  %679 = vmatprep.subr.mxu0 0.0
  %680 = vmatpush1.msra.mxu0 0.0
  %681 = vmatprep.subr.mxu0 0.0
  %682 = vmatpush1.msra.mxu0 0.0
  %683 = vmatprep.subr.mxu0 0.0
  %684 = vmatpush1.msra.mxu0 0.0
  %685 = vmatprep.subr.mxu0 0.0
  %686 = vmatpush1.msra.mxu0 0.0
  %687 = vmatprep.subr.mxu0 0.0
  %688 = vmatpush1.msra.mxu0 0.0
  %689 = vmatprep.subr.mxu0 0.0
  %690 = vmatpush1.msra.mxu0 0.0
  %691 = vmatprep.subr.mxu0 0.0
  %692 = vmatpush1.msra.mxu0 0.0
  %693 = vmatprep.subr.mxu0 0.0
  %694 = vmatpush1.msra.mxu0 0.0
  %695 = vmatprep.subr.mxu0 0.0
  %696 = vmatpush1.msra.mxu0 0.0
  %697 = vmatprep.subr.mxu0 0.0
  %698 = vmatpush1.msra.mxu0 0.0
  %699 = vmatprep.subr.mxu0 0.0
  %700 = vmatpush1.msra.mxu0 0.0
  %701 = vmatprep.subr.mxu0 0.0
  %702 = vmatpush1.msra.mxu0 0.0
  %703 = vmatprep.subr.mxu0 0.0
  %704 = vmatpush1.msra.mxu0 0.0
  %705 = vmatprep.subr.mxu0 0.0
  %706 = vmatpush1.msra.mxu0 0.0
  %707 = vmatprep.subr.mxu0 0.0
  %708 = vmatpush1.msra.mxu0 0.0
  %709 = vmatprep.subr.mxu0 0.0
  %710 = vmatpush1.msra.mxu0 0.0
  %711 = vmatprep.subr.mxu0 0.0
  %712 = vmatpush1.msra.mxu0 0.0
  %713 = vmatprep.subr.mxu0 0.0
  %714 = vmatpush1.msra.mxu0 0.0
  %715 = vmatprep.mubr.f32.mxu0 0.0
  %716 = vmatmul.mubr.f32.gmra.mrb[0].mxu0 %v628
  %v717 = vpop.f32.mrb[0].mxu0
  %v718 = vadd.f32 0.0, %v717
  %v719 = vpop.f32.mrb[0].mxu0
  %720 = vmatprep.mubr.f32.mxu0 0.0
  %721 = vmatmul.mubr.f32.gmra.mrb[0].mxu0 %v631
  %v722 = vpop.f32.mrb[0].mxu0
  %v723 = vadd.f32 0.0, %v722
  %v724 = vpop.f32.mrb[0].mxu0
  %725 = vmatprep.mubr.f32.mxu0 0.0
  %726 = vmatmul.mubr.f32.gmra.mrb[0].mxu0 %v634
  %v727 = vpop.f32.mrb[0].mxu0
  %v728 = vadd.f32 0.0, %v727
  %v729 = vpop.f32.mrb[0].mxu0
  %730 = vmatprep.mubr.f32.mxu0 0.0
  %731 = vmatmul.mubr.f32.gmra.mrb[0].mxu0 %v637
  %v732 = vpop.f32.mrb[0].mxu0
  %v733 = vadd.f32 0.0, %v732
  %v734 = vpop.f32.mrb[0].mxu0
  %735 = vmatprep.mubr.f32.mxu0 0.0
  %736 = vmatmul.mubr.f32.gmra.mrb[0].mxu0 %v640
  %v737 = vpop.f32.mrb[0].mxu0
  %v738 = vadd.f32 0.0, %v737
  %v739 = vpop.f32.mrb[0].mxu0
  %740 = vmatprep.mubr.f32.mxu0 0.0
  %741 = vmatmul.mubr.f32.gmra.mrb[0].mxu0 %v643
  %v742 = vpop.f32.mrb[0].mxu0
  %v743 = vadd.f32 0.0, %v742
  %v744 = vpop.f32.mrb[0].mxu0
  %745 = vmatprep.mubr.f32.mxu0 0.0
  %746 = vmatmul.mubr.f32.gmra.mrb[0].mxu0 %v646
  %v747 = vpop.f32.mrb[0].mxu0
  %v748 = vadd.f32 0.0, %v747
  %v749 = vpop.f32.mrb[0].mxu0
  %750 = vmatprep.mubr.f32.mxu0 0.0
  %751 = vmatmul.mubr.f32.gmra.mrb[0].mxu0 %v649
  %v752 = vpop.f32.mrb[0].mxu0
  %v753 = vadd.f32 0.0, %v752
  %v754 = vpop.f32.mrb[0].mxu0
  %755 = vdwg.mxu0
  %v757 = vlaneseq
  %v758 = vshrl.u32 %v757, 7
  %v759 = vsub.s32 0, %v758
  %v760 = vrot.slane %v204, %v759
  %v762 = vadd.f32 %v760, %v718
  %v763 = vadd.f32 %v760, %v723
  %v764 = vadd.f32 %v760, %v728
  %v765 = vadd.f32 %v760, %v733
  %v766 = vadd.f32 %v760, %v738
  %v767 = vadd.f32 %v760, %v743
  %v768 = vadd.f32 %v760, %v748
  %v769 = vadd.f32 %v760, %v753
  %770 = vrot.lane.b32.xlu0 %v166, 112
  %v771 = vpop.permute.xlu0 %770
  %772 = vrot.lane.b32.xlu0 %v171, 112
  %v773 = vpop.permute.xlu0 %772
  %774 = vrot.lane.b32.xlu0 %v176, 112
  %v775 = vpop.permute.xlu0 %774
  %776 = vrot.lane.b32.xlu0 %v181, 112
  %v777 = vpop.permute.xlu0 %776
  %778 = vrot.lane.b32.xlu0 %v186, 112
  %v779 = vpop.permute.xlu0 %778
  %780 = vrot.lane.b32.xlu0 %v191, 112
  %v781 = vpop.permute.xlu0 %780
  %782 = vrot.lane.b32.xlu0 %v196, 112
  %v783 = vpop.permute.xlu0 %782
  %784 = vrot.lane.b32.xlu0 %v201, 112
  %v785 = vpop.permute.xlu0 %784
  %786 = vrot.lane.b32.xlu0 %v166, 80
  %v787 = vpop.permute.xlu0 %786
  %788 = vrot.lane.b32.xlu0 %v171, 80
  %v789 = vpop.permute.xlu0 %788
  %790 = vrot.lane.b32.xlu0 %v176, 80
  %v791 = vpop.permute.xlu0 %790
  %792 = vrot.lane.b32.xlu0 %v181, 80
  %v793 = vpop.permute.xlu0 %792
  %794 = vrot.lane.b32.xlu0 %v186, 80
  %v795 = vpop.permute.xlu0 %794
  %796 = vrot.lane.b32.xlu0 %v191, 80
  %v797 = vpop.permute.xlu0 %796
  %798 = vrot.lane.b32.xlu0 %v196, 80
  %v799 = vpop.permute.xlu0 %798
  %800 = vrot.lane.b32.xlu0 %v201, 80
  %v801 = vpop.permute.xlu0 %800
  %v802 = vsel %vm229, %v771, 0
  %v804 = vsel %vm229, %v773, 0
  %v806 = vsel %vm229, %v775, 0
  %v808 = vsel %vm229, %v777, 0
  %v810 = vsel %vm229, %v779, 0
  %v812 = vsel %vm229, %v781, 0
  %v814 = vsel %vm229, %v783, 0
  %v816 = vsel %vm229, %v785, 0
  %v818 = vsel %vm229, %v787, 0
  %v820 = vsel %vm229, %v789, 0
  %v822 = vsel %vm229, %v791, 0
  %v824 = vsel %vm229, %v793, 0
  %v826 = vsel %vm229, %v795, 0
  %v828 = vsel %vm229, %v797, 0
  %v830 = vsel %vm229, %v799, 0
  %v832 = vsel %vm229, %v801, 0
  %834 = vmatprep.subr.mxu0 0.0
  %835 = vmatpush1.xpose.msra.mxu0 %v818
  %836 = vmatprep.subr.mxu0 0.0
  %837 = vmatpush1.xpose.msra.mxu0 %v820
  %838 = vmatprep.subr.mxu0 0.0
  %839 = vmatpush1.xpose.msra.mxu0 %v822
  %840 = vmatprep.subr.mxu0 0.0
  %841 = vmatpush1.xpose.msra.mxu0 %v824
  %842 = vmatprep.subr.mxu0 0.0
  %843 = vmatpush1.xpose.msra.mxu0 %v826
  %844 = vmatprep.subr.mxu0 0.0
  %845 = vmatpush1.xpose.msra.mxu0 %v828
  %846 = vmatprep.subr.mxu0 0.0
  %847 = vmatpush1.xpose.msra.mxu0 %v830
  %848 = vmatprep.subr.mxu0 0.0
  %849 = vmatpush1.xpose.msra.mxu0 %v832
  %850 = vmatprep.subr.mxu0 0.0
  %851 = vmatpush1.xpose.msra.mxu0 0.0
  %852 = vmatprep.subr.mxu0 0.0
  %853 = vmatpush1.xpose.msra.mxu0 0.0
  %854 = vmatprep.subr.mxu0 0.0
  %855 = vmatpush1.xpose.msra.mxu0 0.0
  %856 = vmatprep.subr.mxu0 0.0
  %857 = vmatpush1.xpose.msra.mxu0 0.0
  %858 = vmatprep.subr.mxu0 0.0
  %859 = vmatpush1.xpose.msra.mxu0 0.0
  %860 = vmatprep.subr.mxu0 0.0
  %861 = vmatpush1.xpose.msra.mxu0 0.0
  %862 = vmatprep.subr.mxu0 0.0
  %863 = vmatpush1.xpose.msra.mxu0 0.0
  %864 = vmatprep.subr.mxu0 0.0
  %865 = vmatpush1.xpose.msra.mxu0 0.0
  %866 = vmatprep.subr.mxu0 0.0
  %867 = vmatpush1.xpose.msra.mxu0 0.0
  %868 = vmatprep.subr.mxu0 0.0
  %869 = vmatpush1.xpose.msra.mxu0 0.0
  %870 = vmatprep.subr.mxu0 0.0
  %871 = vmatpush1.xpose.msra.mxu0 0.0
  %872 = vmatprep.subr.mxu0 0.0
  %873 = vmatpush1.xpose.msra.mxu0 0.0
  %874 = vmatprep.subr.mxu0 0.0
  %875 = vmatpush1.xpose.msra.mxu0 0.0
  %876 = vmatprep.subr.mxu0 0.0
  %877 = vmatpush1.xpose.msra.mxu0 0.0
  %878 = vmatprep.subr.mxu0 0.0
  %879 = vmatpush1.xpose.msra.mxu0 0.0
  %880 = vmatprep.subr.mxu0 0.0
  %881 = vmatpush1.xpose.msra.mxu0 0.0
  %882 = vmatprep.subr.mxu0 0.0
  %883 = vmatpush1.xpose.msra.mxu0 0.0
  %884 = vmatprep.subr.mxu0 0.0
  %885 = vmatpush1.xpose.msra.mxu0 0.0
  %886 = vmatprep.subr.mxu0 0.0
  %887 = vmatpush1.xpose.msra.mxu0 0.0
  %888 = vmatprep.subr.mxu0 0.0
  %889 = vmatpush1.xpose.msra.mxu0 0.0
  %890 = vmatprep.subr.mxu0 0.0
  %891 = vmatpush1.xpose.msra.mxu0 0.0
  %892 = vmatprep.subr.mxu0 0.0
  %893 = vmatpush1.xpose.msra.mxu0 0.0
  %894 = vmatprep.subr.mxu0 0.0
  %895 = vmatpush1.xpose.msra.mxu0 0.0
  %896 = vmatprep.subr.mxu0 0.0
  %897 = vmatpush1.xpose.msra.mxu0 0.0
  %898 = vmatprep.mubr.f32.mxu0 0.0
  %899 = vmatmul.mubr.f32.gmra.mrb[0].mxu0 %v802
  %v900 = vpop.f32.mrb[0].mxu0
  %v901 = vadd.f32 0.0, %v900
  %v902 = vpop.f32.mrb[0].mxu0
  %903 = vmatprep.mubr.f32.mxu0 0.0
  %904 = vmatmul.mubr.f32.gmra.mrb[0].mxu0 %v804
  %v905 = vpop.f32.mrb[0].mxu0
  %v906 = vadd.f32 0.0, %v905
  %v907 = vpop.f32.mrb[0].mxu0
  %908 = vmatprep.mubr.f32.mxu0 0.0
  %909 = vmatmul.mubr.f32.gmra.mrb[0].mxu0 %v806
  %v910 = vpop.f32.mrb[0].mxu0
  %v911 = vadd.f32 0.0, %v910
  %v912 = vpop.f32.mrb[0].mxu0
  %913 = vmatprep.mubr.f32.mxu0 0.0
  %914 = vmatmul.mubr.f32.gmra.mrb[0].mxu0 %v808
  %v915 = vpop.f32.mrb[0].mxu0
  %v916 = vadd.f32 0.0, %v915
  %v917 = vpop.f32.mrb[0].mxu0
  %918 = vmatprep.mubr.f32.mxu0 0.0
  %919 = vmatmul.mubr.f32.gmra.mrb[0].mxu0 %v810
  %v920 = vpop.f32.mrb[0].mxu0
  %v921 = vadd.f32 0.0, %v920
  %v922 = vpop.f32.mrb[0].mxu0
  %923 = vmatprep.mubr.f32.mxu0 0.0
  %924 = vmatmul.mubr.f32.gmra.mrb[0].mxu0 %v812
  %v925 = vpop.f32.mrb[0].mxu0
  %v926 = vadd.f32 0.0, %v925
  %v927 = vpop.f32.mrb[0].mxu0
  %928 = vmatprep.mubr.f32.mxu0 0.0
  %929 = vmatmul.mubr.f32.gmra.mrb[0].mxu0 %v814
  %v930 = vpop.f32.mrb[0].mxu0
  %v931 = vadd.f32 0.0, %v930
  %v932 = vpop.f32.mrb[0].mxu0
  %933 = vmatprep.mubr.f32.mxu0 0.0
  %934 = vmatmul.mubr.f32.gmra.mrb[0].mxu0 %v816
  %v935 = vpop.f32.mrb[0].mxu0
  %v936 = vadd.f32 0.0, %v935
  %v937 = vpop.f32.mrb[0].mxu0
  %938 = vdwg.mxu0
  %v939 = vmul.f32 %v901, 0.25
  %v940 = vmul.f32 %v906, 0.25
  %v941 = vmul.f32 %v911, 0.25
  %v942 = vmul.f32 %v916, 0.25
  %v943 = vmul.f32 %v921, 0.25
  %v944 = vmul.f32 %v926, 0.25
  %v945 = vmul.f32 %v931, 0.25
  %v946 = vmul.f32 %v936, 0.25
  %v947 = vadd.f32 %v939, %v55
  %v948 = vadd.f32 %v940, %v56
  %v949 = vadd.f32 %v941, %v57
  %v950 = vadd.f32 %v942, %v58
  %v951 = vadd.f32 %v943, %v59
  %v952 = vadd.f32 %v944, %v60
  %v953 = vadd.f32 %v945, %v61
  %v954 = vadd.f32 %v946, %v62
  %v955 = vsel %vm383, %v947, -inf
  %956 = vmax.xlane.f32.xlu0 %v955
  %v957 = vpop.xlane.xlu0 %956
  %v958 = vsel %vm383, %v948, -inf
  %959 = vmax.xlane.f32.xlu0 %v958
  %v960 = vpop.xlane.xlu0 %959
  %v961 = vsel %vm383, %v949, -inf
  %962 = vmax.xlane.f32.xlu0 %v961
  %v963 = vpop.xlane.xlu0 %962
  %v964 = vsel %vm383, %v950, -inf
  %965 = vmax.xlane.f32.xlu0 %v964
  %v966 = vpop.xlane.xlu0 %965
  %v967 = vsel %vm383, %v951, -inf
  %968 = vmax.xlane.f32.xlu0 %v967
  %v969 = vpop.xlane.xlu0 %968
  %v970 = vsel %vm383, %v952, -inf
  %971 = vmax.xlane.f32.xlu0 %v970
  %v972 = vpop.xlane.xlu0 %971
  %v973 = vsel %vm383, %v953, -inf
  %974 = vmax.xlane.f32.xlu0 %v973
  %v975 = vpop.xlane.xlu0 %974
  %v976 = vsel %vm383, %v954, -inf
  %977 = vmax.xlane.f32.xlu0 %v976
  %v978 = vpop.xlane.xlu0 %977
  %v979 = vsub.f32 %v947, %v957
  %v980 = vsub.f32 %v948, %v960
  %v981 = vsub.f32 %v949, %v963
  %v982 = vsub.f32 %v950, %v966
  %v983 = vsub.f32 %v951, %v969
  %v984 = vsub.f32 %v952, %v972
  %v985 = vsub.f32 %v953, %v975
  %v986 = vsub.f32 %v954, %v978
  %v987 = vmul.f32 %v979, 1.442695
  %v988 = vpow.pop %v987
  %v989 = vmul.f32 %v980, 1.442695
  %v990 = vpow.pop %v989
  %v991 = vmul.f32 %v981, 1.442695
  %v992 = vpow.pop %v991
  %v993 = vmul.f32 %v982, 1.442695
  %v994 = vpow.pop %v993
  %v995 = vmul.f32 %v983, 1.442695
  %v996 = vpow.pop %v995
  %v997 = vmul.f32 %v984, 1.442695
  %v998 = vpow.pop %v997
  %v999 = vmul.f32 %v985, 1.442695
  %v1000 = vpow.pop %v999
  %v1001 = vmul.f32 %v986, 1.442695
  %v1002 = vpow.pop %v1001
  %v1003 = vsel %vm383, %v988, 0.0
  %1004 = vadd.xlane.f32.xlu0 %v1003
  %v1005 = vpop.xlane.xlu0 %1004
  %v1006 = vsel %vm383, %v990, 0.0
  %1007 = vadd.xlane.f32.xlu0 %v1006
  %v1008 = vpop.xlane.xlu0 %1007
  %v1009 = vsel %vm383, %v992, 0.0
  %1010 = vadd.xlane.f32.xlu0 %v1009
  %v1011 = vpop.xlane.xlu0 %1010
  %v1012 = vsel %vm383, %v994, 0.0
  %1013 = vadd.xlane.f32.xlu0 %v1012
  %v1014 = vpop.xlane.xlu0 %1013
  %v1015 = vsel %vm383, %v996, 0.0
  %1016 = vadd.xlane.f32.xlu0 %v1015
  %v1017 = vpop.xlane.xlu0 %1016
  %v1018 = vsel %vm383, %v998, 0.0
  %1019 = vadd.xlane.f32.xlu0 %v1018
  %v1020 = vpop.xlane.xlu0 %1019
  %v1021 = vsel %vm383, %v1000, 0.0
  %1022 = vadd.xlane.f32.xlu0 %v1021
  %v1023 = vpop.xlane.xlu0 %1022
  %v1024 = vsel %vm383, %v1002, 0.0
  %1025 = vadd.xlane.f32.xlu0 %v1024
  %v1026 = vpop.xlane.xlu0 %1025
  %v1027 = vrcp.pop %v1005
  %v1028 = vrcp.pop %v1008
  %v1029 = vrcp.pop %v1011
  %v1030 = vrcp.pop %v1014
  %v1031 = vrcp.pop %v1017
  %v1032 = vrcp.pop %v1020
  %v1033 = vrcp.pop %v1023
  %v1034 = vrcp.pop %v1026
  %v1035 = vmul.f32 %v988, %v1027
  %v1036 = vmul.f32 %v990, %v1028
  %v1037 = vmul.f32 %v992, %v1029
  %v1038 = vmul.f32 %v994, %v1030
  %v1039 = vmul.f32 %v996, %v1031
  %v1040 = vmul.f32 %v998, %v1032
  %v1041 = vmul.f32 %v1000, %v1033
  %v1042 = vmul.f32 %v1002, %v1034
  %1043 = vrot.lane.b32.xlu0 %v166, 48
  %v1044 = vpop.permute.xlu0 %1043
  %1045 = vrot.lane.b32.xlu0 %v171, 48
  %v1046 = vpop.permute.xlu0 %1045
  %1047 = vrot.lane.b32.xlu0 %v176, 48
  %v1048 = vpop.permute.xlu0 %1047
  %1049 = vrot.lane.b32.xlu0 %v181, 48
  %v1050 = vpop.permute.xlu0 %1049
  %1051 = vrot.lane.b32.xlu0 %v186, 48
  %v1052 = vpop.permute.xlu0 %1051
  %1053 = vrot.lane.b32.xlu0 %v191, 48
  %v1054 = vpop.permute.xlu0 %1053
  %1055 = vrot.lane.b32.xlu0 %v196, 48
  %v1056 = vpop.permute.xlu0 %1055
  %1057 = vrot.lane.b32.xlu0 %v201, 48
  %v1058 = vpop.permute.xlu0 %1057
  %v1068 = vsel %vm383, %v1035, 0
  %v1071 = vsel %vm383, %v1036, 0
  %v1074 = vsel %vm383, %v1037, 0
  %v1077 = vsel %vm383, %v1038, 0
  %v1080 = vsel %vm383, %v1039, 0
  %v1083 = vsel %vm383, %v1040, 0
  %v1086 = vsel %vm383, %v1041, 0
  %v1089 = vsel %vm383, %v1042, 0
  %1091 = vmatprep.subr.mxu0 0.0
  %1092 = vmatpush1.msra.mxu0 %v1044
  %1093 = vmatprep.subr.mxu0 0.0
  %1094 = vmatpush1.msra.mxu0 %v1046
  %1095 = vmatprep.subr.mxu0 0.0
  %1096 = vmatpush1.msra.mxu0 %v1048
  %1097 = vmatprep.subr.mxu0 0.0
  %1098 = vmatpush1.msra.mxu0 %v1050
  %1099 = vmatprep.subr.mxu0 0.0
  %1100 = vmatpush1.msra.mxu0 %v1052
  %1101 = vmatprep.subr.mxu0 0.0
  %1102 = vmatpush1.msra.mxu0 %v1054
  %1103 = vmatprep.subr.mxu0 0.0
  %1104 = vmatpush1.msra.mxu0 %v1056
  %1105 = vmatprep.subr.mxu0 0.0
  %1106 = vmatpush1.msra.mxu0 %v1058
  %1107 = vmatprep.subr.mxu0 0.0
  %1108 = vmatpush1.msra.mxu0 0.0
  %1109 = vmatprep.subr.mxu0 0.0
  %1110 = vmatpush1.msra.mxu0 0.0
  %1111 = vmatprep.subr.mxu0 0.0
  %1112 = vmatpush1.msra.mxu0 0.0
  %1113 = vmatprep.subr.mxu0 0.0
  %1114 = vmatpush1.msra.mxu0 0.0
  %1115 = vmatprep.subr.mxu0 0.0
  %1116 = vmatpush1.msra.mxu0 0.0
  %1117 = vmatprep.subr.mxu0 0.0
  %1118 = vmatpush1.msra.mxu0 0.0
  %1119 = vmatprep.subr.mxu0 0.0
  %1120 = vmatpush1.msra.mxu0 0.0
  %1121 = vmatprep.subr.mxu0 0.0
  %1122 = vmatpush1.msra.mxu0 0.0
  %1123 = vmatprep.subr.mxu0 0.0
  %1124 = vmatpush1.msra.mxu0 0.0
  %1125 = vmatprep.subr.mxu0 0.0
  %1126 = vmatpush1.msra.mxu0 0.0
  %1127 = vmatprep.subr.mxu0 0.0
  %1128 = vmatpush1.msra.mxu0 0.0
  %1129 = vmatprep.subr.mxu0 0.0
  %1130 = vmatpush1.msra.mxu0 0.0
  %1131 = vmatprep.subr.mxu0 0.0
  %1132 = vmatpush1.msra.mxu0 0.0
  %1133 = vmatprep.subr.mxu0 0.0
  %1134 = vmatpush1.msra.mxu0 0.0
  %1135 = vmatprep.subr.mxu0 0.0
  %1136 = vmatpush1.msra.mxu0 0.0
  %1137 = vmatprep.subr.mxu0 0.0
  %1138 = vmatpush1.msra.mxu0 0.0
  %1139 = vmatprep.subr.mxu0 0.0
  %1140 = vmatpush1.msra.mxu0 0.0
  %1141 = vmatprep.subr.mxu0 0.0
  %1142 = vmatpush1.msra.mxu0 0.0
  %1143 = vmatprep.subr.mxu0 0.0
  %1144 = vmatpush1.msra.mxu0 0.0
  %1145 = vmatprep.subr.mxu0 0.0
  %1146 = vmatpush1.msra.mxu0 0.0
  %1147 = vmatprep.subr.mxu0 0.0
  %1148 = vmatpush1.msra.mxu0 0.0
  %1149 = vmatprep.subr.mxu0 0.0
  %1150 = vmatpush1.msra.mxu0 0.0
  %1151 = vmatprep.subr.mxu0 0.0
  %1152 = vmatpush1.msra.mxu0 0.0
  %1153 = vmatprep.subr.mxu0 0.0
  %1154 = vmatpush1.msra.mxu0 0.0
  %1155 = vmatprep.mubr.f32.mxu0 0.0
  %1156 = vmatmul.mubr.f32.gmra.mrb[0].mxu0 %v1068
  %v1157 = vpop.f32.mrb[0].mxu0
  %v1158 = vadd.f32 0.0, %v1157
  %v1159 = vpop.f32.mrb[0].mxu0
  %1160 = vmatprep.mubr.f32.mxu0 0.0
  %1161 = vmatmul.mubr.f32.gmra.mrb[0].mxu0 %v1071
  %v1162 = vpop.f32.mrb[0].mxu0
  %v1163 = vadd.f32 0.0, %v1162
  %v1164 = vpop.f32.mrb[0].mxu0
  %1165 = vmatprep.mubr.f32.mxu0 0.0
  %1166 = vmatmul.mubr.f32.gmra.mrb[0].mxu0 %v1074
  %v1167 = vpop.f32.mrb[0].mxu0
  %v1168 = vadd.f32 0.0, %v1167
  %v1169 = vpop.f32.mrb[0].mxu0
  %1170 = vmatprep.mubr.f32.mxu0 0.0
  %1171 = vmatmul.mubr.f32.gmra.mrb[0].mxu0 %v1077
  %v1172 = vpop.f32.mrb[0].mxu0
  %v1173 = vadd.f32 0.0, %v1172
  %v1174 = vpop.f32.mrb[0].mxu0
  %1175 = vmatprep.mubr.f32.mxu0 0.0
  %1176 = vmatmul.mubr.f32.gmra.mrb[0].mxu0 %v1080
  %v1177 = vpop.f32.mrb[0].mxu0
  %v1178 = vadd.f32 0.0, %v1177
  %v1179 = vpop.f32.mrb[0].mxu0
  %1180 = vmatprep.mubr.f32.mxu0 0.0
  %1181 = vmatmul.mubr.f32.gmra.mrb[0].mxu0 %v1083
  %v1182 = vpop.f32.mrb[0].mxu0
  %v1183 = vadd.f32 0.0, %v1182
  %v1184 = vpop.f32.mrb[0].mxu0
  %1185 = vmatprep.mubr.f32.mxu0 0.0
  %1186 = vmatmul.mubr.f32.gmra.mrb[0].mxu0 %v1086
  %v1187 = vpop.f32.mrb[0].mxu0
  %v1188 = vadd.f32 0.0, %v1187
  %v1189 = vpop.f32.mrb[0].mxu0
  %1190 = vmatprep.mubr.f32.mxu0 0.0
  %1191 = vmatmul.mubr.f32.gmra.mrb[0].mxu0 %v1089
  %v1192 = vpop.f32.mrb[0].mxu0
  %v1193 = vadd.f32 0.0, %v1192
  %v1194 = vpop.f32.mrb[0].mxu0
  %1195 = vdwg.mxu0
  %v1196 = vld [vmem:[%s4 + $0x10] sm:$0xff]
  %v1197 = vld [vmem:[%s4 + $0x18] sm:$0xff]
  %v1199 = vsel %vm229, %v1158, 0
  %v1202 = vsel %vm229, %v1163, 0
  %v1205 = vsel %vm229, %v1168, 0
  %v1208 = vsel %vm229, %v1173, 0
  %v1211 = vsel %vm229, %v1178, 0
  %v1214 = vsel %vm229, %v1183, 0
  %v1217 = vsel %vm229, %v1188, 0
  %v1220 = vsel %vm229, %v1193, 0
  %1222 = vmatprep.subr.mxu0 0.0
  %1223 = vmatpush1.msra.mxu0 %v1196
  %1224 = vmatprep.subr.mxu0 0.0
  %1225 = vmatpush1.msra.mxu0 %v1197
  %1226 = vmatprep.subr.mxu0 0.0
  %1227 = vmatpush1.msra.mxu0 0.0
  %1228 = vmatprep.subr.mxu0 0.0
  %1229 = vmatpush1.msra.mxu0 0.0
  %1230 = vmatprep.subr.mxu0 0.0
  %1231 = vmatpush1.msra.mxu0 0.0
  %1232 = vmatprep.subr.mxu0 0.0
  %1233 = vmatpush1.msra.mxu0 0.0
  %1234 = vmatprep.subr.mxu0 0.0
  %1235 = vmatpush1.msra.mxu0 0.0
  %1236 = vmatprep.subr.mxu0 0.0
  %1237 = vmatpush1.msra.mxu0 0.0
  %1238 = vmatprep.subr.mxu0 0.0
  %1239 = vmatpush1.msra.mxu0 0.0
  %1240 = vmatprep.subr.mxu0 0.0
  %1241 = vmatpush1.msra.mxu0 0.0
  %1242 = vmatprep.subr.mxu0 0.0
  %1243 = vmatpush1.msra.mxu0 0.0
  %1244 = vmatprep.subr.mxu0 0.0
  %1245 = vmatpush1.msra.mxu0 0.0
  %1246 = vmatprep.subr.mxu0 0.0
  %1247 = vmatpush1.msra.mxu0 0.0
  %1248 = vmatprep.subr.mxu0 0.0
  %1249 = vmatpush1.msra.mxu0 0.0
  %1250 = vmatprep.subr.mxu0 0.0
  %1251 = vmatpush1.msra.mxu0 0.0
  %1252 = vmatprep.subr.mxu0 0.0
  %1253 = vmatpush1.msra.mxu0 0.0
  %1254 = vmatprep.subr.mxu0 0.0
  %1255 = vmatpush1.msra.mxu0 0.0
  %1256 = vmatprep.subr.mxu0 0.0
  %1257 = vmatpush1.msra.mxu0 0.0
  %1258 = vmatprep.subr.mxu0 0.0
  %1259 = vmatpush1.msra.mxu0 0.0
  %1260 = vmatprep.subr.mxu0 0.0
  %1261 = vmatpush1.msra.mxu0 0.0
  %1262 = vmatprep.subr.mxu0 0.0
  %1263 = vmatpush1.msra.mxu0 0.0
  %1264 = vmatprep.subr.mxu0 0.0
  %1265 = vmatpush1.msra.mxu0 0.0
  %1266 = vmatprep.subr.mxu0 0.0
  %1267 = vmatpush1.msra.mxu0 0.0
  %1268 = vmatprep.subr.mxu0 0.0
  %1269 = vmatpush1.msra.mxu0 0.0
  %1270 = vmatprep.subr.mxu0 0.0
  %1271 = vmatpush1.msra.mxu0 0.0
  %1272 = vmatprep.subr.mxu0 0.0
  %1273 = vmatpush1.msra.mxu0 0.0
  %1274 = vmatprep.subr.mxu0 0.0
  %1275 = vmatpush1.msra.mxu0 0.0
  %1276 = vmatprep.subr.mxu0 0.0
  %1277 = vmatpush1.msra.mxu0 0.0
  %1278 = vmatprep.subr.mxu0 0.0
  %1279 = vmatpush1.msra.mxu0 0.0
  %1280 = vmatprep.subr.mxu0 0.0
  %1281 = vmatpush1.msra.mxu0 0.0
  %1282 = vmatprep.subr.mxu0 0.0
  %1283 = vmatpush1.msra.mxu0 0.0
  %1284 = vmatprep.subr.mxu0 0.0
  %1285 = vmatpush1.msra.mxu0 0.0
  %1286 = vmatprep.mubr.f32.mxu0 0.0
  %1287 = vmatmul.mubr.f32.gmra.mrb[0].mxu0 %v1199
  %v1288 = vpop.f32.mrb[0].mxu0
  %v1289 = vadd.f32 0.0, %v1288
  %v1290 = vpop.f32.mrb[0].mxu0
  %1291 = vmatprep.mubr.f32.mxu0 0.0
  %1292 = vmatmul.mubr.f32.gmra.mrb[0].mxu0 %v1202
  %v1293 = vpop.f32.mrb[0].mxu0
  %v1294 = vadd.f32 0.0, %v1293
  %v1295 = vpop.f32.mrb[0].mxu0
  %1296 = vmatprep.mubr.f32.mxu0 0.0
  %1297 = vmatmul.mubr.f32.gmra.mrb[0].mxu0 %v1205
  %v1298 = vpop.f32.mrb[0].mxu0
  %v1299 = vadd.f32 0.0, %v1298
  %v1300 = vpop.f32.mrb[0].mxu0
  %1301 = vmatprep.mubr.f32.mxu0 0.0
  %1302 = vmatmul.mubr.f32.gmra.mrb[0].mxu0 %v1208
  %v1303 = vpop.f32.mrb[0].mxu0
  %v1304 = vadd.f32 0.0, %v1303
  %v1305 = vpop.f32.mrb[0].mxu0
  %1306 = vmatprep.mubr.f32.mxu0 0.0
  %1307 = vmatmul.mubr.f32.gmra.mrb[0].mxu0 %v1211
  %v1308 = vpop.f32.mrb[0].mxu0
  %v1309 = vadd.f32 0.0, %v1308
  %v1310 = vpop.f32.mrb[0].mxu0
  %1311 = vmatprep.mubr.f32.mxu0 0.0
  %1312 = vmatmul.mubr.f32.gmra.mrb[0].mxu0 %v1214
  %v1313 = vpop.f32.mrb[0].mxu0
  %v1314 = vadd.f32 0.0, %v1313
  %v1315 = vpop.f32.mrb[0].mxu0
  %1316 = vmatprep.mubr.f32.mxu0 0.0
  %1317 = vmatmul.mubr.f32.gmra.mrb[0].mxu0 %v1217
  %v1318 = vpop.f32.mrb[0].mxu0
  %v1319 = vadd.f32 0.0, %v1318
  %v1320 = vpop.f32.mrb[0].mxu0
  %1321 = vmatprep.mubr.f32.mxu0 0.0
  %1322 = vmatmul.mubr.f32.gmra.mrb[0].mxu0 %v1220
  %v1323 = vpop.f32.mrb[0].mxu0
  %v1324 = vadd.f32 0.0, %v1323
  %v1325 = vpop.f32.mrb[0].mxu0
  %1326 = vdwg.mxu0
  %v1327 = vadd.f32 %v762, %v1289
  %v1328 = vadd.f32 %v763, %v1294
  %v1329 = vadd.f32 %v764, %v1299
  %v1330 = vadd.f32 %v765, %v1304
  %v1331 = vadd.f32 %v766, %v1309
  %v1332 = vadd.f32 %v767, %v1314
  %v1333 = vadd.f32 %v768, %v1319
  %v1334 = vadd.f32 %v769, %v1324
  %v1335 = vadd.f32 %v47, %v1327
  %v1336 = vadd.f32 %v48, %v1328
  %v1337 = vadd.f32 %v49, %v1329
  %v1338 = vadd.f32 %v50, %v1330
  %v1339 = vadd.f32 %v51, %v1331
  %v1340 = vadd.f32 %v52, %v1332
  %v1341 = vadd.f32 %v53, %v1333
  %v1342 = vadd.f32 %v54, %v1334
  %v1343 = vld [vmem:[%s6] sm:$0x1]
  %v1344 = vld [vmem:[%s7] sm:$0x1]
  %v1345 = vsel %vm74, %v1335, 0.0
  %1346 = vadd.xlane.f32.xlu0 %v1345
  %v1347 = vpop.xlane.xlu0 %1346
  %v1348 = vsel %vm74, %v1336, 0.0
  %1349 = vadd.xlane.f32.xlu0 %v1348
  %v1350 = vpop.xlane.xlu0 %1349
  %v1351 = vsel %vm74, %v1337, 0.0
  %1352 = vadd.xlane.f32.xlu0 %v1351
  %v1353 = vpop.xlane.xlu0 %1352
  %v1354 = vsel %vm74, %v1338, 0.0
  %1355 = vadd.xlane.f32.xlu0 %v1354
  %v1356 = vpop.xlane.xlu0 %1355
  %v1357 = vsel %vm74, %v1339, 0.0
  %1358 = vadd.xlane.f32.xlu0 %v1357
  %v1359 = vpop.xlane.xlu0 %1358
  %v1360 = vsel %vm74, %v1340, 0.0
  %1361 = vadd.xlane.f32.xlu0 %v1360
  %v1362 = vpop.xlane.xlu0 %1361
  %v1363 = vsel %vm74, %v1341, 0.0
  %1364 = vadd.xlane.f32.xlu0 %v1363
  %v1365 = vpop.xlane.xlu0 %1364
  %v1366 = vsel %vm74, %v1342, 0.0
  %1367 = vadd.xlane.f32.xlu0 %v1366
  %v1368 = vpop.xlane.xlu0 %1367
  %v1369 = vrcp.pop 32.0
  %v1370 = vmul.f32 %v1347, %v1369
  %v1371 = vmul.f32 %v1350, %v1369
  %v1372 = vmul.f32 %v1353, %v1369
  %v1373 = vmul.f32 %v1356, %v1369
  %v1374 = vmul.f32 %v1359, %v1369
  %v1375 = vmul.f32 %v1362, %v1369
  %v1376 = vmul.f32 %v1365, %v1369
  %v1377 = vmul.f32 %v1368, %v1369
  %v1378 = vsub.f32 %v1335, %v1370
  %v1379 = vsub.f32 %v1336, %v1371
  %v1380 = vsub.f32 %v1337, %v1372
  %v1381 = vsub.f32 %v1338, %v1373
  %v1382 = vsub.f32 %v1339, %v1374
  %v1383 = vsub.f32 %v1340, %v1375
  %v1384 = vsub.f32 %v1341, %v1376
  %v1385 = vsub.f32 %v1342, %v1377
  %v1386 = vmul.f32 %v1378, %v1378
  %v1387 = vmul.f32 %v1379, %v1379
  %v1388 = vmul.f32 %v1380, %v1380
  %v1389 = vmul.f32 %v1381, %v1381
  %v1390 = vmul.f32 %v1382, %v1382
  %v1391 = vmul.f32 %v1383, %v1383
  %v1392 = vmul.f32 %v1384, %v1384
  %v1393 = vmul.f32 %v1385, %v1385
  %v1394 = vsel %vm74, %v1386, 0.0
  %1395 = vadd.xlane.f32.xlu0 %v1394
  %v1396 = vpop.xlane.xlu0 %1395
  %v1397 = vsel %vm74, %v1387, 0.0
  %1398 = vadd.xlane.f32.xlu0 %v1397
  %v1399 = vpop.xlane.xlu0 %1398
  %v1400 = vsel %vm74, %v1388, 0.0
  %1401 = vadd.xlane.f32.xlu0 %v1400
  %v1402 = vpop.xlane.xlu0 %1401
  %v1403 = vsel %vm74, %v1389, 0.0
  %1404 = vadd.xlane.f32.xlu0 %v1403
  %v1405 = vpop.xlane.xlu0 %1404
  %v1406 = vsel %vm74, %v1390, 0.0
  %1407 = vadd.xlane.f32.xlu0 %v1406
  %v1408 = vpop.xlane.xlu0 %1407
  %v1409 = vsel %vm74, %v1391, 0.0
  %1410 = vadd.xlane.f32.xlu0 %v1409
  %v1411 = vpop.xlane.xlu0 %1410
  %v1412 = vsel %vm74, %v1392, 0.0
  %1413 = vadd.xlane.f32.xlu0 %v1412
  %v1414 = vpop.xlane.xlu0 %1413
  %v1415 = vsel %vm74, %v1393, 0.0
  %1416 = vadd.xlane.f32.xlu0 %v1415
  %v1417 = vpop.xlane.xlu0 %1416
  %v1418 = vmul.f32 %v1396, %v1369
  %v1419 = vmul.f32 %v1399, %v1369
  %v1420 = vmul.f32 %v1402, %v1369
  %v1421 = vmul.f32 %v1405, %v1369
  %v1422 = vmul.f32 %v1408, %v1369
  %v1423 = vmul.f32 %v1411, %v1369
  %v1424 = vmul.f32 %v1414, %v1369
  %v1425 = vmul.f32 %v1417, %v1369
  %v1426 = vadd.f32 %v1418, 1e-05
  %v1427 = vadd.f32 %v1419, 1e-05
  %v1428 = vadd.f32 %v1420, 1e-05
  %v1429 = vadd.f32 %v1421, 1e-05
  %v1430 = vadd.f32 %v1422, 1e-05
  %v1431 = vadd.f32 %v1423, 1e-05
  %v1432 = vadd.f32 %v1424, 1e-05
  %v1433 = vadd.f32 %v1425, 1e-05
  %v1434 = vrsqrt.pop %v1426
  %v1435 = vrsqrt.pop %v1427
  %v1436 = vrsqrt.pop %v1428
  %v1437 = vrsqrt.pop %v1429
  %v1438 = vrsqrt.pop %v1430
  %v1439 = vrsqrt.pop %v1431
  %v1440 = vrsqrt.pop %v1432
  %v1441 = vrsqrt.pop %v1433
  %v1442 = vmul.f32 %v1378, %v1434
  %v1443 = vmul.f32 %v1379, %v1435
  %v1444 = vmul.f32 %v1380, %v1436
  %v1445 = vmul.f32 %v1381, %v1437
  %v1446 = vmul.f32 %v1382, %v1438
  %v1447 = vmul.f32 %v1383, %v1439
  %v1448 = vmul.f32 %v1384, %v1440
  %v1449 = vmul.f32 %v1385, %v1441
  %v1451 = vlaneseq
  %v1452 = vshrl.u32 %v1451, 7
  %v1453 = vsub.s32 0, %v1452
  %v1454 = vrot.slane %v1343, %v1453
  %v1456 = vmul.f32 %v1442, %v1454
  %v1457 = vmul.f32 %v1443, %v1454
  %v1458 = vmul.f32 %v1444, %v1454
  %v1459 = vmul.f32 %v1445, %v1454
  %v1460 = vmul.f32 %v1446, %v1454
  %v1461 = vmul.f32 %v1447, %v1454
  %v1462 = vmul.f32 %v1448, %v1454
  %v1463 = vmul.f32 %v1449, %v1454
  %v1465 = vlaneseq
  %v1466 = vshrl.u32 %v1465, 7
  %v1467 = vsub.s32 0, %v1466
  %v1468 = vrot.slane %v1344, %v1467
  %v1470 = vadd.f32 %v1456, %v1468
  %v1471 = vadd.f32 %v1457, %v1468
  %v1472 = vadd.f32 %v1458, %v1468
  %v1473 = vadd.f32 %v1459, %v1468
  %v1474 = vadd.f32 %v1460, %v1468
  %v1475 = vadd.f32 %v1461, %v1468
  %v1476 = vadd.f32 %v1462, %v1468
  %v1477 = vadd.f32 %v1463, %v1468
  %v1478 = vld [vmem:[%s8] sm:$0xff]
  %v1479 = vld [vmem:[%s8 + $0x8] sm:$0xff]
  %v1480 = vld [vmem:[%s8 + $0x10] sm:$0xff]
  %v1481 = vld [vmem:[%s8 + $0x18] sm:$0xff]
  %v1482 = vld [vmem:[%s8 + $0x20] sm:$0xff]
  %v1483 = vld [vmem:[%s8 + $0x28] sm:$0xff]
  %v1484 = vld [vmem:[%s8 + $0x30] sm:$0xff]
  %v1485 = vld [vmem:[%s8 + $0x38] sm:$0xff]
  %v1486 = vld [vmem:[%s8 + $0x40] sm:$0xff]
  %v1487 = vld [vmem:[%s8 + $0x48] sm:$0xff]
  %v1488 = vld [vmem:[%s8 + $0x50] sm:$0xff]
  %v1489 = vld [vmem:[%s8 + $0x58] sm:$0xff]
  %v1490 = vld [vmem:[%s8 + $0x60] sm:$0xff]
  %v1491 = vld [vmem:[%s8 + $0x68] sm:$0xff]
  %v1492 = vld [vmem:[%s8 + $0x70] sm:$0xff]
  %v1493 = vld [vmem:[%s8 + $0x78] sm:$0xff]
  %v1494 = vld [vmem:[%s8 + $0x80] sm:$0xff]
  %v1495 = vld [vmem:[%s8 + $0x88] sm:$0xff]
  %v1496 = vld [vmem:[%s8 + $0x90] sm:$0xff]
  %v1497 = vld [vmem:[%s8 + $0x98] sm:$0xff]
  %v1498 = vld [vmem:[%s8 + $0xa0] sm:$0xff]
  %v1499 = vld [vmem:[%s8 + $0xa8] sm:$0xff]
  %v1500 = vld [vmem:[%s8 + $0xb0] sm:$0xff]
  %v1501 = vld [vmem:[%s8 + $0xb8] sm:$0xff]
  %v1502 = vld [vmem:[%s8 + $0xc0] sm:$0xff]
  %v1503 = vld [vmem:[%s8 + $0xc8] sm:$0xff]
  %v1504 = vld [vmem:[%s8 + $0xd0] sm:$0xff]
  %v1505 = vld [vmem:[%s8 + $0xd8] sm:$0xff]
  %v1506 = vld [vmem:[%s8 + $0xe0] sm:$0xff]
  %v1507 = vld [vmem:[%s8 + $0xe8] sm:$0xff]
  %v1508 = vld [vmem:[%s8 + $0xf0] sm:$0xff]
  %v1509 = vld [vmem:[%s8 + $0xf8] sm:$0xff]
  %v1510 = vld [vmem:[%s8 + $0x100] sm:$0xff]
  %v1511 = vld [vmem:[%s8 + $0x108] sm:$0xff]
  %v1512 = vld [vmem:[%s8 + $0x110] sm:$0xff]
  %v1513 = vld [vmem:[%s8 + $0x118] sm:$0xff]
  %v1514 = vld [vmem:[%s8 + $0x120] sm:$0xff]
  %v1515 = vld [vmem:[%s8 + $0x128] sm:$0xff]
  %v1516 = vld [vmem:[%s8 + $0x130] sm:$0xff]
  %v1517 = vld [vmem:[%s8 + $0x138] sm:$0xff]
  %v1518 = vld [vmem:[%s8 + $0x140] sm:$0xff]
  %v1519 = vld [vmem:[%s8 + $0x148] sm:$0xff]
  %v1520 = vld [vmem:[%s8 + $0x150] sm:$0xff]
  %v1521 = vld [vmem:[%s8 + $0x158] sm:$0xff]
  %v1522 = vld [vmem:[%s8 + $0x160] sm:$0xff]
  %v1523 = vld [vmem:[%s8 + $0x168] sm:$0xff]
  %v1524 = vld [vmem:[%s8 + $0x170] sm:$0xff]
  %v1525 = vld [vmem:[%s8 + $0x178] sm:$0xff]
  %v1526 = vld [vmem:[%s8 + $0x180] sm:$0xff]
  %v1527 = vld [vmem:[%s8 + $0x188] sm:$0xff]
  %v1528 = vld [vmem:[%s8 + $0x190] sm:$0xff]
  %v1529 = vld [vmem:[%s8 + $0x198] sm:$0xff]
  %v1530 = vld [vmem:[%s8 + $0x1a0] sm:$0xff]
  %v1531 = vld [vmem:[%s8 + $0x1a8] sm:$0xff]
  %v1532 = vld [vmem:[%s8 + $0x1b0] sm:$0xff]
  %v1533 = vld [vmem:[%s8 + $0x1b8] sm:$0xff]
  %v1534 = vld [vmem:[%s8 + $0x1c0] sm:$0xff]
  %v1535 = vld [vmem:[%s8 + $0x1c8] sm:$0xff]
  %v1536 = vld [vmem:[%s8 + $0x1d0] sm:$0xff]
  %v1537 = vld [vmem:[%s8 + $0x1d8] sm:$0xff]
  %v1538 = vld [vmem:[%s8 + $0x1e0] sm:$0xff]
  %v1539 = vld [vmem:[%s8 + $0x1e8] sm:$0xff]
  %v1540 = vld [vmem:[%s8 + $0x1f0] sm:$0xff]
  %v1541 = vld [vmem:[%s8 + $0x1f8] sm:$0xff]
  %v1542 = vld [vmem:[%s9] sm:$0xff]
  %v1543 = vld [vmem:[%s9 + $0x8] sm:$0xff]
  %v1546 = vlaneseq
  %v1547 = vshrl.u32 %v1546, 7
  %v1548 = vsub.s32 0, %v1547
  %v1549 = vrot.slane %v1542, %v1548
  %v1550 = vlaneseq
  %v1551 = vshrl.u32 %v1550, 7
  %v1552 = vsub.s32 1, %v1551
  %v1553 = vrot.slane %v1542, %v1552
  %v1554 = vlaneseq
  %v1555 = vshrl.u32 %v1554, 7
  %v1556 = vsub.s32 2, %v1555
  %v1557 = vrot.slane %v1542, %v1556
  %v1558 = vlaneseq
  %v1559 = vshrl.u32 %v1558, 7
  %v1560 = vsub.s32 3, %v1559
  %v1561 = vrot.slane %v1542, %v1560
  %v1562 = vlaneseq
  %v1563 = vshrl.u32 %v1562, 7
  %v1564 = vsub.s32 4, %v1563
  %v1565 = vrot.slane %v1542, %v1564
  %v1566 = vlaneseq
  %v1567 = vshrl.u32 %v1566, 7
  %v1568 = vsub.s32 5, %v1567
  %v1569 = vrot.slane %v1542, %v1568
  %v1570 = vlaneseq
  %v1571 = vshrl.u32 %v1570, 7
  %v1572 = vsub.s32 6, %v1571
  %v1573 = vrot.slane %v1542, %v1572
  %v1574 = vlaneseq
  %v1575 = vshrl.u32 %v1574, 7
  %v1576 = vsub.s32 7, %v1575
  %v1577 = vrot.slane %v1542, %v1576
  %v1578 = vlaneseq
  %v1579 = vshrl.u32 %v1578, 7
  %v1580 = vsub.s32 0, %v1579
  %v1581 = vrot.slane %v1543, %v1580
  %v1582 = vlaneseq
  %v1583 = vshrl.u32 %v1582, 7
  %v1584 = vsub.s32 1, %v1583
  %v1585 = vrot.slane %v1543, %v1584
  %v1586 = vlaneseq
  %v1587 = vshrl.u32 %v1586, 7
  %v1588 = vsub.s32 2, %v1587
  %v1589 = vrot.slane %v1543, %v1588
  %v1590 = vlaneseq
  %v1591 = vshrl.u32 %v1590, 7
  %v1592 = vsub.s32 3, %v1591
  %v1593 = vrot.slane %v1543, %v1592
  %v1594 = vlaneseq
  %v1595 = vshrl.u32 %v1594, 7
  %v1596 = vsub.s32 4, %v1595
  %v1597 = vrot.slane %v1543, %v1596
  %v1598 = vlaneseq
  %v1599 = vshrl.u32 %v1598, 7
  %v1600 = vsub.s32 5, %v1599
  %v1601 = vrot.slane %v1543, %v1600
  %v1602 = vlaneseq
  %v1603 = vshrl.u32 %v1602, 7
  %v1604 = vsub.s32 6, %v1603
  %v1605 = vrot.slane %v1543, %v1604
  %v1606 = vlaneseq
  %v1607 = vshrl.u32 %v1606, 7
  %v1608 = vsub.s32 7, %v1607
  %v1609 = vrot.slane %v1543, %v1608
  %v1627 = vsel %vm74, %v1470, 0
  %v1630 = vsel %vm74, %v1471, 0
  %v1633 = vsel %vm74, %v1472, 0
  %v1636 = vsel %vm74, %v1473, 0
  %v1639 = vsel %vm74, %v1474, 0
  %v1642 = vsel %vm74, %v1475, 0
  %v1645 = vsel %vm74, %v1476, 0
  %v1648 = vsel %vm74, %v1477, 0
  %1650 = vmatprep.subr.mxu0 %v1479
  %1651 = vmatpush1.msra.mxu0 %v1478
  %1652 = vmatprep.subr.mxu0 %v1495
  %1653 = vmatpush1.msra.mxu0 %v1494
  %1654 = vmatprep.subr.mxu0 %v1511
  %1655 = vmatpush1.msra.mxu0 %v1510
  %1656 = vmatprep.subr.mxu0 %v1527
  %1657 = vmatpush1.msra.mxu0 %v1526
  %1658 = vmatprep.subr.mxu0 0.0
  %1659 = vmatpush1.msra.mxu0 0.0
  %1660 = vmatprep.subr.mxu0 0.0
  %1661 = vmatpush1.msra.mxu0 0.0
  %1662 = vmatprep.subr.mxu0 0.0
  %1663 = vmatpush1.msra.mxu0 0.0
  %1664 = vmatprep.subr.mxu0 0.0
  %1665 = vmatpush1.msra.mxu0 0.0
  %1666 = vmatprep.subr.mxu0 0.0
  %1667 = vmatpush1.msra.mxu0 0.0
  %1668 = vmatprep.subr.mxu0 0.0
  %1669 = vmatpush1.msra.mxu0 0.0
  %1670 = vmatprep.subr.mxu0 0.0
  %1671 = vmatpush1.msra.mxu0 0.0
  %1672 = vmatprep.subr.mxu0 0.0
  %1673 = vmatpush1.msra.mxu0 0.0
  %1674 = vmatprep.subr.mxu0 0.0
  %1675 = vmatpush1.msra.mxu0 0.0
  %1676 = vmatprep.subr.mxu0 0.0
  %1677 = vmatpush1.msra.mxu0 0.0
  %1678 = vmatprep.subr.mxu0 0.0
  %1679 = vmatpush1.msra.mxu0 0.0
  %1680 = vmatprep.subr.mxu0 0.0
  %1681 = vmatpush1.msra.mxu0 0.0
  %1682 = vmatprep.subr.mxu0 0.0
  %1683 = vmatpush1.msra.mxu0 0.0
  %1684 = vmatprep.subr.mxu0 0.0
  %1685 = vmatpush1.msra.mxu0 0.0
  %1686 = vmatprep.subr.mxu0 0.0
  %1687 = vmatpush1.msra.mxu0 0.0
  %1688 = vmatprep.subr.mxu0 0.0
  %1689 = vmatpush1.msra.mxu0 0.0
  %1690 = vmatprep.subr.mxu0 0.0
  %1691 = vmatpush1.msra.mxu0 0.0
  %1692 = vmatprep.subr.mxu0 0.0
  %1693 = vmatpush1.msra.mxu0 0.0
  %1694 = vmatprep.subr.mxu0 0.0
  %1695 = vmatpush1.msra.mxu0 0.0
  %1696 = vmatprep.subr.mxu0 0.0
  %1697 = vmatpush1.msra.mxu0 0.0
  %1698 = vmatprep.subr.mxu0 0.0
  %1699 = vmatpush1.msra.mxu0 0.0
  %1700 = vmatprep.subr.mxu0 0.0
  %1701 = vmatpush1.msra.mxu0 0.0
  %1702 = vmatprep.subr.mxu0 0.0
  %1703 = vmatpush1.msra.mxu0 0.0
  %1704 = vmatprep.subr.mxu0 0.0
  %1705 = vmatpush1.msra.mxu0 0.0
  %1706 = vmatprep.subr.mxu0 0.0
  %1707 = vmatpush1.msra.mxu0 0.0
  %1708 = vmatprep.subr.mxu0 0.0
  %1709 = vmatpush1.msra.mxu0 0.0
  %1710 = vmatprep.subr.mxu0 0.0
  %1711 = vmatpush1.msra.mxu0 0.0
  %1712 = vmatprep.subr.mxu0 0.0
  %1713 = vmatpush1.msra.mxu0 0.0
  %1714 = vmatprep.mubr.f32.mxu0 0.0
  %1715 = vmatmul.mubr.f32.gmra.mrb[0].mxu0 %v1627
  %v1716 = vpop.f32.mrb[0].mxu0
  %v1717 = vadd.f32 %v1549, %v1716
  %v1718 = vpop.f32.mrb[0].mxu0
  %v1719 = vadd.f32 %v1553, %v1718
  %1720 = vmatprep.mubr.f32.mxu0 0.0
  %1721 = vmatmul.mubr.f32.gmra.mrb[0].mxu0 %v1630
  %v1722 = vpop.f32.mrb[0].mxu0
  %v1723 = vadd.f32 %v1549, %v1722
  %v1724 = vpop.f32.mrb[0].mxu0
  %v1725 = vadd.f32 %v1553, %v1724
  %1726 = vmatprep.mubr.f32.mxu0 0.0
  %1727 = vmatmul.mubr.f32.gmra.mrb[0].mxu0 %v1633
  %v1728 = vpop.f32.mrb[0].mxu0
  %v1729 = vadd.f32 %v1549, %v1728
  %v1730 = vpop.f32.mrb[0].mxu0
  %v1731 = vadd.f32 %v1553, %v1730
  %1732 = vmatprep.mubr.f32.mxu0 0.0
  %1733 = vmatmul.mubr.f32.gmra.mrb[0].mxu0 %v1636
  %v1734 = vpop.f32.mrb[0].mxu0
  %v1735 = vadd.f32 %v1549, %v1734
  %v1736 = vpop.f32.mrb[0].mxu0
  %v1737 = vadd.f32 %v1553, %v1736
  %1738 = vmatprep.mubr.f32.mxu0 0.0
  %1739 = vmatmul.mubr.f32.gmra.mrb[0].mxu0 %v1639
  %v1740 = vpop.f32.mrb[0].mxu0
  %v1741 = vadd.f32 %v1549, %v1740
  %v1742 = vpop.f32.mrb[0].mxu0
  %v1743 = vadd.f32 %v1553, %v1742
  %1744 = vmatprep.mubr.f32.mxu0 0.0
  %1745 = vmatmul.mubr.f32.gmra.mrb[0].mxu0 %v1642
  %v1746 = vpop.f32.mrb[0].mxu0
  %v1747 = vadd.f32 %v1549, %v1746
  %v1748 = vpop.f32.mrb[0].mxu0
  %v1749 = vadd.f32 %v1553, %v1748
  %1750 = vmatprep.mubr.f32.mxu0 0.0
  %1751 = vmatmul.mubr.f32.gmra.mrb[0].mxu0 %v1645
  %v1752 = vpop.f32.mrb[0].mxu0
  %v1753 = vadd.f32 %v1549, %v1752
  %v1754 = vpop.f32.mrb[0].mxu0
  %v1755 = vadd.f32 %v1553, %v1754
  %1756 = vmatprep.mubr.f32.mxu0 0.0
  %1757 = vmatmul.mubr.f32.gmra.mrb[0].mxu0 %v1648
  %v1758 = vpop.f32.mrb[0].mxu0
  %v1759 = vadd.f32 %v1549, %v1758
  %v1760 = vpop.f32.mrb[0].mxu0
  %v1761 = vadd.f32 %v1553, %v1760
  %1762 = vdwg.mxu0
  %1763 = vmatprep.subr.mxu0 %v1481
  %1764 = vmatpush1.msra.mxu0 %v1480
  %1765 = vmatprep.subr.mxu0 %v1497
  %1766 = vmatpush1.msra.mxu0 %v1496
  %1767 = vmatprep.subr.mxu0 %v1513
  %1768 = vmatpush1.msra.mxu0 %v1512
  %1769 = vmatprep.subr.mxu0 %v1529
  %1770 = vmatpush1.msra.mxu0 %v1528
  %1771 = vmatprep.subr.mxu0 0.0
  %1772 = vmatpush1.msra.mxu0 0.0
  %1773 = vmatprep.subr.mxu0 0.0
  %1774 = vmatpush1.msra.mxu0 0.0
  %1775 = vmatprep.subr.mxu0 0.0
  %1776 = vmatpush1.msra.mxu0 0.0
  %1777 = vmatprep.subr.mxu0 0.0
  %1778 = vmatpush1.msra.mxu0 0.0
  %1779 = vmatprep.subr.mxu0 0.0
  %1780 = vmatpush1.msra.mxu0 0.0
  %1781 = vmatprep.subr.mxu0 0.0
  %1782 = vmatpush1.msra.mxu0 0.0
  %1783 = vmatprep.subr.mxu0 0.0
  %1784 = vmatpush1.msra.mxu0 0.0
  %1785 = vmatprep.subr.mxu0 0.0
  %1786 = vmatpush1.msra.mxu0 0.0
  %1787 = vmatprep.subr.mxu0 0.0
  %1788 = vmatpush1.msra.mxu0 0.0
  %1789 = vmatprep.subr.mxu0 0.0
  %1790 = vmatpush1.msra.mxu0 0.0
  %1791 = vmatprep.subr.mxu0 0.0
  %1792 = vmatpush1.msra.mxu0 0.0
  %1793 = vmatprep.subr.mxu0 0.0
  %1794 = vmatpush1.msra.mxu0 0.0
  %1795 = vmatprep.subr.mxu0 0.0
  %1796 = vmatpush1.msra.mxu0 0.0
  %1797 = vmatprep.subr.mxu0 0.0
  %1798 = vmatpush1.msra.mxu0 0.0
  %1799 = vmatprep.subr.mxu0 0.0
  %1800 = vmatpush1.msra.mxu0 0.0
  %1801 = vmatprep.subr.mxu0 0.0
  %1802 = vmatpush1.msra.mxu0 0.0
  %1803 = vmatprep.subr.mxu0 0.0
  %1804 = vmatpush1.msra.mxu0 0.0
  %1805 = vmatprep.subr.mxu0 0.0
  %1806 = vmatpush1.msra.mxu0 0.0
  %1807 = vmatprep.subr.mxu0 0.0
  %1808 = vmatpush1.msra.mxu0 0.0
  %1809 = vmatprep.subr.mxu0 0.0
  %1810 = vmatpush1.msra.mxu0 0.0
  %1811 = vmatprep.subr.mxu0 0.0
  %1812 = vmatpush1.msra.mxu0 0.0
  %1813 = vmatprep.subr.mxu0 0.0
  %1814 = vmatpush1.msra.mxu0 0.0
  %1815 = vmatprep.subr.mxu0 0.0
  %1816 = vmatpush1.msra.mxu0 0.0
  %1817 = vmatprep.subr.mxu0 0.0
  %1818 = vmatpush1.msra.mxu0 0.0
  %1819 = vmatprep.subr.mxu0 0.0
  %1820 = vmatpush1.msra.mxu0 0.0
  %1821 = vmatprep.subr.mxu0 0.0
  %1822 = vmatpush1.msra.mxu0 0.0
  %1823 = vmatprep.subr.mxu0 0.0
  %1824 = vmatpush1.msra.mxu0 0.0
  %1825 = vmatprep.subr.mxu0 0.0
  %1826 = vmatpush1.msra.mxu0 0.0
  %1827 = vmatprep.mubr.f32.mxu0 0.0
  %1828 = vmatmul.mubr.f32.gmra.mrb[0].mxu0 %v1627
  %v1829 = vpop.f32.mrb[0].mxu0
  %v1830 = vadd.f32 %v1557, %v1829
  %v1831 = vpop.f32.mrb[0].mxu0
  %v1832 = vadd.f32 %v1561, %v1831
  %1833 = vmatprep.mubr.f32.mxu0 0.0
  %1834 = vmatmul.mubr.f32.gmra.mrb[0].mxu0 %v1630
  %v1835 = vpop.f32.mrb[0].mxu0
  %v1836 = vadd.f32 %v1557, %v1835
  %v1837 = vpop.f32.mrb[0].mxu0
  %v1838 = vadd.f32 %v1561, %v1837
  %1839 = vmatprep.mubr.f32.mxu0 0.0
  %1840 = vmatmul.mubr.f32.gmra.mrb[0].mxu0 %v1633
  %v1841 = vpop.f32.mrb[0].mxu0
  %v1842 = vadd.f32 %v1557, %v1841
  %v1843 = vpop.f32.mrb[0].mxu0
  %v1844 = vadd.f32 %v1561, %v1843
  %1845 = vmatprep.mubr.f32.mxu0 0.0
  %1846 = vmatmul.mubr.f32.gmra.mrb[0].mxu0 %v1636
  %v1847 = vpop.f32.mrb[0].mxu0
  %v1848 = vadd.f32 %v1557, %v1847
  %v1849 = vpop.f32.mrb[0].mxu0
  %v1850 = vadd.f32 %v1561, %v1849
  %1851 = vmatprep.mubr.f32.mxu0 0.0
  %1852 = vmatmul.mubr.f32.gmra.mrb[0].mxu0 %v1639
  %v1853 = vpop.f32.mrb[0].mxu0
  %v1854 = vadd.f32 %v1557, %v1853
  %v1855 = vpop.f32.mrb[0].mxu0
  %v1856 = vadd.f32 %v1561, %v1855
  %1857 = vmatprep.mubr.f32.mxu0 0.0
  %1858 = vmatmul.mubr.f32.gmra.mrb[0].mxu0 %v1642
  %v1859 = vpop.f32.mrb[0].mxu0
  %v1860 = vadd.f32 %v1557, %v1859
  %v1861 = vpop.f32.mrb[0].mxu0
  %v1862 = vadd.f32 %v1561, %v1861
  %1863 = vmatprep.mubr.f32.mxu0 0.0
  %1864 = vmatmul.mubr.f32.gmra.mrb[0].mxu0 %v1645
  %v1865 = vpop.f32.mrb[0].mxu0
  %v1866 = vadd.f32 %v1557, %v1865
  %v1867 = vpop.f32.mrb[0].mxu0
  %v1868 = vadd.f32 %v1561, %v1867
  %1869 = vmatprep.mubr.f32.mxu0 0.0
  %1870 = vmatmul.mubr.f32.gmra.mrb[0].mxu0 %v1648
  %v1871 = vpop.f32.mrb[0].mxu0
  %v1872 = vadd.f32 %v1557, %v1871
  %v1873 = vpop.f32.mrb[0].mxu0
  %v1874 = vadd.f32 %v1561, %v1873
  %1875 = vdwg.mxu0
  %1876 = vmatprep.subr.mxu0 %v1483
  %1877 = vmatpush1.msra.mxu0 %v1482
  %1878 = vmatprep.subr.mxu0 %v1499
  %1879 = vmatpush1.msra.mxu0 %v1498
  %1880 = vmatprep.subr.mxu0 %v1515
  %1881 = vmatpush1.msra.mxu0 %v1514
  %1882 = vmatprep.subr.mxu0 %v1531
  %1883 = vmatpush1.msra.mxu0 %v1530
  %1884 = vmatprep.subr.mxu0 0.0
  %1885 = vmatpush1.msra.mxu0 0.0
  %1886 = vmatprep.subr.mxu0 0.0
  %1887 = vmatpush1.msra.mxu0 0.0
  %1888 = vmatprep.subr.mxu0 0.0
  %1889 = vmatpush1.msra.mxu0 0.0
  %1890 = vmatprep.subr.mxu0 0.0
  %1891 = vmatpush1.msra.mxu0 0.0
  %1892 = vmatprep.subr.mxu0 0.0
  %1893 = vmatpush1.msra.mxu0 0.0
  %1894 = vmatprep.subr.mxu0 0.0
  %1895 = vmatpush1.msra.mxu0 0.0
  %1896 = vmatprep.subr.mxu0 0.0
  %1897 = vmatpush1.msra.mxu0 0.0
  %1898 = vmatprep.subr.mxu0 0.0
  %1899 = vmatpush1.msra.mxu0 0.0
  %1900 = vmatprep.subr.mxu0 0.0
  %1901 = vmatpush1.msra.mxu0 0.0
  %1902 = vmatprep.subr.mxu0 0.0
  %1903 = vmatpush1.msra.mxu0 0.0
  %1904 = vmatprep.subr.mxu0 0.0
  %1905 = vmatpush1.msra.mxu0 0.0
  %1906 = vmatprep.subr.mxu0 0.0
  %1907 = vmatpush1.msra.mxu0 0.0
  %1908 = vmatprep.subr.mxu0 0.0
  %1909 = vmatpush1.msra.mxu0 0.0
  %1910 = vmatprep.subr.mxu0 0.0
  %1911 = vmatpush1.msra.mxu0 0.0
  %1912 = vmatprep.subr.mxu0 0.0
  %1913 = vmatpush1.msra.mxu0 0.0
  %1914 = vmatprep.subr.mxu0 0.0
  %1915 = vmatpush1.msra.mxu0 0.0
  %1916 = vmatprep.subr.mxu0 0.0
  %1917 = vmatpush1.msra.mxu0 0.0
  %1918 = vmatprep.subr.mxu0 0.0
  %1919 = vmatpush1.msra.mxu0 0.0
  %1920 = vmatprep.subr.mxu0 0.0
  %1921 = vmatpush1.msra.mxu0 0.0
  %1922 = vmatprep.subr.mxu0 0.0
  %1923 = vmatpush1.msra.mxu0 0.0
  %1924 = vmatprep.subr.mxu0 0.0
  %1925 = vmatpush1.msra.mxu0 0.0
  %1926 = vmatprep.subr.mxu0 0.0
  %1927 = vmatpush1.msra.mxu0 0.0
  %1928 = vmatprep.subr.mxu0 0.0
  %1929 = vmatpush1.msra.mxu0 0.0
  %1930 = vmatprep.subr.mxu0 0.0
  %1931 = vmatpush1.msra.mxu0 0.0
  %1932 = vmatprep.subr.mxu0 0.0
  %1933 = vmatpush1.msra.mxu0 0.0
  %1934 = vmatprep.subr.mxu0 0.0
  %1935 = vmatpush1.msra.mxu0 0.0
  %1936 = vmatprep.subr.mxu0 0.0
  %1937 = vmatpush1.msra.mxu0 0.0
  %1938 = vmatprep.subr.mxu0 0.0
  %1939 = vmatpush1.msra.mxu0 0.0
  %1940 = vmatprep.mubr.f32.mxu0 0.0
  %1941 = vmatmul.mubr.f32.gmra.mrb[0].mxu0 %v1627
  %v1942 = vpop.f32.mrb[0].mxu0
  %v1943 = vadd.f32 %v1565, %v1942
  %v1944 = vpop.f32.mrb[0].mxu0
  %v1945 = vadd.f32 %v1569, %v1944
  %1946 = vmatprep.mubr.f32.mxu0 0.0
  %1947 = vmatmul.mubr.f32.gmra.mrb[0].mxu0 %v1630
  %v1948 = vpop.f32.mrb[0].mxu0
  %v1949 = vadd.f32 %v1565, %v1948
  %v1950 = vpop.f32.mrb[0].mxu0
  %v1951 = vadd.f32 %v1569, %v1950
  %1952 = vmatprep.mubr.f32.mxu0 0.0
  %1953 = vmatmul.mubr.f32.gmra.mrb[0].mxu0 %v1633
  %v1954 = vpop.f32.mrb[0].mxu0
  %v1955 = vadd.f32 %v1565, %v1954
  %v1956 = vpop.f32.mrb[0].mxu0
  %v1957 = vadd.f32 %v1569, %v1956
  %1958 = vmatprep.mubr.f32.mxu0 0.0
  %1959 = vmatmul.mubr.f32.gmra.mrb[0].mxu0 %v1636
  %v1960 = vpop.f32.mrb[0].mxu0
  %v1961 = vadd.f32 %v1565, %v1960
  %v1962 = vpop.f32.mrb[0].mxu0
  %v1963 = vadd.f32 %v1569, %v1962
  %1964 = vmatprep.mubr.f32.mxu0 0.0
  %1965 = vmatmul.mubr.f32.gmra.mrb[0].mxu0 %v1639
  %v1966 = vpop.f32.mrb[0].mxu0
  %v1967 = vadd.f32 %v1565, %v1966
  %v1968 = vpop.f32.mrb[0].mxu0
  %v1969 = vadd.f32 %v1569, %v1968
  %1970 = vmatprep.mubr.f32.mxu0 0.0
  %1971 = vmatmul.mubr.f32.gmra.mrb[0].mxu0 %v1642
  %v1972 = vpop.f32.mrb[0].mxu0
  %v1973 = vadd.f32 %v1565, %v1972
  %v1974 = vpop.f32.mrb[0].mxu0
  %v1975 = vadd.f32 %v1569, %v1974
  %1976 = vmatprep.mubr.f32.mxu0 0.0
  %1977 = vmatmul.mubr.f32.gmra.mrb[0].mxu0 %v1645
  %v1978 = vpop.f32.mrb[0].mxu0
  %v1979 = vadd.f32 %v1565, %v1978
  %v1980 = vpop.f32.mrb[0].mxu0
  %v1981 = vadd.f32 %v1569, %v1980
  %1982 = vmatprep.mubr.f32.mxu0 0.0
  %1983 = vmatmul.mubr.f32.gmra.mrb[0].mxu0 %v1648
  %v1984 = vpop.f32.mrb[0].mxu0
  %v1985 = vadd.f32 %v1565, %v1984
  %v1986 = vpop.f32.mrb[0].mxu0
  %v1987 = vadd.f32 %v1569, %v1986
  %1988 = vdwg.mxu0
  %1989 = vmatprep.subr.mxu0 %v1485
  %1990 = vmatpush1.msra.mxu0 %v1484
  %1991 = vmatprep.subr.mxu0 %v1501
  %1992 = vmatpush1.msra.mxu0 %v1500
  %1993 = vmatprep.subr.mxu0 %v1517
  %1994 = vmatpush1.msra.mxu0 %v1516
  %1995 = vmatprep.subr.mxu0 %v1533
  %1996 = vmatpush1.msra.mxu0 %v1532
  %1997 = vmatprep.subr.mxu0 0.0
  %1998 = vmatpush1.msra.mxu0 0.0
  %1999 = vmatprep.subr.mxu0 0.0
  %2000 = vmatpush1.msra.mxu0 0.0
  %2001 = vmatprep.subr.mxu0 0.0
  %2002 = vmatpush1.msra.mxu0 0.0
  %2003 = vmatprep.subr.mxu0 0.0
  %2004 = vmatpush1.msra.mxu0 0.0
  %2005 = vmatprep.subr.mxu0 0.0
  %2006 = vmatpush1.msra.mxu0 0.0
  %2007 = vmatprep.subr.mxu0 0.0
  %2008 = vmatpush1.msra.mxu0 0.0
  %2009 = vmatprep.subr.mxu0 0.0
  %2010 = vmatpush1.msra.mxu0 0.0
  %2011 = vmatprep.subr.mxu0 0.0
  %2012 = vmatpush1.msra.mxu0 0.0
  %2013 = vmatprep.subr.mxu0 0.0
  %2014 = vmatpush1.msra.mxu0 0.0
  %2015 = vmatprep.subr.mxu0 0.0
  %2016 = vmatpush1.msra.mxu0 0.0
  %2017 = vmatprep.subr.mxu0 0.0
  %2018 = vmatpush1.msra.mxu0 0.0
  %2019 = vmatprep.subr.mxu0 0.0
  %2020 = vmatpush1.msra.mxu0 0.0
  %2021 = vmatprep.subr.mxu0 0.0
  %2022 = vmatpush1.msra.mxu0 0.0
  %2023 = vmatprep.subr.mxu0 0.0
  %2024 = vmatpush1.msra.mxu0 0.0
  %2025 = vmatprep.subr.mxu0 0.0
  %2026 = vmatpush1.msra.mxu0 0.0
  %2027 = vmatprep.subr.mxu0 0.0
  %2028 = vmatpush1.msra.mxu0 0.0
  %2029 = vmatprep.subr.mxu0 0.0
  %2030 = vmatpush1.msra.mxu0 0.0
  %2031 = vmatprep.subr.mxu0 0.0
  %2032 = vmatpush1.msra.mxu0 0.0
  %2033 = vmatprep.subr.mxu0 0.0
  %2034 = vmatpush1.msra.mxu0 0.0
  %2035 = vmatprep.subr.mxu0 0.0
  %2036 = vmatpush1.msra.mxu0 0.0
  %2037 = vmatprep.subr.mxu0 0.0
  %2038 = vmatpush1.msra.mxu0 0.0
  %2039 = vmatprep.subr.mxu0 0.0
  %2040 = vmatpush1.msra.mxu0 0.0
  %2041 = vmatprep.subr.mxu0 0.0
  %2042 = vmatpush1.msra.mxu0 0.0
  %2043 = vmatprep.subr.mxu0 0.0
  %2044 = vmatpush1.msra.mxu0 0.0
  %2045 = vmatprep.subr.mxu0 0.0
  %2046 = vmatpush1.msra.mxu0 0.0
  %2047 = vmatprep.subr.mxu0 0.0
  %2048 = vmatpush1.msra.mxu0 0.0
  %2049 = vmatprep.subr.mxu0 0.0
  %2050 = vmatpush1.msra.mxu0 0.0
  %2051 = vmatprep.subr.mxu0 0.0
  %2052 = vmatpush1.msra.mxu0 0.0
  %2053 = vmatprep.mubr.f32.mxu0 0.0
  %2054 = vmatmul.mubr.f32.gmra.mrb[0].mxu0 %v1627
  %v2055 = vpop.f32.mrb[0].mxu0
  %v2056 = vadd.f32 %v1573, %v2055
  %v2057 = vpop.f32.mrb[0].mxu0
  %v2058 = vadd.f32 %v1577, %v2057
  %2059 = vmatprep.mubr.f32.mxu0 0.0
  %2060 = vmatmul.mubr.f32.gmra.mrb[0].mxu0 %v1630
  %v2061 = vpop.f32.mrb[0].mxu0
  %v2062 = vadd.f32 %v1573, %v2061
  %v2063 = vpop.f32.mrb[0].mxu0
  %v2064 = vadd.f32 %v1577, %v2063
  %2065 = vmatprep.mubr.f32.mxu0 0.0
  %2066 = vmatmul.mubr.f32.gmra.mrb[0].mxu0 %v1633
  %v2067 = vpop.f32.mrb[0].mxu0
  %v2068 = vadd.f32 %v1573, %v2067
  %v2069 = vpop.f32.mrb[0].mxu0
  %v2070 = vadd.f32 %v1577, %v2069
  %2071 = vmatprep.mubr.f32.mxu0 0.0
  %2072 = vmatmul.mubr.f32.gmra.mrb[0].mxu0 %v1636
  %v2073 = vpop.f32.mrb[0].mxu0
  %v2074 = vadd.f32 %v1573, %v2073
  %v2075 = vpop.f32.mrb[0].mxu0
  %v2076 = vadd.f32 %v1577, %v2075
  %2077 = vmatprep.mubr.f32.mxu0 0.0
  %2078 = vmatmul.mubr.f32.gmra.mrb[0].mxu0 %v1639
  %v2079 = vpop.f32.mrb[0].mxu0
  %v2080 = vadd.f32 %v1573, %v2079
  %v2081 = vpop.f32.mrb[0].mxu0
  %v2082 = vadd.f32 %v1577, %v2081
  %2083 = vmatprep.mubr.f32.mxu0 0.0
  %2084 = vmatmul.mubr.f32.gmra.mrb[0].mxu0 %v1642
  %v2085 = vpop.f32.mrb[0].mxu0
  %v2086 = vadd.f32 %v1573, %v2085
  %v2087 = vpop.f32.mrb[0].mxu0
  %v2088 = vadd.f32 %v1577, %v2087
  %2089 = vmatprep.mubr.f32.mxu0 0.0
  %2090 = vmatmul.mubr.f32.gmra.mrb[0].mxu0 %v1645
  %v2091 = vpop.f32.mrb[0].mxu0
  %v2092 = vadd.f32 %v1573, %v2091
  %v2093 = vpop.f32.mrb[0].mxu0
  %v2094 = vadd.f32 %v1577, %v2093
  %2095 = vmatprep.mubr.f32.mxu0 0.0
  %2096 = vmatmul.mubr.f32.gmra.mrb[0].mxu0 %v1648
  %v2097 = vpop.f32.mrb[0].mxu0
  %v2098 = vadd.f32 %v1573, %v2097
  %v2099 = vpop.f32.mrb[0].mxu0
  %v2100 = vadd.f32 %v1577, %v2099
  %2101 = vdwg.mxu0
  %2102 = vmatprep.subr.mxu0 %v1487
  %2103 = vmatpush1.msra.mxu0 %v1486
  %2104 = vmatprep.subr.mxu0 %v1503
  %2105 = vmatpush1.msra.mxu0 %v1502
  %2106 = vmatprep.subr.mxu0 %v1519
  %2107 = vmatpush1.msra.mxu0 %v1518
  %2108 = vmatprep.subr.mxu0 %v1535
  %2109 = vmatpush1.msra.mxu0 %v1534
  %2110 = vmatprep.subr.mxu0 0.0
  %2111 = vmatpush1.msra.mxu0 0.0
  %2112 = vmatprep.subr.mxu0 0.0
  %2113 = vmatpush1.msra.mxu0 0.0
  %2114 = vmatprep.subr.mxu0 0.0
  %2115 = vmatpush1.msra.mxu0 0.0
  %2116 = vmatprep.subr.mxu0 0.0
  %2117 = vmatpush1.msra.mxu0 0.0
  %2118 = vmatprep.subr.mxu0 0.0
  %2119 = vmatpush1.msra.mxu0 0.0
  %2120 = vmatprep.subr.mxu0 0.0
  %2121 = vmatpush1.msra.mxu0 0.0
  %2122 = vmatprep.subr.mxu0 0.0
  %2123 = vmatpush1.msra.mxu0 0.0
  %2124 = vmatprep.subr.mxu0 0.0
  %2125 = vmatpush1.msra.mxu0 0.0
  %2126 = vmatprep.subr.mxu0 0.0
  %2127 = vmatpush1.msra.mxu0 0.0
  %2128 = vmatprep.subr.mxu0 0.0
  %2129 = vmatpush1.msra.mxu0 0.0
  %2130 = vmatprep.subr.mxu0 0.0
  %2131 = vmatpush1.msra.mxu0 0.0
  %2132 = vmatprep.subr.mxu0 0.0
  %2133 = vmatpush1.msra.mxu0 0.0
  %2134 = vmatprep.subr.mxu0 0.0
  %2135 = vmatpush1.msra.mxu0 0.0
  %2136 = vmatprep.subr.mxu0 0.0
  %2137 = vmatpush1.msra.mxu0 0.0
  %2138 = vmatprep.subr.mxu0 0.0
  %2139 = vmatpush1.msra.mxu0 0.0
  %2140 = vmatprep.subr.mxu0 0.0
  %2141 = vmatpush1.msra.mxu0 0.0
  %2142 = vmatprep.subr.mxu0 0.0
  %2143 = vmatpush1.msra.mxu0 0.0
  %2144 = vmatprep.subr.mxu0 0.0
  %2145 = vmatpush1.msra.mxu0 0.0
  %2146 = vmatprep.subr.mxu0 0.0
  %2147 = vmatpush1.msra.mxu0 0.0
  %2148 = vmatprep.subr.mxu0 0.0
  %2149 = vmatpush1.msra.mxu0 0.0
  %2150 = vmatprep.subr.mxu0 0.0
  %2151 = vmatpush1.msra.mxu0 0.0
  %2152 = vmatprep.subr.mxu0 0.0
  %2153 = vmatpush1.msra.mxu0 0.0
  %2154 = vmatprep.subr.mxu0 0.0
  %2155 = vmatpush1.msra.mxu0 0.0
  %2156 = vmatprep.subr.mxu0 0.0
  %2157 = vmatpush1.msra.mxu0 0.0
  %2158 = vmatprep.subr.mxu0 0.0
  %2159 = vmatpush1.msra.mxu0 0.0
  %2160 = vmatprep.subr.mxu0 0.0
  %2161 = vmatpush1.msra.mxu0 0.0
  %2162 = vmatprep.subr.mxu0 0.0
  %2163 = vmatpush1.msra.mxu0 0.0
  %2164 = vmatprep.subr.mxu0 0.0
  %2165 = vmatpush1.msra.mxu0 0.0
  %2166 = vmatprep.mubr.f32.mxu0 0.0
  %2167 = vmatmul.mubr.f32.gmra.mrb[0].mxu0 %v1627
  %v2168 = vpop.f32.mrb[0].mxu0
  %v2169 = vadd.f32 %v1581, %v2168
  %v2170 = vpop.f32.mrb[0].mxu0
  %v2171 = vadd.f32 %v1585, %v2170
  %2172 = vmatprep.mubr.f32.mxu0 0.0
  %2173 = vmatmul.mubr.f32.gmra.mrb[0].mxu0 %v1630
  %v2174 = vpop.f32.mrb[0].mxu0
  %v2175 = vadd.f32 %v1581, %v2174
  %v2176 = vpop.f32.mrb[0].mxu0
  %v2177 = vadd.f32 %v1585, %v2176
  %2178 = vmatprep.mubr.f32.mxu0 0.0
  %2179 = vmatmul.mubr.f32.gmra.mrb[0].mxu0 %v1633
  %v2180 = vpop.f32.mrb[0].mxu0
  %v2181 = vadd.f32 %v1581, %v2180
  %v2182 = vpop.f32.mrb[0].mxu0
  %v2183 = vadd.f32 %v1585, %v2182
  %2184 = vmatprep.mubr.f32.mxu0 0.0
  %2185 = vmatmul.mubr.f32.gmra.mrb[0].mxu0 %v1636
  %v2186 = vpop.f32.mrb[0].mxu0
  %v2187 = vadd.f32 %v1581, %v2186
  %v2188 = vpop.f32.mrb[0].mxu0
  %v2189 = vadd.f32 %v1585, %v2188
  %2190 = vmatprep.mubr.f32.mxu0 0.0
  %2191 = vmatmul.mubr.f32.gmra.mrb[0].mxu0 %v1639
  %v2192 = vpop.f32.mrb[0].mxu0
  %v2193 = vadd.f32 %v1581, %v2192
  %v2194 = vpop.f32.mrb[0].mxu0
  %v2195 = vadd.f32 %v1585, %v2194
  %2196 = vmatprep.mubr.f32.mxu0 0.0
  %2197 = vmatmul.mubr.f32.gmra.mrb[0].mxu0 %v1642
  %v2198 = vpop.f32.mrb[0].mxu0
  %v2199 = vadd.f32 %v1581, %v2198
  %v2200 = vpop.f32.mrb[0].mxu0
  %v2201 = vadd.f32 %v1585, %v2200
  %2202 = vmatprep.mubr.f32.mxu0 0.0
  %2203 = vmatmul.mubr.f32.gmra.mrb[0].mxu0 %v1645
  %v2204 = vpop.f32.mrb[0].mxu0
  %v2205 = vadd.f32 %v1581, %v2204
  %v2206 = vpop.f32.mrb[0].mxu0
  %v2207 = vadd.f32 %v1585, %v2206
  %2208 = vmatprep.mubr.f32.mxu0 0.0
  %2209 = vmatmul.mubr.f32.gmra.mrb[0].mxu0 %v1648
  %v2210 = vpop.f32.mrb[0].mxu0
  %v2211 = vadd.f32 %v1581, %v2210
  %v2212 = vpop.f32.mrb[0].mxu0
  %v2213 = vadd.f32 %v1585, %v2212
  %2214 = vdwg.mxu0
  %2215 = vmatprep.subr.mxu0 %v1489
  %2216 = vmatpush1.msra.mxu0 %v1488
  %2217 = vmatprep.subr.mxu0 %v1505
  %2218 = vmatpush1.msra.mxu0 %v1504
  %2219 = vmatprep.subr.mxu0 %v1521
  %2220 = vmatpush1.msra.mxu0 %v1520
  %2221 = vmatprep.subr.mxu0 %v1537
  %2222 = vmatpush1.msra.mxu0 %v1536
  %2223 = vmatprep.subr.mxu0 0.0
  %2224 = vmatpush1.msra.mxu0 0.0
  %2225 = vmatprep.subr.mxu0 0.0
  %2226 = vmatpush1.msra.mxu0 0.0
  %2227 = vmatprep.subr.mxu0 0.0
  %2228 = vmatpush1.msra.mxu0 0.0
  %2229 = vmatprep.subr.mxu0 0.0
  %2230 = vmatpush1.msra.mxu0 0.0
  %2231 = vmatprep.subr.mxu0 0.0
  %2232 = vmatpush1.msra.mxu0 0.0
  %2233 = vmatprep.subr.mxu0 0.0
  %2234 = vmatpush1.msra.mxu0 0.0
  %2235 = vmatprep.subr.mxu0 0.0
  %2236 = vmatpush1.msra.mxu0 0.0
  %2237 = vmatprep.subr.mxu0 0.0
  %2238 = vmatpush1.msra.mxu0 0.0
  %2239 = vmatprep.subr.mxu0 0.0
  %2240 = vmatpush1.msra.mxu0 0.0
  %2241 = vmatprep.subr.mxu0 0.0
  %2242 = vmatpush1.msra.mxu0 0.0
  %2243 = vmatprep.subr.mxu0 0.0
  %2244 = vmatpush1.msra.mxu0 0.0
  %2245 = vmatprep.subr.mxu0 0.0
  %2246 = vmatpush1.msra.mxu0 0.0
  %2247 = vmatprep.subr.mxu0 0.0
  %2248 = vmatpush1.msra.mxu0 0.0
  %2249 = vmatprep.subr.mxu0 0.0
  %2250 = vmatpush1.msra.mxu0 0.0
  %2251 = vmatprep.subr.mxu0 0.0
  %2252 = vmatpush1.msra.mxu0 0.0
  %2253 = vmatprep.subr.mxu0 0.0
  %2254 = vmatpush1.msra.mxu0 0.0
  %2255 = vmatprep.subr.mxu0 0.0
  %2256 = vmatpush1.msra.mxu0 0.0
  %2257 = vmatprep.subr.mxu0 0.0
  %2258 = vmatpush1.msra.mxu0 0.0
  %2259 = vmatprep.subr.mxu0 0.0
  %2260 = vmatpush1.msra.mxu0 0.0
  %2261 = vmatprep.subr.mxu0 0.0
  %2262 = vmatpush1.msra.mxu0 0.0
  %2263 = vmatprep.subr.mxu0 0.0
  %2264 = vmatpush1.msra.mxu0 0.0
  %2265 = vmatprep.subr.mxu0 0.0
  %2266 = vmatpush1.msra.mxu0 0.0
  %2267 = vmatprep.subr.mxu0 0.0
  %2268 = vmatpush1.msra.mxu0 0.0
  %2269 = vmatprep.subr.mxu0 0.0
  %2270 = vmatpush1.msra.mxu0 0.0
  %2271 = vmatprep.subr.mxu0 0.0
  %2272 = vmatpush1.msra.mxu0 0.0
  %2273 = vmatprep.subr.mxu0 0.0
  %2274 = vmatpush1.msra.mxu0 0.0
  %2275 = vmatprep.subr.mxu0 0.0
  %2276 = vmatpush1.msra.mxu0 0.0
  %2277 = vmatprep.subr.mxu0 0.0
  %2278 = vmatpush1.msra.mxu0 0.0
  %2279 = vmatprep.mubr.f32.mxu0 0.0
  %2280 = vmatmul.mubr.f32.gmra.mrb[0].mxu0 %v1627
  %v2281 = vpop.f32.mrb[0].mxu0
  %v2282 = vadd.f32 %v1589, %v2281
  %v2283 = vpop.f32.mrb[0].mxu0
  %v2284 = vadd.f32 %v1593, %v2283
  %2285 = vmatprep.mubr.f32.mxu0 0.0
  %2286 = vmatmul.mubr.f32.gmra.mrb[0].mxu0 %v1630
  %v2287 = vpop.f32.mrb[0].mxu0
  %v2288 = vadd.f32 %v1589, %v2287
  %v2289 = vpop.f32.mrb[0].mxu0
  %v2290 = vadd.f32 %v1593, %v2289
  %2291 = vmatprep.mubr.f32.mxu0 0.0
  %2292 = vmatmul.mubr.f32.gmra.mrb[0].mxu0 %v1633
  %v2293 = vpop.f32.mrb[0].mxu0
  %v2294 = vadd.f32 %v1589, %v2293
  %v2295 = vpop.f32.mrb[0].mxu0
  %v2296 = vadd.f32 %v1593, %v2295
  %2297 = vmatprep.mubr.f32.mxu0 0.0
  %2298 = vmatmul.mubr.f32.gmra.mrb[0].mxu0 %v1636
  %v2299 = vpop.f32.mrb[0].mxu0
  %v2300 = vadd.f32 %v1589, %v2299
  %v2301 = vpop.f32.mrb[0].mxu0
  %v2302 = vadd.f32 %v1593, %v2301
  %2303 = vmatprep.mubr.f32.mxu0 0.0
  %2304 = vmatmul.mubr.f32.gmra.mrb[0].mxu0 %v1639
  %v2305 = vpop.f32.mrb[0].mxu0
  %v2306 = vadd.f32 %v1589, %v2305
  %v2307 = vpop.f32.mrb[0].mxu0
  %v2308 = vadd.f32 %v1593, %v2307
  %2309 = vmatprep.mubr.f32.mxu0 0.0
  %2310 = vmatmul.mubr.f32.gmra.mrb[0].mxu0 %v1642
  %v2311 = vpop.f32.mrb[0].mxu0
  %v2312 = vadd.f32 %v1589, %v2311
  %v2313 = vpop.f32.mrb[0].mxu0
  %v2314 = vadd.f32 %v1593, %v2313
  %2315 = vmatprep.mubr.f32.mxu0 0.0
  %2316 = vmatmul.mubr.f32.gmra.mrb[0].mxu0 %v1645
  %v2317 = vpop.f32.mrb[0].mxu0
  %v2318 = vadd.f32 %v1589, %v2317
  %v2319 = vpop.f32.mrb[0].mxu0
  %v2320 = vadd.f32 %v1593, %v2319
  %2321 = vmatprep.mubr.f32.mxu0 0.0
  %2322 = vmatmul.mubr.f32.gmra.mrb[0].mxu0 %v1648
  %v2323 = vpop.f32.mrb[0].mxu0
  %v2324 = vadd.f32 %v1589, %v2323
  %v2325 = vpop.f32.mrb[0].mxu0
  %v2326 = vadd.f32 %v1593, %v2325
  %2327 = vdwg.mxu0
  %2328 = vmatprep.subr.mxu0 %v1491
  %2329 = vmatpush1.msra.mxu0 %v1490
  %2330 = vmatprep.subr.mxu0 %v1507
  %2331 = vmatpush1.msra.mxu0 %v1506
  %2332 = vmatprep.subr.mxu0 %v1523
  %2333 = vmatpush1.msra.mxu0 %v1522
  %2334 = vmatprep.subr.mxu0 %v1539
  %2335 = vmatpush1.msra.mxu0 %v1538
  %2336 = vmatprep.subr.mxu0 0.0
  %2337 = vmatpush1.msra.mxu0 0.0
  %2338 = vmatprep.subr.mxu0 0.0
  %2339 = vmatpush1.msra.mxu0 0.0
  %2340 = vmatprep.subr.mxu0 0.0
  %2341 = vmatpush1.msra.mxu0 0.0
  %2342 = vmatprep.subr.mxu0 0.0
  %2343 = vmatpush1.msra.mxu0 0.0
  %2344 = vmatprep.subr.mxu0 0.0
  %2345 = vmatpush1.msra.mxu0 0.0
  %2346 = vmatprep.subr.mxu0 0.0
  %2347 = vmatpush1.msra.mxu0 0.0
  %2348 = vmatprep.subr.mxu0 0.0
  %2349 = vmatpush1.msra.mxu0 0.0
  %2350 = vmatprep.subr.mxu0 0.0
  %2351 = vmatpush1.msra.mxu0 0.0
  %2352 = vmatprep.subr.mxu0 0.0
  %2353 = vmatpush1.msra.mxu0 0.0
  %2354 = vmatprep.subr.mxu0 0.0
  %2355 = vmatpush1.msra.mxu0 0.0
  %2356 = vmatprep.subr.mxu0 0.0
  %2357 = vmatpush1.msra.mxu0 0.0
  %2358 = vmatprep.subr.mxu0 0.0
  %2359 = vmatpush1.msra.mxu0 0.0
  %2360 = vmatprep.subr.mxu0 0.0
  %2361 = vmatpush1.msra.mxu0 0.0
  %2362 = vmatprep.subr.mxu0 0.0
  %2363 = vmatpush1.msra.mxu0 0.0
  %2364 = vmatprep.subr.mxu0 0.0
  %2365 = vmatpush1.msra.mxu0 0.0
  %2366 = vmatprep.subr.mxu0 0.0
  %2367 = vmatpush1.msra.mxu0 0.0
  %2368 = vmatprep.subr.mxu0 0.0
  %2369 = vmatpush1.msra.mxu0 0.0
  %2370 = vmatprep.subr.mxu0 0.0
  %2371 = vmatpush1.msra.mxu0 0.0
  %2372 = vmatprep.subr.mxu0 0.0
  %2373 = vmatpush1.msra.mxu0 0.0
  %2374 = vmatprep.subr.mxu0 0.0
  %2375 = vmatpush1.msra.mxu0 0.0
  %2376 = vmatprep.subr.mxu0 0.0
  %2377 = vmatpush1.msra.mxu0 0.0
  %2378 = vmatprep.subr.mxu0 0.0
  %2379 = vmatpush1.msra.mxu0 0.0
  %2380 = vmatprep.subr.mxu0 0.0
  %2381 = vmatpush1.msra.mxu0 0.0
  %2382 = vmatprep.subr.mxu0 0.0
  %2383 = vmatpush1.msra.mxu0 0.0
  %2384 = vmatprep.subr.mxu0 0.0
  %2385 = vmatpush1.msra.mxu0 0.0
  %2386 = vmatprep.subr.mxu0 0.0
  %2387 = vmatpush1.msra.mxu0 0.0
  %2388 = vmatprep.subr.mxu0 0.0
  %2389 = vmatpush1.msra.mxu0 0.0
  %2390 = vmatprep.subr.mxu0 0.0
  %2391 = vmatpush1.msra.mxu0 0.0
  %2392 = vmatprep.mubr.f32.mxu0 0.0
  %2393 = vmatmul.mubr.f32.gmra.mrb[0].mxu0 %v1627
  %v2394 = vpop.f32.mrb[0].mxu0
  %v2395 = vadd.f32 %v1597, %v2394
  %v2396 = vpop.f32.mrb[0].mxu0
  %v2397 = vadd.f32 %v1601, %v2396
  %2398 = vmatprep.mubr.f32.mxu0 0.0
  %2399 = vmatmul.mubr.f32.gmra.mrb[0].mxu0 %v1630
  %v2400 = vpop.f32.mrb[0].mxu0
  %v2401 = vadd.f32 %v1597, %v2400
  %v2402 = vpop.f32.mrb[0].mxu0
  %v2403 = vadd.f32 %v1601, %v2402
  %2404 = vmatprep.mubr.f32.mxu0 0.0
  %2405 = vmatmul.mubr.f32.gmra.mrb[0].mxu0 %v1633
  %v2406 = vpop.f32.mrb[0].mxu0
  %v2407 = vadd.f32 %v1597, %v2406
  %v2408 = vpop.f32.mrb[0].mxu0
  %v2409 = vadd.f32 %v1601, %v2408
  %2410 = vmatprep.mubr.f32.mxu0 0.0
  %2411 = vmatmul.mubr.f32.gmra.mrb[0].mxu0 %v1636
  %v2412 = vpop.f32.mrb[0].mxu0
  %v2413 = vadd.f32 %v1597, %v2412
  %v2414 = vpop.f32.mrb[0].mxu0
  %v2415 = vadd.f32 %v1601, %v2414
  %2416 = vmatprep.mubr.f32.mxu0 0.0
  %2417 = vmatmul.mubr.f32.gmra.mrb[0].mxu0 %v1639
  %v2418 = vpop.f32.mrb[0].mxu0
  %v2419 = vadd.f32 %v1597, %v2418
  %v2420 = vpop.f32.mrb[0].mxu0
  %v2421 = vadd.f32 %v1601, %v2420
  %2422 = vmatprep.mubr.f32.mxu0 0.0
  %2423 = vmatmul.mubr.f32.gmra.mrb[0].mxu0 %v1642
  %v2424 = vpop.f32.mrb[0].mxu0
  %v2425 = vadd.f32 %v1597, %v2424
  %v2426 = vpop.f32.mrb[0].mxu0
  %v2427 = vadd.f32 %v1601, %v2426
  %2428 = vmatprep.mubr.f32.mxu0 0.0
  %2429 = vmatmul.mubr.f32.gmra.mrb[0].mxu0 %v1645
  %v2430 = vpop.f32.mrb[0].mxu0
  %v2431 = vadd.f32 %v1597, %v2430
  %v2432 = vpop.f32.mrb[0].mxu0
  %v2433 = vadd.f32 %v1601, %v2432
  %2434 = vmatprep.mubr.f32.mxu0 0.0
  %2435 = vmatmul.mubr.f32.gmra.mrb[0].mxu0 %v1648
  %v2436 = vpop.f32.mrb[0].mxu0
  %v2437 = vadd.f32 %v1597, %v2436
  %v2438 = vpop.f32.mrb[0].mxu0
  %v2439 = vadd.f32 %v1601, %v2438
  %2440 = vdwg.mxu0
  %2441 = vmatprep.subr.mxu0 %v1493
  %2442 = vmatpush1.msra.mxu0 %v1492
  %2443 = vmatprep.subr.mxu0 %v1509
  %2444 = vmatpush1.msra.mxu0 %v1508
  %2445 = vmatprep.subr.mxu0 %v1525
  %2446 = vmatpush1.msra.mxu0 %v1524
  %2447 = vmatprep.subr.mxu0 %v1541
  %2448 = vmatpush1.msra.mxu0 %v1540
  %2449 = vmatprep.subr.mxu0 0.0
  %2450 = vmatpush1.msra.mxu0 0.0
  %2451 = vmatprep.subr.mxu0 0.0
  %2452 = vmatpush1.msra.mxu0 0.0
  %2453 = vmatprep.subr.mxu0 0.0
  %2454 = vmatpush1.msra.mxu0 0.0
  %2455 = vmatprep.subr.mxu0 0.0
  %2456 = vmatpush1.msra.mxu0 0.0
  %2457 = vmatprep.subr.mxu0 0.0
  %2458 = vmatpush1.msra.mxu0 0.0
  %2459 = vmatprep.subr.mxu0 0.0
  %2460 = vmatpush1.msra.mxu0 0.0
  %2461 = vmatprep.subr.mxu0 0.0
  %2462 = vmatpush1.msra.mxu0 0.0
  %2463 = vmatprep.subr.mxu0 0.0
  %2464 = vmatpush1.msra.mxu0 0.0
  %2465 = vmatprep.subr.mxu0 0.0
  %2466 = vmatpush1.msra.mxu0 0.0
  %2467 = vmatprep.subr.mxu0 0.0
  %2468 = vmatpush1.msra.mxu0 0.0
  %2469 = vmatprep.subr.mxu0 0.0
  %2470 = vmatpush1.msra.mxu0 0.0
  %2471 = vmatprep.subr.mxu0 0.0
  %2472 = vmatpush1.msra.mxu0 0.0
  %2473 = vmatprep.subr.mxu0 0.0
  %2474 = vmatpush1.msra.mxu0 0.0
  %2475 = vmatprep.subr.mxu0 0.0
  %2476 = vmatpush1.msra.mxu0 0.0
  %2477 = vmatprep.subr.mxu0 0.0
  %2478 = vmatpush1.msra.mxu0 0.0
  %2479 = vmatprep.subr.mxu0 0.0
  %2480 = vmatpush1.msra.mxu0 0.0
  %2481 = vmatprep.subr.mxu0 0.0
  %2482 = vmatpush1.msra.mxu0 0.0
  %2483 = vmatprep.subr.mxu0 0.0
  %2484 = vmatpush1.msra.mxu0 0.0
  %2485 = vmatprep.subr.mxu0 0.0
  %2486 = vmatpush1.msra.mxu0 0.0
  %2487 = vmatprep.subr.mxu0 0.0
  %2488 = vmatpush1.msra.mxu0 0.0
  %2489 = vmatprep.subr.mxu0 0.0
  %2490 = vmatpush1.msra.mxu0 0.0
  %2491 = vmatprep.subr.mxu0 0.0
  %2492 = vmatpush1.msra.mxu0 0.0
  %2493 = vmatprep.subr.mxu0 0.0
  %2494 = vmatpush1.msra.mxu0 0.0
  %2495 = vmatprep.subr.mxu0 0.0
  %2496 = vmatpush1.msra.mxu0 0.0
  %2497 = vmatprep.subr.mxu0 0.0
  %2498 = vmatpush1.msra.mxu0 0.0
  %2499 = vmatprep.subr.mxu0 0.0
  %2500 = vmatpush1.msra.mxu0 0.0
  %2501 = vmatprep.subr.mxu0 0.0
  %2502 = vmatpush1.msra.mxu0 0.0
  %2503 = vmatprep.subr.mxu0 0.0
  %2504 = vmatpush1.msra.mxu0 0.0
  %2505 = vmatprep.mubr.f32.mxu0 0.0
  %2506 = vmatmul.mubr.f32.gmra.mrb[0].mxu0 %v1627
  %v2507 = vpop.f32.mrb[0].mxu0
  %v2508 = vadd.f32 %v1605, %v2507
  %v2509 = vpop.f32.mrb[0].mxu0
  %v2510 = vadd.f32 %v1609, %v2509
  %2511 = vmatprep.mubr.f32.mxu0 0.0
  %2512 = vmatmul.mubr.f32.gmra.mrb[0].mxu0 %v1630
  %v2513 = vpop.f32.mrb[0].mxu0
  %v2514 = vadd.f32 %v1605, %v2513
  %v2515 = vpop.f32.mrb[0].mxu0
  %v2516 = vadd.f32 %v1609, %v2515
  %2517 = vmatprep.mubr.f32.mxu0 0.0
  %2518 = vmatmul.mubr.f32.gmra.mrb[0].mxu0 %v1633
  %v2519 = vpop.f32.mrb[0].mxu0
  %v2520 = vadd.f32 %v1605, %v2519
  %v2521 = vpop.f32.mrb[0].mxu0
  %v2522 = vadd.f32 %v1609, %v2521
  %2523 = vmatprep.mubr.f32.mxu0 0.0
  %2524 = vmatmul.mubr.f32.gmra.mrb[0].mxu0 %v1636
  %v2525 = vpop.f32.mrb[0].mxu0
  %v2526 = vadd.f32 %v1605, %v2525
  %v2527 = vpop.f32.mrb[0].mxu0
  %v2528 = vadd.f32 %v1609, %v2527
  %2529 = vmatprep.mubr.f32.mxu0 0.0
  %2530 = vmatmul.mubr.f32.gmra.mrb[0].mxu0 %v1639
  %v2531 = vpop.f32.mrb[0].mxu0
  %v2532 = vadd.f32 %v1605, %v2531
  %v2533 = vpop.f32.mrb[0].mxu0
  %v2534 = vadd.f32 %v1609, %v2533
  %2535 = vmatprep.mubr.f32.mxu0 0.0
  %2536 = vmatmul.mubr.f32.gmra.mrb[0].mxu0 %v1642
  %v2537 = vpop.f32.mrb[0].mxu0
  %v2538 = vadd.f32 %v1605, %v2537
  %v2539 = vpop.f32.mrb[0].mxu0
  %v2540 = vadd.f32 %v1609, %v2539
  %2541 = vmatprep.mubr.f32.mxu0 0.0
  %2542 = vmatmul.mubr.f32.gmra.mrb[0].mxu0 %v1645
  %v2543 = vpop.f32.mrb[0].mxu0
  %v2544 = vadd.f32 %v1605, %v2543
  %v2545 = vpop.f32.mrb[0].mxu0
  %v2546 = vadd.f32 %v1609, %v2545
  %2547 = vmatprep.mubr.f32.mxu0 0.0
  %2548 = vmatmul.mubr.f32.gmra.mrb[0].mxu0 %v1648
  %v2549 = vpop.f32.mrb[0].mxu0
  %v2550 = vadd.f32 %v1605, %v2549
  %v2551 = vpop.f32.mrb[0].mxu0
  %v2552 = vadd.f32 %v1609, %v2551
  %2553 = vdwg.mxu0
  %v2554 = vmax.f32 %v1717, 0.0
  %v2555 = vmax.f32 %v1719, 0.0
  %v2556 = vmax.f32 %v1830, 0.0
  %v2557 = vmax.f32 %v1832, 0.0
  %v2558 = vmax.f32 %v1943, 0.0
  %v2559 = vmax.f32 %v1945, 0.0
  %v2560 = vmax.f32 %v2056, 0.0
  %v2561 = vmax.f32 %v2058, 0.0
  %v2562 = vmax.f32 %v2169, 0.0
  %v2563 = vmax.f32 %v2171, 0.0
  %v2564 = vmax.f32 %v2282, 0.0
  %v2565 = vmax.f32 %v2284, 0.0
  %v2566 = vmax.f32 %v2395, 0.0
  %v2567 = vmax.f32 %v2397, 0.0
  %v2568 = vmax.f32 %v2508, 0.0
  %v2569 = vmax.f32 %v2510, 0.0
  %v2570 = vmax.f32 %v1723, 0.0
  %v2571 = vmax.f32 %v1725, 0.0
  %v2572 = vmax.f32 %v1836, 0.0
  %v2573 = vmax.f32 %v1838, 0.0
  %v2574 = vmax.f32 %v1949, 0.0
  %v2575 = vmax.f32 %v1951, 0.0
  %v2576 = vmax.f32 %v2062, 0.0
  %v2577 = vmax.f32 %v2064, 0.0
  %v2578 = vmax.f32 %v2175, 0.0
  %v2579 = vmax.f32 %v2177, 0.0
  %v2580 = vmax.f32 %v2288, 0.0
  %v2581 = vmax.f32 %v2290, 0.0
  %v2582 = vmax.f32 %v2401, 0.0
  %v2583 = vmax.f32 %v2403, 0.0
  %v2584 = vmax.f32 %v2514, 0.0
  %v2585 = vmax.f32 %v2516, 0.0
  %v2586 = vmax.f32 %v1729, 0.0
  %v2587 = vmax.f32 %v1731, 0.0
  %v2588 = vmax.f32 %v1842, 0.0
  %v2589 = vmax.f32 %v1844, 0.0
  %v2590 = vmax.f32 %v1955, 0.0
  %v2591 = vmax.f32 %v1957, 0.0
  %v2592 = vmax.f32 %v2068, 0.0
  %v2593 = vmax.f32 %v2070, 0.0
  %v2594 = vmax.f32 %v2181, 0.0
  %v2595 = vmax.f32 %v2183, 0.0
  %v2596 = vmax.f32 %v2294, 0.0
  %v2597 = vmax.f32 %v2296, 0.0
  %v2598 = vmax.f32 %v2407, 0.0
  %v2599 = vmax.f32 %v2409, 0.0
  %v2600 = vmax.f32 %v2520, 0.0
  %v2601 = vmax.f32 %v2522, 0.0
  %v2602 = vmax.f32 %v1735, 0.0
  %v2603 = vmax.f32 %v1737, 0.0
  %v2604 = vmax.f32 %v1848, 0.0
  %v2605 = vmax.f32 %v1850, 0.0
  %v2606 = vmax.f32 %v1961, 0.0
  %v2607 = vmax.f32 %v1963, 0.0
  %v2608 = vmax.f32 %v2074, 0.0
  %v2609 = vmax.f32 %v2076, 0.0
  %v2610 = vmax.f32 %v2187, 0.0
  %v2611 = vmax.f32 %v2189, 0.0
  %v2612 = vmax.f32 %v2300, 0.0
  %v2613 = vmax.f32 %v2302, 0.0
  %v2614 = vmax.f32 %v2413, 0.0
  %v2615 = vmax.f32 %v2415, 0.0
  %v2616 = vmax.f32 %v2526, 0.0
  %v2617 = vmax.f32 %v2528, 0.0
  %v2618 = vmax.f32 %v1741, 0.0
  %v2619 = vmax.f32 %v1743, 0.0
  %v2620 = vmax.f32 %v1854, 0.0
  %v2621 = vmax.f32 %v1856, 0.0
  %v2622 = vmax.f32 %v1967, 0.0
  %v2623 = vmax.f32 %v1969, 0.0
  %v2624 = vmax.f32 %v2080, 0.0
  %v2625 = vmax.f32 %v2082, 0.0
  %v2626 = vmax.f32 %v2193, 0.0
  %v2627 = vmax.f32 %v2195, 0.0
  %v2628 = vmax.f32 %v2306, 0.0
  %v2629 = vmax.f32 %v2308, 0.0
  %v2630 = vmax.f32 %v2419, 0.0
  %v2631 = vmax.f32 %v2421, 0.0
  %v2632 = vmax.f32 %v2532, 0.0
  %v2633 = vmax.f32 %v2534, 0.0
  %v2634 = vmax.f32 %v1747, 0.0
  %v2635 = vmax.f32 %v1749, 0.0
  %v2636 = vmax.f32 %v1860, 0.0
  %v2637 = vmax.f32 %v1862, 0.0
  %v2638 = vmax.f32 %v1973, 0.0
  %v2639 = vmax.f32 %v1975, 0.0
  %v2640 = vmax.f32 %v2086, 0.0
  %v2641 = vmax.f32 %v2088, 0.0
  %v2642 = vmax.f32 %v2199, 0.0
  %v2643 = vmax.f32 %v2201, 0.0
  %v2644 = vmax.f32 %v2312, 0.0
  %v2645 = vmax.f32 %v2314, 0.0
  %v2646 = vmax.f32 %v2425, 0.0
  %v2647 = vmax.f32 %v2427, 0.0
  %v2648 = vmax.f32 %v2538, 0.0
  %v2649 = vmax.f32 %v2540, 0.0
  %v2650 = vmax.f32 %v1753, 0.0
  %v2651 = vmax.f32 %v1755, 0.0
  %v2652 = vmax.f32 %v1866, 0.0
  %v2653 = vmax.f32 %v1868, 0.0
  %v2654 = vmax.f32 %v1979, 0.0
  %v2655 = vmax.f32 %v1981, 0.0
  %v2656 = vmax.f32 %v2092, 0.0
  %v2657 = vmax.f32 %v2094, 0.0
  %v2658 = vmax.f32 %v2205, 0.0
  %v2659 = vmax.f32 %v2207, 0.0
  %v2660 = vmax.f32 %v2318, 0.0
  %v2661 = vmax.f32 %v2320, 0.0
  %v2662 = vmax.f32 %v2431, 0.0
  %v2663 = vmax.f32 %v2433, 0.0
  %v2664 = vmax.f32 %v2544, 0.0
  %v2665 = vmax.f32 %v2546, 0.0
  %v2666 = vmax.f32 %v1759, 0.0
  %v2667 = vmax.f32 %v1761, 0.0
  %v2668 = vmax.f32 %v1872, 0.0
  %v2669 = vmax.f32 %v1874, 0.0
  %v2670 = vmax.f32 %v1985, 0.0
  %v2671 = vmax.f32 %v1987, 0.0
  %v2672 = vmax.f32 %v2098, 0.0
  %v2673 = vmax.f32 %v2100, 0.0
  %v2674 = vmax.f32 %v2211, 0.0
  %v2675 = vmax.f32 %v2213, 0.0
  %v2676 = vmax.f32 %v2324, 0.0
  %v2677 = vmax.f32 %v2326, 0.0
  %v2678 = vmax.f32 %v2437, 0.0
  %v2679 = vmax.f32 %v2439, 0.0
  %v2680 = vmax.f32 %v2550, 0.0
  %v2681 = vmax.f32 %v2552, 0.0
  %v2682 = vld [vmem:[%s10] sm:$0xff]
  %v2683 = vld [vmem:[%s10 + $0x8] sm:$0xff]
  %v2684 = vld [vmem:[%s10 + $0x10] sm:$0xff]
  %v2685 = vld [vmem:[%s10 + $0x18] sm:$0xff]
  %v2686 = vld [vmem:[%s10 + $0x20] sm:$0xff]
  %v2687 = vld [vmem:[%s10 + $0x28] sm:$0xff]
  %v2688 = vld [vmem:[%s10 + $0x30] sm:$0xff]
  %v2689 = vld [vmem:[%s10 + $0x38] sm:$0xff]
  %v2690 = vld [vmem:[%s10 + $0x40] sm:$0xff]
  %v2691 = vld [vmem:[%s10 + $0x48] sm:$0xff]
  %v2692 = vld [vmem:[%s10 + $0x50] sm:$0xff]
  %v2693 = vld [vmem:[%s10 + $0x58] sm:$0xff]
  %v2694 = vld [vmem:[%s10 + $0x60] sm:$0xff]
  %v2695 = vld [vmem:[%s10 + $0x68] sm:$0xff]
  %v2696 = vld [vmem:[%s10 + $0x70] sm:$0xff]
  %v2697 = vld [vmem:[%s10 + $0x78] sm:$0xff]
  %v2698 = vld [vmem:[%s10 + $0x80] sm:$0xff]
  %v2699 = vld [vmem:[%s10 + $0x88] sm:$0xff]
  %v2700 = vld [vmem:[%s10 + $0x90] sm:$0xff]
  %v2701 = vld [vmem:[%s10 + $0x98] sm:$0xff]
  %v2702 = vld [vmem:[%s10 + $0xa0] sm:$0xff]
  %v2703 = vld [vmem:[%s10 + $0xa8] sm:$0xff]
  %v2704 = vld [vmem:[%s10 + $0xb0] sm:$0xff]
  %v2705 = vld [vmem:[%s10 + $0xb8] sm:$0xff]
  %v2706 = vld [vmem:[%s10 + $0xc0] sm:$0xff]
  %v2707 = vld [vmem:[%s10 + $0xc8] sm:$0xff]
  %v2708 = vld [vmem:[%s10 + $0xd0] sm:$0xff]
  %v2709 = vld [vmem:[%s10 + $0xd8] sm:$0xff]
  %v2710 = vld [vmem:[%s10 + $0xe0] sm:$0xff]
  %v2711 = vld [vmem:[%s10 + $0xe8] sm:$0xff]
  %v2712 = vld [vmem:[%s10 + $0xf0] sm:$0xff]
  %v2713 = vld [vmem:[%s10 + $0xf8] sm:$0xff]
  %v2714 = vld [vmem:[%s10 + $0x100] sm:$0xff]
  %v2715 = vld [vmem:[%s10 + $0x108] sm:$0xff]
  %v2716 = vld [vmem:[%s10 + $0x110] sm:$0xff]
  %v2717 = vld [vmem:[%s10 + $0x118] sm:$0xff]
  %v2718 = vld [vmem:[%s10 + $0x120] sm:$0xff]
  %v2719 = vld [vmem:[%s10 + $0x128] sm:$0xff]
  %v2720 = vld [vmem:[%s10 + $0x130] sm:$0xff]
  %v2721 = vld [vmem:[%s10 + $0x138] sm:$0xff]
  %v2722 = vld [vmem:[%s10 + $0x140] sm:$0xff]
  %v2723 = vld [vmem:[%s10 + $0x148] sm:$0xff]
  %v2724 = vld [vmem:[%s10 + $0x150] sm:$0xff]
  %v2725 = vld [vmem:[%s10 + $0x158] sm:$0xff]
  %v2726 = vld [vmem:[%s10 + $0x160] sm:$0xff]
  %v2727 = vld [vmem:[%s10 + $0x168] sm:$0xff]
  %v2728 = vld [vmem:[%s10 + $0x170] sm:$0xff]
  %v2729 = vld [vmem:[%s10 + $0x178] sm:$0xff]
  %v2730 = vld [vmem:[%s10 + $0x180] sm:$0xff]
  %v2731 = vld [vmem:[%s10 + $0x188] sm:$0xff]
  %v2732 = vld [vmem:[%s10 + $0x190] sm:$0xff]
  %v2733 = vld [vmem:[%s10 + $0x198] sm:$0xff]
  %v2734 = vld [vmem:[%s10 + $0x1a0] sm:$0xff]
  %v2735 = vld [vmem:[%s10 + $0x1a8] sm:$0xff]
  %v2736 = vld [vmem:[%s10 + $0x1b0] sm:$0xff]
  %v2737 = vld [vmem:[%s10 + $0x1b8] sm:$0xff]
  %v2738 = vld [vmem:[%s10 + $0x1c0] sm:$0xff]
  %v2739 = vld [vmem:[%s10 + $0x1c8] sm:$0xff]
  %v2740 = vld [vmem:[%s10 + $0x1d0] sm:$0xff]
  %v2741 = vld [vmem:[%s10 + $0x1d8] sm:$0xff]
  %v2742 = vld [vmem:[%s10 + $0x1e0] sm:$0xff]
  %v2743 = vld [vmem:[%s10 + $0x1e8] sm:$0xff]
  %v2744 = vld [vmem:[%s10 + $0x1f0] sm:$0xff]
  %v2745 = vld [vmem:[%s10 + $0x1f8] sm:$0xff]
  %v2746 = vld [vmem:[%s10 + $0x200] sm:$0xff]
  %v2747 = vld [vmem:[%s10 + $0x208] sm:$0xff]
  %v2748 = vld [vmem:[%s10 + $0x210] sm:$0xff]
  %v2749 = vld [vmem:[%s10 + $0x218] sm:$0xff]
  %v2750 = vld [vmem:[%s10 + $0x220] sm:$0xff]
  %v2751 = vld [vmem:[%s10 + $0x228] sm:$0xff]
  %v2752 = vld [vmem:[%s10 + $0x230] sm:$0xff]
  %v2753 = vld [vmem:[%s10 + $0x238] sm:$0xff]
  %v2754 = vld [vmem:[%s10 + $0x240] sm:$0xff]
  %v2755 = vld [vmem:[%s10 + $0x248] sm:$0xff]
  %v2756 = vld [vmem:[%s10 + $0x250] sm:$0xff]
  %v2757 = vld [vmem:[%s10 + $0x258] sm:$0xff]
  %v2758 = vld [vmem:[%s10 + $0x260] sm:$0xff]
  %v2759 = vld [vmem:[%s10 + $0x268] sm:$0xff]
  %v2760 = vld [vmem:[%s10 + $0x270] sm:$0xff]
  %v2761 = vld [vmem:[%s10 + $0x278] sm:$0xff]
  %v2762 = vld [vmem:[%s10 + $0x280] sm:$0xff]
  %v2763 = vld [vmem:[%s10 + $0x288] sm:$0xff]
  %v2764 = vld [vmem:[%s10 + $0x290] sm:$0xff]
  %v2765 = vld [vmem:[%s10 + $0x298] sm:$0xff]
  %v2766 = vld [vmem:[%s10 + $0x2a0] sm:$0xff]
  %v2767 = vld [vmem:[%s10 + $0x2a8] sm:$0xff]
  %v2768 = vld [vmem:[%s10 + $0x2b0] sm:$0xff]
  %v2769 = vld [vmem:[%s10 + $0x2b8] sm:$0xff]
  %v2770 = vld [vmem:[%s10 + $0x2c0] sm:$0xff]
  %v2771 = vld [vmem:[%s10 + $0x2c8] sm:$0xff]
  %v2772 = vld [vmem:[%s10 + $0x2d0] sm:$0xff]
  %v2773 = vld [vmem:[%s10 + $0x2d8] sm:$0xff]
  %v2774 = vld [vmem:[%s10 + $0x2e0] sm:$0xff]
  %v2775 = vld [vmem:[%s10 + $0x2e8] sm:$0xff]
  %v2776 = vld [vmem:[%s10 + $0x2f0] sm:$0xff]
  %v2777 = vld [vmem:[%s10 + $0x2f8] sm:$0xff]
  %v2778 = vld [vmem:[%s10 + $0x300] sm:$0xff]
  %v2779 = vld [vmem:[%s10 + $0x308] sm:$0xff]
  %v2780 = vld [vmem:[%s10 + $0x310] sm:$0xff]
  %v2781 = vld [vmem:[%s10 + $0x318] sm:$0xff]
  %v2782 = vld [vmem:[%s10 + $0x320] sm:$0xff]
  %v2783 = vld [vmem:[%s10 + $0x328] sm:$0xff]
  %v2784 = vld [vmem:[%s10 + $0x330] sm:$0xff]
  %v2785 = vld [vmem:[%s10 + $0x338] sm:$0xff]
  %v2786 = vld [vmem:[%s10 + $0x340] sm:$0xff]
  %v2787 = vld [vmem:[%s10 + $0x348] sm:$0xff]
  %v2788 = vld [vmem:[%s10 + $0x350] sm:$0xff]
  %v2789 = vld [vmem:[%s10 + $0x358] sm:$0xff]
  %v2790 = vld [vmem:[%s10 + $0x360] sm:$0xff]
  %v2791 = vld [vmem:[%s10 + $0x368] sm:$0xff]
  %v2792 = vld [vmem:[%s10 + $0x370] sm:$0xff]
  %v2793 = vld [vmem:[%s10 + $0x378] sm:$0xff]
  %v2794 = vld [vmem:[%s10 + $0x380] sm:$0xff]
  %v2795 = vld [vmem:[%s10 + $0x388] sm:$0xff]
  %v2796 = vld [vmem:[%s10 + $0x390] sm:$0xff]
  %v2797 = vld [vmem:[%s10 + $0x398] sm:$0xff]
  %v2798 = vld [vmem:[%s10 + $0x3a0] sm:$0xff]
  %v2799 = vld [vmem:[%s10 + $0x3a8] sm:$0xff]
  %v2800 = vld [vmem:[%s10 + $0x3b0] sm:$0xff]
  %v2801 = vld [vmem:[%s10 + $0x3b8] sm:$0xff]
  %v2802 = vld [vmem:[%s10 + $0x3c0] sm:$0xff]
  %v2803 = vld [vmem:[%s10 + $0x3c8] sm:$0xff]
  %v2804 = vld [vmem:[%s10 + $0x3d0] sm:$0xff]
  %v2805 = vld [vmem:[%s10 + $0x3d8] sm:$0xff]
  %v2806 = vld [vmem:[%s10 + $0x3e0] sm:$0xff]
  %v2807 = vld [vmem:[%s10 + $0x3e8] sm:$0xff]
  %v2808 = vld [vmem:[%s10 + $0x3f0] sm:$0xff]
  %v2809 = vld [vmem:[%s10 + $0x3f8] sm:$0xff]
  %v2810 = vld [vmem:[%s10 + $0x400] sm:$0xff]
  %v2811 = vld [vmem:[%s10 + $0x408] sm:$0xff]
  %v2812 = vld [vmem:[%s10 + $0x410] sm:$0xff]
  %v2813 = vld [vmem:[%s10 + $0x418] sm:$0xff]
  %v2814 = vld [vmem:[%s10 + $0x420] sm:$0xff]
  %v2815 = vld [vmem:[%s10 + $0x428] sm:$0xff]
  %v2816 = vld [vmem:[%s10 + $0x430] sm:$0xff]
  %v2817 = vld [vmem:[%s10 + $0x438] sm:$0xff]
  %v2818 = vld [vmem:[%s10 + $0x440] sm:$0xff]
  %v2819 = vld [vmem:[%s10 + $0x448] sm:$0xff]
  %v2820 = vld [vmem:[%s10 + $0x450] sm:$0xff]
  %v2821 = vld [vmem:[%s10 + $0x458] sm:$0xff]
  %v2822 = vld [vmem:[%s10 + $0x460] sm:$0xff]
  %v2823 = vld [vmem:[%s10 + $0x468] sm:$0xff]
  %v2824 = vld [vmem:[%s10 + $0x470] sm:$0xff]
  %v2825 = vld [vmem:[%s10 + $0x478] sm:$0xff]
  %v2826 = vld [vmem:[%s10 + $0x480] sm:$0xff]
  %v2827 = vld [vmem:[%s10 + $0x488] sm:$0xff]
  %v2828 = vld [vmem:[%s10 + $0x490] sm:$0xff]
  %v2829 = vld [vmem:[%s10 + $0x498] sm:$0xff]
  %v2830 = vld [vmem:[%s10 + $0x4a0] sm:$0xff]
  %v2831 = vld [vmem:[%s10 + $0x4a8] sm:$0xff]
  %v2832 = vld [vmem:[%s10 + $0x4b0] sm:$0xff]
  %v2833 = vld [vmem:[%s10 + $0x4b8] sm:$0xff]
  %v2834 = vld [vmem:[%s10 + $0x4c0] sm:$0xff]
  %v2835 = vld [vmem:[%s10 + $0x4c8] sm:$0xff]
  %v2836 = vld [vmem:[%s10 + $0x4d0] sm:$0xff]
  %v2837 = vld [vmem:[%s10 + $0x4d8] sm:$0xff]
  %v2838 = vld [vmem:[%s10 + $0x4e0] sm:$0xff]
  %v2839 = vld [vmem:[%s10 + $0x4e8] sm:$0xff]
  %v2840 = vld [vmem:[%s10 + $0x4f0] sm:$0xff]
  %v2841 = vld [vmem:[%s10 + $0x4f8] sm:$0xff]
  %v2842 = vld [vmem:[%s10 + $0x500] sm:$0xff]
  %v2843 = vld [vmem:[%s10 + $0x508] sm:$0xff]
  %v2844 = vld [vmem:[%s10 + $0x510] sm:$0xff]
  %v2845 = vld [vmem:[%s10 + $0x518] sm:$0xff]
  %v2846 = vld [vmem:[%s10 + $0x520] sm:$0xff]
  %v2847 = vld [vmem:[%s10 + $0x528] sm:$0xff]
  %v2848 = vld [vmem:[%s10 + $0x530] sm:$0xff]
  %v2849 = vld [vmem:[%s10 + $0x538] sm:$0xff]
  %v2850 = vld [vmem:[%s10 + $0x540] sm:$0xff]
  %v2851 = vld [vmem:[%s10 + $0x548] sm:$0xff]
  %v2852 = vld [vmem:[%s10 + $0x550] sm:$0xff]
  %v2853 = vld [vmem:[%s10 + $0x558] sm:$0xff]
  %v2854 = vld [vmem:[%s10 + $0x560] sm:$0xff]
  %v2855 = vld [vmem:[%s10 + $0x568] sm:$0xff]
  %v2856 = vld [vmem:[%s10 + $0x570] sm:$0xff]
  %v2857 = vld [vmem:[%s10 + $0x578] sm:$0xff]
  %v2858 = vld [vmem:[%s10 + $0x580] sm:$0xff]
  %v2859 = vld [vmem:[%s10 + $0x588] sm:$0xff]
  %v2860 = vld [vmem:[%s10 + $0x590] sm:$0xff]
  %v2861 = vld [vmem:[%s10 + $0x598] sm:$0xff]
  %v2862 = vld [vmem:[%s10 + $0x5a0] sm:$0xff]
  %v2863 = vld [vmem:[%s10 + $0x5a8] sm:$0xff]
  %v2864 = vld [vmem:[%s10 + $0x5b0] sm:$0xff]
  %v2865 = vld [vmem:[%s10 + $0x5b8] sm:$0xff]
  %v2866 = vld [vmem:[%s10 + $0x5c0] sm:$0xff]
  %v2867 = vld [vmem:[%s10 + $0x5c8] sm:$0xff]
  %v2868 = vld [vmem:[%s10 + $0x5d0] sm:$0xff]
  %v2869 = vld [vmem:[%s10 + $0x5d8] sm:$0xff]
  %v2870 = vld [vmem:[%s10 + $0x5e0] sm:$0xff]
  %v2871 = vld [vmem:[%s10 + $0x5e8] sm:$0xff]
  %v2872 = vld [vmem:[%s10 + $0x5f0] sm:$0xff]
  %v2873 = vld [vmem:[%s10 + $0x5f8] sm:$0xff]
  %v2874 = vld [vmem:[%s10 + $0x600] sm:$0xff]
  %v2875 = vld [vmem:[%s10 + $0x608] sm:$0xff]
  %v2876 = vld [vmem:[%s10 + $0x610] sm:$0xff]
  %v2877 = vld [vmem:[%s10 + $0x618] sm:$0xff]
  %v2878 = vld [vmem:[%s10 + $0x620] sm:$0xff]
  %v2879 = vld [vmem:[%s10 + $0x628] sm:$0xff]
  %v2880 = vld [vmem:[%s10 + $0x630] sm:$0xff]
  %v2881 = vld [vmem:[%s10 + $0x638] sm:$0xff]
  %v2882 = vld [vmem:[%s10 + $0x640] sm:$0xff]
  %v2883 = vld [vmem:[%s10 + $0x648] sm:$0xff]
  %v2884 = vld [vmem:[%s10 + $0x650] sm:$0xff]
  %v2885 = vld [vmem:[%s10 + $0x658] sm:$0xff]
  %v2886 = vld [vmem:[%s10 + $0x660] sm:$0xff]
  %v2887 = vld [vmem:[%s10 + $0x668] sm:$0xff]
  %v2888 = vld [vmem:[%s10 + $0x670] sm:$0xff]
  %v2889 = vld [vmem:[%s10 + $0x678] sm:$0xff]
  %v2890 = vld [vmem:[%s10 + $0x680] sm:$0xff]
  %v2891 = vld [vmem:[%s10 + $0x688] sm:$0xff]
  %v2892 = vld [vmem:[%s10 + $0x690] sm:$0xff]
  %v2893 = vld [vmem:[%s10 + $0x698] sm:$0xff]
  %v2894 = vld [vmem:[%s10 + $0x6a0] sm:$0xff]
  %v2895 = vld [vmem:[%s10 + $0x6a8] sm:$0xff]
  %v2896 = vld [vmem:[%s10 + $0x6b0] sm:$0xff]
  %v2897 = vld [vmem:[%s10 + $0x6b8] sm:$0xff]
  %v2898 = vld [vmem:[%s10 + $0x6c0] sm:$0xff]
  %v2899 = vld [vmem:[%s10 + $0x6c8] sm:$0xff]
  %v2900 = vld [vmem:[%s10 + $0x6d0] sm:$0xff]
  %v2901 = vld [vmem:[%s10 + $0x6d8] sm:$0xff]
  %v2902 = vld [vmem:[%s10 + $0x6e0] sm:$0xff]
  %v2903 = vld [vmem:[%s10 + $0x6e8] sm:$0xff]
  %v2904 = vld [vmem:[%s10 + $0x6f0] sm:$0xff]
  %v2905 = vld [vmem:[%s10 + $0x6f8] sm:$0xff]
  %v2906 = vld [vmem:[%s10 + $0x700] sm:$0xff]
  %v2907 = vld [vmem:[%s10 + $0x708] sm:$0xff]
  %v2908 = vld [vmem:[%s10 + $0x710] sm:$0xff]
  %v2909 = vld [vmem:[%s10 + $0x718] sm:$0xff]
  %v2910 = vld [vmem:[%s10 + $0x720] sm:$0xff]
  %v2911 = vld [vmem:[%s10 + $0x728] sm:$0xff]
  %v2912 = vld [vmem:[%s10 + $0x730] sm:$0xff]
  %v2913 = vld [vmem:[%s10 + $0x738] sm:$0xff]
  %v2914 = vld [vmem:[%s10 + $0x740] sm:$0xff]
  %v2915 = vld [vmem:[%s10 + $0x748] sm:$0xff]
  %v2916 = vld [vmem:[%s10 + $0x750] sm:$0xff]
  %v2917 = vld [vmem:[%s10 + $0x758] sm:$0xff]
  %v2918 = vld [vmem:[%s10 + $0x760] sm:$0xff]
  %v2919 = vld [vmem:[%s10 + $0x768] sm:$0xff]
  %v2920 = vld [vmem:[%s10 + $0x770] sm:$0xff]
  %v2921 = vld [vmem:[%s10 + $0x778] sm:$0xff]
  %v2922 = vld [vmem:[%s10 + $0x780] sm:$0xff]
  %v2923 = vld [vmem:[%s10 + $0x788] sm:$0xff]
  %v2924 = vld [vmem:[%s10 + $0x790] sm:$0xff]
  %v2925 = vld [vmem:[%s10 + $0x798] sm:$0xff]
  %v2926 = vld [vmem:[%s10 + $0x7a0] sm:$0xff]
  %v2927 = vld [vmem:[%s10 + $0x7a8] sm:$0xff]
  %v2928 = vld [vmem:[%s10 + $0x7b0] sm:$0xff]
  %v2929 = vld [vmem:[%s10 + $0x7b8] sm:$0xff]
  %v2930 = vld [vmem:[%s10 + $0x7c0] sm:$0xff]
  %v2931 = vld [vmem:[%s10 + $0x7c8] sm:$0xff]
  %v2932 = vld [vmem:[%s10 + $0x7d0] sm:$0xff]
  %v2933 = vld [vmem:[%s10 + $0x7d8] sm:$0xff]
  %v2934 = vld [vmem:[%s10 + $0x7e0] sm:$0xff]
  %v2935 = vld [vmem:[%s10 + $0x7e8] sm:$0xff]
  %v2936 = vld [vmem:[%s10 + $0x7f0] sm:$0xff]
  %v2937 = vld [vmem:[%s10 + $0x7f8] sm:$0xff]
  %v2938 = vld [vmem:[%s11] sm:$0x1]
  %v2940 = vlaneseq
  %v2941 = vshrl.u32 %v2940, 7
  %v2942 = vsub.s32 0, %v2941
  %v2943 = vrot.slane %v2938, %v2942
  %2945 = vmatprep.subr.mxu0 0.0
  %2946 = vmatpush1.msra.mxu0 %v2682
  %2947 = vmatprep.subr.mxu0 0.0
  %2948 = vmatpush1.msra.mxu0 %v2683
  %2949 = vmatprep.subr.mxu0 0.0
  %2950 = vmatpush1.msra.mxu0 %v2684
  %2951 = vmatprep.subr.mxu0 0.0
  %2952 = vmatpush1.msra.mxu0 %v2685
  %2953 = vmatprep.subr.mxu0 0.0
  %2954 = vmatpush1.msra.mxu0 %v2686
  %2955 = vmatprep.subr.mxu0 0.0
  %2956 = vmatpush1.msra.mxu0 %v2687
  %2957 = vmatprep.subr.mxu0 0.0
  %2958 = vmatpush1.msra.mxu0 %v2688
  %2959 = vmatprep.subr.mxu0 0.0
  %2960 = vmatpush1.msra.mxu0 %v2689
  %2961 = vmatprep.subr.mxu0 0.0
  %2962 = vmatpush1.msra.mxu0 %v2690
  %2963 = vmatprep.subr.mxu0 0.0
  %2964 = vmatpush1.msra.mxu0 %v2691
  %2965 = vmatprep.subr.mxu0 0.0
  %2966 = vmatpush1.msra.mxu0 %v2692
  %2967 = vmatprep.subr.mxu0 0.0
  %2968 = vmatpush1.msra.mxu0 %v2693
  %2969 = vmatprep.subr.mxu0 0.0
  %2970 = vmatpush1.msra.mxu0 %v2694
  %2971 = vmatprep.subr.mxu0 0.0
  %2972 = vmatpush1.msra.mxu0 %v2695
  %2973 = vmatprep.subr.mxu0 0.0
  %2974 = vmatpush1.msra.mxu0 %v2696
  %2975 = vmatprep.subr.mxu0 0.0
  %2976 = vmatpush1.msra.mxu0 %v2697
  %2977 = vmatprep.subr.mxu0 0.0
  %2978 = vmatpush1.msra.mxu0 %v2698
  %2979 = vmatprep.subr.mxu0 0.0
  %2980 = vmatpush1.msra.mxu0 %v2699
  %2981 = vmatprep.subr.mxu0 0.0
  %2982 = vmatpush1.msra.mxu0 %v2700
  %2983 = vmatprep.subr.mxu0 0.0
  %2984 = vmatpush1.msra.mxu0 %v2701
  %2985 = vmatprep.subr.mxu0 0.0
  %2986 = vmatpush1.msra.mxu0 %v2702
  %2987 = vmatprep.subr.mxu0 0.0
  %2988 = vmatpush1.msra.mxu0 %v2703
  %2989 = vmatprep.subr.mxu0 0.0
  %2990 = vmatpush1.msra.mxu0 %v2704
  %2991 = vmatprep.subr.mxu0 0.0
  %2992 = vmatpush1.msra.mxu0 %v2705
  %2993 = vmatprep.subr.mxu0 0.0
  %2994 = vmatpush1.msra.mxu0 %v2706
  %2995 = vmatprep.subr.mxu0 0.0
  %2996 = vmatpush1.msra.mxu0 %v2707
  %2997 = vmatprep.subr.mxu0 0.0
  %2998 = vmatpush1.msra.mxu0 %v2708
  %2999 = vmatprep.subr.mxu0 0.0
  %3000 = vmatpush1.msra.mxu0 %v2709
  %3001 = vmatprep.subr.mxu0 0.0
  %3002 = vmatpush1.msra.mxu0 %v2710
  %3003 = vmatprep.subr.mxu0 0.0
  %3004 = vmatpush1.msra.mxu0 %v2711
  %3005 = vmatprep.subr.mxu0 0.0
  %3006 = vmatpush1.msra.mxu0 %v2712
  %3007 = vmatprep.subr.mxu0 0.0
  %3008 = vmatpush1.msra.mxu0 %v2713
  %3009 = vmatprep.mubr.f32.mxu0 %v2555
  %3010 = vmatmul.mubr.f32.gmra.mrb[0].mxu0 %v2554
  %v3011 = vpop.f32.mrb[0].mxu0
  %v3012 = vadd.f32 %v2943, %v3011
  %v3013 = vpop.f32.mrb[0].mxu0
  %3014 = vmatprep.mubr.f32.mxu0 %v2571
  %3015 = vmatmul.mubr.f32.gmra.mrb[0].mxu0 %v2570
  %v3016 = vpop.f32.mrb[0].mxu0
  %v3017 = vadd.f32 %v2943, %v3016
  %v3018 = vpop.f32.mrb[0].mxu0
  %3019 = vmatprep.mubr.f32.mxu0 %v2587
  %3020 = vmatmul.mubr.f32.gmra.mrb[0].mxu0 %v2586
  %v3021 = vpop.f32.mrb[0].mxu0
  %v3022 = vadd.f32 %v2943, %v3021
  %v3023 = vpop.f32.mrb[0].mxu0
  %3024 = vmatprep.mubr.f32.mxu0 %v2603
  %3025 = vmatmul.mubr.f32.gmra.mrb[0].mxu0 %v2602
  %v3026 = vpop.f32.mrb[0].mxu0
  %v3027 = vadd.f32 %v2943, %v3026
  %v3028 = vpop.f32.mrb[0].mxu0
  %3029 = vmatprep.mubr.f32.mxu0 %v2619
  %3030 = vmatmul.mubr.f32.gmra.mrb[0].mxu0 %v2618
  %v3031 = vpop.f32.mrb[0].mxu0
  %v3032 = vadd.f32 %v2943, %v3031
  %v3033 = vpop.f32.mrb[0].mxu0
  %3034 = vmatprep.mubr.f32.mxu0 %v2635
  %3035 = vmatmul.mubr.f32.gmra.mrb[0].mxu0 %v2634
  %v3036 = vpop.f32.mrb[0].mxu0
  %v3037 = vadd.f32 %v2943, %v3036
  %v3038 = vpop.f32.mrb[0].mxu0
  %3039 = vmatprep.mubr.f32.mxu0 %v2651
  %3040 = vmatmul.mubr.f32.gmra.mrb[0].mxu0 %v2650
  %v3041 = vpop.f32.mrb[0].mxu0
  %v3042 = vadd.f32 %v2943, %v3041
  %v3043 = vpop.f32.mrb[0].mxu0
  %3044 = vmatprep.mubr.f32.mxu0 %v2667
  %3045 = vmatmul.mubr.f32.gmra.mrb[0].mxu0 %v2666
  %v3046 = vpop.f32.mrb[0].mxu0
  %v3047 = vadd.f32 %v2943, %v3046
  %v3048 = vpop.f32.mrb[0].mxu0
  %3049 = vdwg.mxu0
  %3050 = vmatprep.subr.mxu0 0.0
  %3051 = vmatpush1.msra.mxu0 %v2714
  %3052 = vmatprep.subr.mxu0 0.0
  %3053 = vmatpush1.msra.mxu0 %v2715
  %3054 = vmatprep.subr.mxu0 0.0
  %3055 = vmatpush1.msra.mxu0 %v2716
  %3056 = vmatprep.subr.mxu0 0.0
  %3057 = vmatpush1.msra.mxu0 %v2717
  %3058 = vmatprep.subr.mxu0 0.0
  %3059 = vmatpush1.msra.mxu0 %v2718
  %3060 = vmatprep.subr.mxu0 0.0
  %3061 = vmatpush1.msra.mxu0 %v2719
  %3062 = vmatprep.subr.mxu0 0.0
  %3063 = vmatpush1.msra.mxu0 %v2720
  %3064 = vmatprep.subr.mxu0 0.0
  %3065 = vmatpush1.msra.mxu0 %v2721
  %3066 = vmatprep.subr.mxu0 0.0
  %3067 = vmatpush1.msra.mxu0 %v2722
  %3068 = vmatprep.subr.mxu0 0.0
  %3069 = vmatpush1.msra.mxu0 %v2723
  %3070 = vmatprep.subr.mxu0 0.0
  %3071 = vmatpush1.msra.mxu0 %v2724
  %3072 = vmatprep.subr.mxu0 0.0
  %3073 = vmatpush1.msra.mxu0 %v2725
  %3074 = vmatprep.subr.mxu0 0.0
  %3075 = vmatpush1.msra.mxu0 %v2726
  %3076 = vmatprep.subr.mxu0 0.0
  %3077 = vmatpush1.msra.mxu0 %v2727
  %3078 = vmatprep.subr.mxu0 0.0
  %3079 = vmatpush1.msra.mxu0 %v2728
  %3080 = vmatprep.subr.mxu0 0.0
  %3081 = vmatpush1.msra.mxu0 %v2729
  %3082 = vmatprep.subr.mxu0 0.0
  %3083 = vmatpush1.msra.mxu0 %v2730
  %3084 = vmatprep.subr.mxu0 0.0
  %3085 = vmatpush1.msra.mxu0 %v2731
  %3086 = vmatprep.subr.mxu0 0.0
  %3087 = vmatpush1.msra.mxu0 %v2732
  %3088 = vmatprep.subr.mxu0 0.0
  %3089 = vmatpush1.msra.mxu0 %v2733
  %3090 = vmatprep.subr.mxu0 0.0
  %3091 = vmatpush1.msra.mxu0 %v2734
  %3092 = vmatprep.subr.mxu0 0.0
  %3093 = vmatpush1.msra.mxu0 %v2735
  %3094 = vmatprep.subr.mxu0 0.0
  %3095 = vmatpush1.msra.mxu0 %v2736
  %3096 = vmatprep.subr.mxu0 0.0
  %3097 = vmatpush1.msra.mxu0 %v2737
  %3098 = vmatprep.subr.mxu0 0.0
  %3099 = vmatpush1.msra.mxu0 %v2738
  %3100 = vmatprep.subr.mxu0 0.0
  %3101 = vmatpush1.msra.mxu0 %v2739
  %3102 = vmatprep.subr.mxu0 0.0
  %3103 = vmatpush1.msra.mxu0 %v2740
  %3104 = vmatprep.subr.mxu0 0.0
  %3105 = vmatpush1.msra.mxu0 %v2741
  %3106 = vmatprep.subr.mxu0 0.0
  %3107 = vmatpush1.msra.mxu0 %v2742
  %3108 = vmatprep.subr.mxu0 0.0
  %3109 = vmatpush1.msra.mxu0 %v2743
  %3110 = vmatprep.subr.mxu0 0.0
  %3111 = vmatpush1.msra.mxu0 %v2744
  %3112 = vmatprep.subr.mxu0 0.0
  %3113 = vmatpush1.msra.mxu0 %v2745
  %3114 = vmatprep.mubr.f32.mxu0 %v2557
  %3115 = vmatmul.mubr.f32.gmra.mrb[0].mxu0 %v2556
  %v3116 = vpop.f32.mrb[0].mxu0
  %v3117 = vadd.f32 %v3012, %v3116
  %v3118 = vpop.f32.mrb[0].mxu0
  %3119 = vmatprep.mubr.f32.mxu0 %v2573
  %3120 = vmatmul.mubr.f32.gmra.mrb[0].mxu0 %v2572
  %v3121 = vpop.f32.mrb[0].mxu0
  %v3122 = vadd.f32 %v3017, %v3121
  %v3123 = vpop.f32.mrb[0].mxu0
  %3124 = vmatprep.mubr.f32.mxu0 %v2589
  %3125 = vmatmul.mubr.f32.gmra.mrb[0].mxu0 %v2588
  %v3126 = vpop.f32.mrb[0].mxu0
  %v3127 = vadd.f32 %v3022, %v3126
  %v3128 = vpop.f32.mrb[0].mxu0
  %3129 = vmatprep.mubr.f32.mxu0 %v2605
  %3130 = vmatmul.mubr.f32.gmra.mrb[0].mxu0 %v2604
  %v3131 = vpop.f32.mrb[0].mxu0
  %v3132 = vadd.f32 %v3027, %v3131
  %v3133 = vpop.f32.mrb[0].mxu0
  %3134 = vmatprep.mubr.f32.mxu0 %v2621
  %3135 = vmatmul.mubr.f32.gmra.mrb[0].mxu0 %v2620
  %v3136 = vpop.f32.mrb[0].mxu0
  %v3137 = vadd.f32 %v3032, %v3136
  %v3138 = vpop.f32.mrb[0].mxu0
  %3139 = vmatprep.mubr.f32.mxu0 %v2637
  %3140 = vmatmul.mubr.f32.gmra.mrb[0].mxu0 %v2636
  %v3141 = vpop.f32.mrb[0].mxu0
  %v3142 = vadd.f32 %v3037, %v3141
  %v3143 = vpop.f32.mrb[0].mxu0
  %3144 = vmatprep.mubr.f32.mxu0 %v2653
  %3145 = vmatmul.mubr.f32.gmra.mrb[0].mxu0 %v2652
  %v3146 = vpop.f32.mrb[0].mxu0
  %v3147 = vadd.f32 %v3042, %v3146
  %v3148 = vpop.f32.mrb[0].mxu0
  %3149 = vmatprep.mubr.f32.mxu0 %v2669
  %3150 = vmatmul.mubr.f32.gmra.mrb[0].mxu0 %v2668
  %v3151 = vpop.f32.mrb[0].mxu0
  %v3152 = vadd.f32 %v3047, %v3151
  %v3153 = vpop.f32.mrb[0].mxu0
  %3154 = vdwg.mxu0
  %3155 = vmatprep.subr.mxu0 0.0
  %3156 = vmatpush1.msra.mxu0 %v2746
  %3157 = vmatprep.subr.mxu0 0.0
  %3158 = vmatpush1.msra.mxu0 %v2747
  %3159 = vmatprep.subr.mxu0 0.0
  %3160 = vmatpush1.msra.mxu0 %v2748
  %3161 = vmatprep.subr.mxu0 0.0
  %3162 = vmatpush1.msra.mxu0 %v2749
  %3163 = vmatprep.subr.mxu0 0.0
  %3164 = vmatpush1.msra.mxu0 %v2750
  %3165 = vmatprep.subr.mxu0 0.0
  %3166 = vmatpush1.msra.mxu0 %v2751
  %3167 = vmatprep.subr.mxu0 0.0
  %3168 = vmatpush1.msra.mxu0 %v2752
  %3169 = vmatprep.subr.mxu0 0.0
  %3170 = vmatpush1.msra.mxu0 %v2753
  %3171 = vmatprep.subr.mxu0 0.0
  %3172 = vmatpush1.msra.mxu0 %v2754
  %3173 = vmatprep.subr.mxu0 0.0
  %3174 = vmatpush1.msra.mxu0 %v2755
  %3175 = vmatprep.subr.mxu0 0.0
  %3176 = vmatpush1.msra.mxu0 %v2756
  %3177 = vmatprep.subr.mxu0 0.0
  %3178 = vmatpush1.msra.mxu0 %v2757
  %3179 = vmatprep.subr.mxu0 0.0
  %3180 = vmatpush1.msra.mxu0 %v2758
  %3181 = vmatprep.subr.mxu0 0.0
  %3182 = vmatpush1.msra.mxu0 %v2759
  %3183 = vmatprep.subr.mxu0 0.0
  %3184 = vmatpush1.msra.mxu0 %v2760
  %3185 = vmatprep.subr.mxu0 0.0
  %3186 = vmatpush1.msra.mxu0 %v2761
  %3187 = vmatprep.subr.mxu0 0.0
  %3188 = vmatpush1.msra.mxu0 %v2762
  %3189 = vmatprep.subr.mxu0 0.0
  %3190 = vmatpush1.msra.mxu0 %v2763
  %3191 = vmatprep.subr.mxu0 0.0
  %3192 = vmatpush1.msra.mxu0 %v2764
  %3193 = vmatprep.subr.mxu0 0.0
  %3194 = vmatpush1.msra.mxu0 %v2765
  %3195 = vmatprep.subr.mxu0 0.0
  %3196 = vmatpush1.msra.mxu0 %v2766
  %3197 = vmatprep.subr.mxu0 0.0
  %3198 = vmatpush1.msra.mxu0 %v2767
  %3199 = vmatprep.subr.mxu0 0.0
  %3200 = vmatpush1.msra.mxu0 %v2768
  %3201 = vmatprep.subr.mxu0 0.0
  %3202 = vmatpush1.msra.mxu0 %v2769
  %3203 = vmatprep.subr.mxu0 0.0
  %3204 = vmatpush1.msra.mxu0 %v2770
  %3205 = vmatprep.subr.mxu0 0.0
  %3206 = vmatpush1.msra.mxu0 %v2771
  %3207 = vmatprep.subr.mxu0 0.0
  %3208 = vmatpush1.msra.mxu0 %v2772
  %3209 = vmatprep.subr.mxu0 0.0
  %3210 = vmatpush1.msra.mxu0 %v2773
  %3211 = vmatprep.subr.mxu0 0.0
  %3212 = vmatpush1.msra.mxu0 %v2774
  %3213 = vmatprep.subr.mxu0 0.0
  %3214 = vmatpush1.msra.mxu0 %v2775
  %3215 = vmatprep.subr.mxu0 0.0
  %3216 = vmatpush1.msra.mxu0 %v2776
  %3217 = vmatprep.subr.mxu0 0.0
  %3218 = vmatpush1.msra.mxu0 %v2777
  %3219 = vmatprep.mubr.f32.mxu0 %v2559
  %3220 = vmatmul.mubr.f32.gmra.mrb[0].mxu0 %v2558
  %v3221 = vpop.f32.mrb[0].mxu0
  %v3222 = vadd.f32 %v3117, %v3221
  %v3223 = vpop.f32.mrb[0].mxu0
  %3224 = vmatprep.mubr.f32.mxu0 %v2575
  %3225 = vmatmul.mubr.f32.gmra.mrb[0].mxu0 %v2574
  %v3226 = vpop.f32.mrb[0].mxu0
  %v3227 = vadd.f32 %v3122, %v3226
  %v3228 = vpop.f32.mrb[0].mxu0
  %3229 = vmatprep.mubr.f32.mxu0 %v2591
  %3230 = vmatmul.mubr.f32.gmra.mrb[0].mxu0 %v2590
  %v3231 = vpop.f32.mrb[0].mxu0
  %v3232 = vadd.f32 %v3127, %v3231
  %v3233 = vpop.f32.mrb[0].mxu0
  %3234 = vmatprep.mubr.f32.mxu0 %v2607
  %3235 = vmatmul.mubr.f32.gmra.mrb[0].mxu0 %v2606
  %v3236 = vpop.f32.mrb[0].mxu0
  %v3237 = vadd.f32 %v3132, %v3236
  %v3238 = vpop.f32.mrb[0].mxu0
  %3239 = vmatprep.mubr.f32.mxu0 %v2623
  %3240 = vmatmul.mubr.f32.gmra.mrb[0].mxu0 %v2622
  %v3241 = vpop.f32.mrb[0].mxu0
  %v3242 = vadd.f32 %v3137, %v3241
  %v3243 = vpop.f32.mrb[0].mxu0
  %3244 = vmatprep.mubr.f32.mxu0 %v2639
  %3245 = vmatmul.mubr.f32.gmra.mrb[0].mxu0 %v2638
  %v3246 = vpop.f32.mrb[0].mxu0
  %v3247 = vadd.f32 %v3142, %v3246
  %v3248 = vpop.f32.mrb[0].mxu0
  %3249 = vmatprep.mubr.f32.mxu0 %v2655
  %3250 = vmatmul.mubr.f32.gmra.mrb[0].mxu0 %v2654
  %v3251 = vpop.f32.mrb[0].mxu0
  %v3252 = vadd.f32 %v3147, %v3251
  %v3253 = vpop.f32.mrb[0].mxu0
  %3254 = vmatprep.mubr.f32.mxu0 %v2671
  %3255 = vmatmul.mubr.f32.gmra.mrb[0].mxu0 %v2670
  %v3256 = vpop.f32.mrb[0].mxu0
  %v3257 = vadd.f32 %v3152, %v3256
  %v3258 = vpop.f32.mrb[0].mxu0
  %3259 = vdwg.mxu0
  %3260 = vmatprep.subr.mxu0 0.0
  %3261 = vmatpush1.msra.mxu0 %v2778
  %3262 = vmatprep.subr.mxu0 0.0
  %3263 = vmatpush1.msra.mxu0 %v2779
  %3264 = vmatprep.subr.mxu0 0.0
  %3265 = vmatpush1.msra.mxu0 %v2780
  %3266 = vmatprep.subr.mxu0 0.0
  %3267 = vmatpush1.msra.mxu0 %v2781
  %3268 = vmatprep.subr.mxu0 0.0
  %3269 = vmatpush1.msra.mxu0 %v2782
  %3270 = vmatprep.subr.mxu0 0.0
  %3271 = vmatpush1.msra.mxu0 %v2783
  %3272 = vmatprep.subr.mxu0 0.0
  %3273 = vmatpush1.msra.mxu0 %v2784
  %3274 = vmatprep.subr.mxu0 0.0
  %3275 = vmatpush1.msra.mxu0 %v2785
  %3276 = vmatprep.subr.mxu0 0.0
  %3277 = vmatpush1.msra.mxu0 %v2786
  %3278 = vmatprep.subr.mxu0 0.0
  %3279 = vmatpush1.msra.mxu0 %v2787
  %3280 = vmatprep.subr.mxu0 0.0
  %3281 = vmatpush1.msra.mxu0 %v2788
  %3282 = vmatprep.subr.mxu0 0.0
  %3283 = vmatpush1.msra.mxu0 %v2789
  %3284 = vmatprep.subr.mxu0 0.0
  %3285 = vmatpush1.msra.mxu0 %v2790
  %3286 = vmatprep.subr.mxu0 0.0
  %3287 = vmatpush1.msra.mxu0 %v2791
  %3288 = vmatprep.subr.mxu0 0.0
  %3289 = vmatpush1.msra.mxu0 %v2792
  %3290 = vmatprep.subr.mxu0 0.0
  %3291 = vmatpush1.msra.mxu0 %v2793
  %3292 = vmatprep.subr.mxu0 0.0
  %3293 = vmatpush1.msra.mxu0 %v2794
  %3294 = vmatprep.subr.mxu0 0.0
  %3295 = vmatpush1.msra.mxu0 %v2795
  %3296 = vmatprep.subr.mxu0 0.0
  %3297 = vmatpush1.msra.mxu0 %v2796
  %3298 = vmatprep.subr.mxu0 0.0
  %3299 = vmatpush1.msra.mxu0 %v2797
  %3300 = vmatprep.subr.mxu0 0.0
  %3301 = vmatpush1.msra.mxu0 %v2798
  %3302 = vmatprep.subr.mxu0 0.0
  %3303 = vmatpush1.msra.mxu0 %v2799
  %3304 = vmatprep.subr.mxu0 0.0
  %3305 = vmatpush1.msra.mxu0 %v2800
  %3306 = vmatprep.subr.mxu0 0.0
  %3307 = vmatpush1.msra.mxu0 %v2801
  %3308 = vmatprep.subr.mxu0 0.0
  %3309 = vmatpush1.msra.mxu0 %v2802
  %3310 = vmatprep.subr.mxu0 0.0
  %3311 = vmatpush1.msra.mxu0 %v2803
  %3312 = vmatprep.subr.mxu0 0.0
  %3313 = vmatpush1.msra.mxu0 %v2804
  %3314 = vmatprep.subr.mxu0 0.0
  %3315 = vmatpush1.msra.mxu0 %v2805
  %3316 = vmatprep.subr.mxu0 0.0
  %3317 = vmatpush1.msra.mxu0 %v2806
  %3318 = vmatprep.subr.mxu0 0.0
  %3319 = vmatpush1.msra.mxu0 %v2807
  %3320 = vmatprep.subr.mxu0 0.0
  %3321 = vmatpush1.msra.mxu0 %v2808
  %3322 = vmatprep.subr.mxu0 0.0
  %3323 = vmatpush1.msra.mxu0 %v2809
  %3324 = vmatprep.mubr.f32.mxu0 %v2561
  %3325 = vmatmul.mubr.f32.gmra.mrb[0].mxu0 %v2560
  %v3326 = vpop.f32.mrb[0].mxu0
  %v3327 = vadd.f32 %v3222, %v3326
  %v3328 = vpop.f32.mrb[0].mxu0
  %3329 = vmatprep.mubr.f32.mxu0 %v2577
  %3330 = vmatmul.mubr.f32.gmra.mrb[0].mxu0 %v2576
  %v3331 = vpop.f32.mrb[0].mxu0
  %v3332 = vadd.f32 %v3227, %v3331
  %v3333 = vpop.f32.mrb[0].mxu0
  %3334 = vmatprep.mubr.f32.mxu0 %v2593
  %3335 = vmatmul.mubr.f32.gmra.mrb[0].mxu0 %v2592
  %v3336 = vpop.f32.mrb[0].mxu0
  %v3337 = vadd.f32 %v3232, %v3336
  %v3338 = vpop.f32.mrb[0].mxu0
  %3339 = vmatprep.mubr.f32.mxu0 %v2609
  %3340 = vmatmul.mubr.f32.gmra.mrb[0].mxu0 %v2608
  %v3341 = vpop.f32.mrb[0].mxu0
  %v3342 = vadd.f32 %v3237, %v3341
  %v3343 = vpop.f32.mrb[0].mxu0
  %3344 = vmatprep.mubr.f32.mxu0 %v2625
  %3345 = vmatmul.mubr.f32.gmra.mrb[0].mxu0 %v2624
  %v3346 = vpop.f32.mrb[0].mxu0
  %v3347 = vadd.f32 %v3242, %v3346
  %v3348 = vpop.f32.mrb[0].mxu0
  %3349 = vmatprep.mubr.f32.mxu0 %v2641
  %3350 = vmatmul.mubr.f32.gmra.mrb[0].mxu0 %v2640
  %v3351 = vpop.f32.mrb[0].mxu0
  %v3352 = vadd.f32 %v3247, %v3351
  %v3353 = vpop.f32.mrb[0].mxu0
  %3354 = vmatprep.mubr.f32.mxu0 %v2657
  %3355 = vmatmul.mubr.f32.gmra.mrb[0].mxu0 %v2656
  %v3356 = vpop.f32.mrb[0].mxu0
  %v3357 = vadd.f32 %v3252, %v3356
  %v3358 = vpop.f32.mrb[0].mxu0
  %3359 = vmatprep.mubr.f32.mxu0 %v2673
  %3360 = vmatmul.mubr.f32.gmra.mrb[0].mxu0 %v2672
  %v3361 = vpop.f32.mrb[0].mxu0
  %v3362 = vadd.f32 %v3257, %v3361
  %v3363 = vpop.f32.mrb[0].mxu0
  %3364 = vdwg.mxu0
  %3365 = vmatprep.subr.mxu0 0.0
  %3366 = vmatpush1.msra.mxu0 %v2810
  %3367 = vmatprep.subr.mxu0 0.0
  %3368 = vmatpush1.msra.mxu0 %v2811
  %3369 = vmatprep.subr.mxu0 0.0
  %3370 = vmatpush1.msra.mxu0 %v2812
  %3371 = vmatprep.subr.mxu0 0.0
  %3372 = vmatpush1.msra.mxu0 %v2813
  %3373 = vmatprep.subr.mxu0 0.0
  %3374 = vmatpush1.msra.mxu0 %v2814
  %3375 = vmatprep.subr.mxu0 0.0
  %3376 = vmatpush1.msra.mxu0 %v2815
  %3377 = vmatprep.subr.mxu0 0.0
  %3378 = vmatpush1.msra.mxu0 %v2816
  %3379 = vmatprep.subr.mxu0 0.0
  %3380 = vmatpush1.msra.mxu0 %v2817
  %3381 = vmatprep.subr.mxu0 0.0
  %3382 = vmatpush1.msra.mxu0 %v2818
  %3383 = vmatprep.subr.mxu0 0.0
  %3384 = vmatpush1.msra.mxu0 %v2819
  %3385 = vmatprep.subr.mxu0 0.0
  %3386 = vmatpush1.msra.mxu0 %v2820
  %3387 = vmatprep.subr.mxu0 0.0
  %3388 = vmatpush1.msra.mxu0 %v2821
  %3389 = vmatprep.subr.mxu0 0.0
  %3390 = vmatpush1.msra.mxu0 %v2822
  %3391 = vmatprep.subr.mxu0 0.0
  %3392 = vmatpush1.msra.mxu0 %v2823
  %3393 = vmatprep.subr.mxu0 0.0
  %3394 = vmatpush1.msra.mxu0 %v2824
  %3395 = vmatprep.subr.mxu0 0.0
  %3396 = vmatpush1.msra.mxu0 %v2825
  %3397 = vmatprep.subr.mxu0 0.0
  %3398 = vmatpush1.msra.mxu0 %v2826
  %3399 = vmatprep.subr.mxu0 0.0
  %3400 = vmatpush1.msra.mxu0 %v2827
  %3401 = vmatprep.subr.mxu0 0.0
  %3402 = vmatpush1.msra.mxu0 %v2828
  %3403 = vmatprep.subr.mxu0 0.0
  %3404 = vmatpush1.msra.mxu0 %v2829
  %3405 = vmatprep.subr.mxu0 0.0
  %3406 = vmatpush1.msra.mxu0 %v2830
  %3407 = vmatprep.subr.mxu0 0.0
  %3408 = vmatpush1.msra.mxu0 %v2831
  %3409 = vmatprep.subr.mxu0 0.0
  %3410 = vmatpush1.msra.mxu0 %v2832
  %3411 = vmatprep.subr.mxu0 0.0
  %3412 = vmatpush1.msra.mxu0 %v2833
  %3413 = vmatprep.subr.mxu0 0.0
  %3414 = vmatpush1.msra.mxu0 %v2834
  %3415 = vmatprep.subr.mxu0 0.0
  %3416 = vmatpush1.msra.mxu0 %v2835
  %3417 = vmatprep.subr.mxu0 0.0
  %3418 = vmatpush1.msra.mxu0 %v2836
  %3419 = vmatprep.subr.mxu0 0.0
  %3420 = vmatpush1.msra.mxu0 %v2837
  %3421 = vmatprep.subr.mxu0 0.0
  %3422 = vmatpush1.msra.mxu0 %v2838
  %3423 = vmatprep.subr.mxu0 0.0
  %3424 = vmatpush1.msra.mxu0 %v2839
  %3425 = vmatprep.subr.mxu0 0.0
  %3426 = vmatpush1.msra.mxu0 %v2840
  %3427 = vmatprep.subr.mxu0 0.0
  %3428 = vmatpush1.msra.mxu0 %v2841
  %3429 = vmatprep.mubr.f32.mxu0 %v2563
  %3430 = vmatmul.mubr.f32.gmra.mrb[0].mxu0 %v2562
  %v3431 = vpop.f32.mrb[0].mxu0
  %v3432 = vadd.f32 %v3327, %v3431
  %v3433 = vpop.f32.mrb[0].mxu0
  %3434 = vmatprep.mubr.f32.mxu0 %v2579
  %3435 = vmatmul.mubr.f32.gmra.mrb[0].mxu0 %v2578
  %v3436 = vpop.f32.mrb[0].mxu0
  %v3437 = vadd.f32 %v3332, %v3436
  %v3438 = vpop.f32.mrb[0].mxu0
  %3439 = vmatprep.mubr.f32.mxu0 %v2595
  %3440 = vmatmul.mubr.f32.gmra.mrb[0].mxu0 %v2594
  %v3441 = vpop.f32.mrb[0].mxu0
  %v3442 = vadd.f32 %v3337, %v3441
  %v3443 = vpop.f32.mrb[0].mxu0
  %3444 = vmatprep.mubr.f32.mxu0 %v2611
  %3445 = vmatmul.mubr.f32.gmra.mrb[0].mxu0 %v2610
  %v3446 = vpop.f32.mrb[0].mxu0
  %v3447 = vadd.f32 %v3342, %v3446
  %v3448 = vpop.f32.mrb[0].mxu0
  %3449 = vmatprep.mubr.f32.mxu0 %v2627
  %3450 = vmatmul.mubr.f32.gmra.mrb[0].mxu0 %v2626
  %v3451 = vpop.f32.mrb[0].mxu0
  %v3452 = vadd.f32 %v3347, %v3451
  %v3453 = vpop.f32.mrb[0].mxu0
  %3454 = vmatprep.mubr.f32.mxu0 %v2643
  %3455 = vmatmul.mubr.f32.gmra.mrb[0].mxu0 %v2642
  %v3456 = vpop.f32.mrb[0].mxu0
  %v3457 = vadd.f32 %v3352, %v3456
  %v3458 = vpop.f32.mrb[0].mxu0
  %3459 = vmatprep.mubr.f32.mxu0 %v2659
  %3460 = vmatmul.mubr.f32.gmra.mrb[0].mxu0 %v2658
  %v3461 = vpop.f32.mrb[0].mxu0
  %v3462 = vadd.f32 %v3357, %v3461
  %v3463 = vpop.f32.mrb[0].mxu0
  %3464 = vmatprep.mubr.f32.mxu0 %v2675
  %3465 = vmatmul.mubr.f32.gmra.mrb[0].mxu0 %v2674
  %v3466 = vpop.f32.mrb[0].mxu0
  %v3467 = vadd.f32 %v3362, %v3466
  %v3468 = vpop.f32.mrb[0].mxu0
  %3469 = vdwg.mxu0
  %3470 = vmatprep.subr.mxu0 0.0
  %3471 = vmatpush1.msra.mxu0 %v2842
  %3472 = vmatprep.subr.mxu0 0.0
  %3473 = vmatpush1.msra.mxu0 %v2843
  %3474 = vmatprep.subr.mxu0 0.0
  %3475 = vmatpush1.msra.mxu0 %v2844
  %3476 = vmatprep.subr.mxu0 0.0
  %3477 = vmatpush1.msra.mxu0 %v2845
  %3478 = vmatprep.subr.mxu0 0.0
  %3479 = vmatpush1.msra.mxu0 %v2846
  %3480 = vmatprep.subr.mxu0 0.0
  %3481 = vmatpush1.msra.mxu0 %v2847
  %3482 = vmatprep.subr.mxu0 0.0
  %3483 = vmatpush1.msra.mxu0 %v2848
  %3484 = vmatprep.subr.mxu0 0.0
  %3485 = vmatpush1.msra.mxu0 %v2849
  %3486 = vmatprep.subr.mxu0 0.0
  %3487 = vmatpush1.msra.mxu0 %v2850
  %3488 = vmatprep.subr.mxu0 0.0
  %3489 = vmatpush1.msra.mxu0 %v2851
  %3490 = vmatprep.subr.mxu0 0.0
  %3491 = vmatpush1.msra.mxu0 %v2852
  %3492 = vmatprep.subr.mxu0 0.0
  %3493 = vmatpush1.msra.mxu0 %v2853
  %3494 = vmatprep.subr.mxu0 0.0
  %3495 = vmatpush1.msra.mxu0 %v2854
  %3496 = vmatprep.subr.mxu0 0.0
  %3497 = vmatpush1.msra.mxu0 %v2855
  %3498 = vmatprep.subr.mxu0 0.0
  %3499 = vmatpush1.msra.mxu0 %v2856
  %3500 = vmatprep.subr.mxu0 0.0
  %3501 = vmatpush1.msra.mxu0 %v2857
  %3502 = vmatprep.subr.mxu0 0.0
  %3503 = vmatpush1.msra.mxu0 %v2858
  %3504 = vmatprep.subr.mxu0 0.0
  %3505 = vmatpush1.msra.mxu0 %v2859
  %3506 = vmatprep.subr.mxu0 0.0
  %3507 = vmatpush1.msra.mxu0 %v2860
  %3508 = vmatprep.subr.mxu0 0.0
  %3509 = vmatpush1.msra.mxu0 %v2861
  %3510 = vmatprep.subr.mxu0 0.0
  %3511 = vmatpush1.msra.mxu0 %v2862
  %3512 = vmatprep.subr.mxu0 0.0
  %3513 = vmatpush1.msra.mxu0 %v2863
  %3514 = vmatprep.subr.mxu0 0.0
  %3515 = vmatpush1.msra.mxu0 %v2864
  %3516 = vmatprep.subr.mxu0 0.0
  %3517 = vmatpush1.msra.mxu0 %v2865
  %3518 = vmatprep.subr.mxu0 0.0
  %3519 = vmatpush1.msra.mxu0 %v2866
  %3520 = vmatprep.subr.mxu0 0.0
  %3521 = vmatpush1.msra.mxu0 %v2867
  %3522 = vmatprep.subr.mxu0 0.0
  %3523 = vmatpush1.msra.mxu0 %v2868
  %3524 = vmatprep.subr.mxu0 0.0
  %3525 = vmatpush1.msra.mxu0 %v2869
  %3526 = vmatprep.subr.mxu0 0.0
  %3527 = vmatpush1.msra.mxu0 %v2870
  %3528 = vmatprep.subr.mxu0 0.0
  %3529 = vmatpush1.msra.mxu0 %v2871
  %3530 = vmatprep.subr.mxu0 0.0
  %3531 = vmatpush1.msra.mxu0 %v2872
  %3532 = vmatprep.subr.mxu0 0.0
  %3533 = vmatpush1.msra.mxu0 %v2873
  %3534 = vmatprep.mubr.f32.mxu0 %v2565
  %3535 = vmatmul.mubr.f32.gmra.mrb[0].mxu0 %v2564
  %v3536 = vpop.f32.mrb[0].mxu0
  %v3537 = vadd.f32 %v3432, %v3536
  %v3538 = vpop.f32.mrb[0].mxu0
  %3539 = vmatprep.mubr.f32.mxu0 %v2581
  %3540 = vmatmul.mubr.f32.gmra.mrb[0].mxu0 %v2580
  %v3541 = vpop.f32.mrb[0].mxu0
  %v3542 = vadd.f32 %v3437, %v3541
  %v3543 = vpop.f32.mrb[0].mxu0
  %3544 = vmatprep.mubr.f32.mxu0 %v2597
  %3545 = vmatmul.mubr.f32.gmra.mrb[0].mxu0 %v2596
  %v3546 = vpop.f32.mrb[0].mxu0
  %v3547 = vadd.f32 %v3442, %v3546
  %v3548 = vpop.f32.mrb[0].mxu0
  %3549 = vmatprep.mubr.f32.mxu0 %v2613
  %3550 = vmatmul.mubr.f32.gmra.mrb[0].mxu0 %v2612
  %v3551 = vpop.f32.mrb[0].mxu0
  %v3552 = vadd.f32 %v3447, %v3551
  %v3553 = vpop.f32.mrb[0].mxu0
  %3554 = vmatprep.mubr.f32.mxu0 %v2629
  %3555 = vmatmul.mubr.f32.gmra.mrb[0].mxu0 %v2628
  %v3556 = vpop.f32.mrb[0].mxu0
  %v3557 = vadd.f32 %v3452, %v3556
  %v3558 = vpop.f32.mrb[0].mxu0
  %3559 = vmatprep.mubr.f32.mxu0 %v2645
  %3560 = vmatmul.mubr.f32.gmra.mrb[0].mxu0 %v2644
  %v3561 = vpop.f32.mrb[0].mxu0
  %v3562 = vadd.f32 %v3457, %v3561
  %v3563 = vpop.f32.mrb[0].mxu0
  %3564 = vmatprep.mubr.f32.mxu0 %v2661
  %3565 = vmatmul.mubr.f32.gmra.mrb[0].mxu0 %v2660
  %v3566 = vpop.f32.mrb[0].mxu0
  %v3567 = vadd.f32 %v3462, %v3566
  %v3568 = vpop.f32.mrb[0].mxu0
  %3569 = vmatprep.mubr.f32.mxu0 %v2677
  %3570 = vmatmul.mubr.f32.gmra.mrb[0].mxu0 %v2676
  %v3571 = vpop.f32.mrb[0].mxu0
  %v3572 = vadd.f32 %v3467, %v3571
  %v3573 = vpop.f32.mrb[0].mxu0
  %3574 = vdwg.mxu0
  %3575 = vmatprep.subr.mxu0 0.0
  %3576 = vmatpush1.msra.mxu0 %v2874
  %3577 = vmatprep.subr.mxu0 0.0
  %3578 = vmatpush1.msra.mxu0 %v2875
  %3579 = vmatprep.subr.mxu0 0.0
  %3580 = vmatpush1.msra.mxu0 %v2876
  %3581 = vmatprep.subr.mxu0 0.0
  %3582 = vmatpush1.msra.mxu0 %v2877
  %3583 = vmatprep.subr.mxu0 0.0
  %3584 = vmatpush1.msra.mxu0 %v2878
  %3585 = vmatprep.subr.mxu0 0.0
  %3586 = vmatpush1.msra.mxu0 %v2879
  %3587 = vmatprep.subr.mxu0 0.0
  %3588 = vmatpush1.msra.mxu0 %v2880
  %3589 = vmatprep.subr.mxu0 0.0
  %3590 = vmatpush1.msra.mxu0 %v2881
  %3591 = vmatprep.subr.mxu0 0.0
  %3592 = vmatpush1.msra.mxu0 %v2882
  %3593 = vmatprep.subr.mxu0 0.0
  %3594 = vmatpush1.msra.mxu0 %v2883
  %3595 = vmatprep.subr.mxu0 0.0
  %3596 = vmatpush1.msra.mxu0 %v2884
  %3597 = vmatprep.subr.mxu0 0.0
  %3598 = vmatpush1.msra.mxu0 %v2885
  %3599 = vmatprep.subr.mxu0 0.0
  %3600 = vmatpush1.msra.mxu0 %v2886
  %3601 = vmatprep.subr.mxu0 0.0
  %3602 = vmatpush1.msra.mxu0 %v2887
  %3603 = vmatprep.subr.mxu0 0.0
  %3604 = vmatpush1.msra.mxu0 %v2888
  %3605 = vmatprep.subr.mxu0 0.0
  %3606 = vmatpush1.msra.mxu0 %v2889
  %3607 = vmatprep.subr.mxu0 0.0
  %3608 = vmatpush1.msra.mxu0 %v2890
  %3609 = vmatprep.subr.mxu0 0.0
  %3610 = vmatpush1.msra.mxu0 %v2891
  %3611 = vmatprep.subr.mxu0 0.0
  %3612 = vmatpush1.msra.mxu0 %v2892
  %3613 = vmatprep.subr.mxu0 0.0
  %3614 = vmatpush1.msra.mxu0 %v2893
  %3615 = vmatprep.subr.mxu0 0.0
  %3616 = vmatpush1.msra.mxu0 %v2894
  %3617 = vmatprep.subr.mxu0 0.0
  %3618 = vmatpush1.msra.mxu0 %v2895
  %3619 = vmatprep.subr.mxu0 0.0
  %3620 = vmatpush1.msra.mxu0 %v2896
  %3621 = vmatprep.subr.mxu0 0.0
  %3622 = vmatpush1.msra.mxu0 %v2897
  %3623 = vmatprep.subr.mxu0 0.0
  %3624 = vmatpush1.msra.mxu0 %v2898
  %3625 = vmatprep.subr.mxu0 0.0
  %3626 = vmatpush1.msra.mxu0 %v2899
  %3627 = vmatprep.subr.mxu0 0.0
  %3628 = vmatpush1.msra.mxu0 %v2900
  %3629 = vmatprep.subr.mxu0 0.0
  %3630 = vmatpush1.msra.mxu0 %v2901
  %3631 = vmatprep.subr.mxu0 0.0
  %3632 = vmatpush1.msra.mxu0 %v2902
  %3633 = vmatprep.subr.mxu0 0.0
  %3634 = vmatpush1.msra.mxu0 %v2903
  %3635 = vmatprep.subr.mxu0 0.0
  %3636 = vmatpush1.msra.mxu0 %v2904
  %3637 = vmatprep.subr.mxu0 0.0
  %3638 = vmatpush1.msra.mxu0 %v2905
  %3639 = vmatprep.mubr.f32.mxu0 %v2567
  %3640 = vmatmul.mubr.f32.gmra.mrb[0].mxu0 %v2566
  %v3641 = vpop.f32.mrb[0].mxu0
  %v3642 = vadd.f32 %v3537, %v3641
  %v3643 = vpop.f32.mrb[0].mxu0
  %3644 = vmatprep.mubr.f32.mxu0 %v2583
  %3645 = vmatmul.mubr.f32.gmra.mrb[0].mxu0 %v2582
  %v3646 = vpop.f32.mrb[0].mxu0
  %v3647 = vadd.f32 %v3542, %v3646
  %v3648 = vpop.f32.mrb[0].mxu0
  %3649 = vmatprep.mubr.f32.mxu0 %v2599
  %3650 = vmatmul.mubr.f32.gmra.mrb[0].mxu0 %v2598
  %v3651 = vpop.f32.mrb[0].mxu0
  %v3652 = vadd.f32 %v3547, %v3651
  %v3653 = vpop.f32.mrb[0].mxu0
  %3654 = vmatprep.mubr.f32.mxu0 %v2615
  %3655 = vmatmul.mubr.f32.gmra.mrb[0].mxu0 %v2614
  %v3656 = vpop.f32.mrb[0].mxu0
  %v3657 = vadd.f32 %v3552, %v3656
  %v3658 = vpop.f32.mrb[0].mxu0
  %3659 = vmatprep.mubr.f32.mxu0 %v2631
  %3660 = vmatmul.mubr.f32.gmra.mrb[0].mxu0 %v2630
  %v3661 = vpop.f32.mrb[0].mxu0
  %v3662 = vadd.f32 %v3557, %v3661
  %v3663 = vpop.f32.mrb[0].mxu0
  %3664 = vmatprep.mubr.f32.mxu0 %v2647
  %3665 = vmatmul.mubr.f32.gmra.mrb[0].mxu0 %v2646
  %v3666 = vpop.f32.mrb[0].mxu0
  %v3667 = vadd.f32 %v3562, %v3666
  %v3668 = vpop.f32.mrb[0].mxu0
  %3669 = vmatprep.mubr.f32.mxu0 %v2663
  %3670 = vmatmul.mubr.f32.gmra.mrb[0].mxu0 %v2662
  %v3671 = vpop.f32.mrb[0].mxu0
  %v3672 = vadd.f32 %v3567, %v3671
  %v3673 = vpop.f32.mrb[0].mxu0
  %3674 = vmatprep.mubr.f32.mxu0 %v2679
  %3675 = vmatmul.mubr.f32.gmra.mrb[0].mxu0 %v2678
  %v3676 = vpop.f32.mrb[0].mxu0
  %v3677 = vadd.f32 %v3572, %v3676
  %v3678 = vpop.f32.mrb[0].mxu0
  %3679 = vdwg.mxu0
  %3680 = vmatprep.subr.mxu0 0.0
  %3681 = vmatpush1.msra.mxu0 %v2906
  %3682 = vmatprep.subr.mxu0 0.0
  %3683 = vmatpush1.msra.mxu0 %v2907
  %3684 = vmatprep.subr.mxu0 0.0
  %3685 = vmatpush1.msra.mxu0 %v2908
  %3686 = vmatprep.subr.mxu0 0.0
  %3687 = vmatpush1.msra.mxu0 %v2909
  %3688 = vmatprep.subr.mxu0 0.0
  %3689 = vmatpush1.msra.mxu0 %v2910
  %3690 = vmatprep.subr.mxu0 0.0
  %3691 = vmatpush1.msra.mxu0 %v2911
  %3692 = vmatprep.subr.mxu0 0.0
  %3693 = vmatpush1.msra.mxu0 %v2912
  %3694 = vmatprep.subr.mxu0 0.0
  %3695 = vmatpush1.msra.mxu0 %v2913
  %3696 = vmatprep.subr.mxu0 0.0
  %3697 = vmatpush1.msra.mxu0 %v2914
  %3698 = vmatprep.subr.mxu0 0.0
  %3699 = vmatpush1.msra.mxu0 %v2915
  %3700 = vmatprep.subr.mxu0 0.0
  %3701 = vmatpush1.msra.mxu0 %v2916
  %3702 = vmatprep.subr.mxu0 0.0
  %3703 = vmatpush1.msra.mxu0 %v2917
  %3704 = vmatprep.subr.mxu0 0.0
  %3705 = vmatpush1.msra.mxu0 %v2918
  %3706 = vmatprep.subr.mxu0 0.0
  %3707 = vmatpush1.msra.mxu0 %v2919
  %3708 = vmatprep.subr.mxu0 0.0
  %3709 = vmatpush1.msra.mxu0 %v2920
  %3710 = vmatprep.subr.mxu0 0.0
  %3711 = vmatpush1.msra.mxu0 %v2921
  %3712 = vmatprep.subr.mxu0 0.0
  %3713 = vmatpush1.msra.mxu0 %v2922
  %3714 = vmatprep.subr.mxu0 0.0
  %3715 = vmatpush1.msra.mxu0 %v2923
  %3716 = vmatprep.subr.mxu0 0.0
  %3717 = vmatpush1.msra.mxu0 %v2924
  %3718 = vmatprep.subr.mxu0 0.0
  %3719 = vmatpush1.msra.mxu0 %v2925
  %3720 = vmatprep.subr.mxu0 0.0
  %3721 = vmatpush1.msra.mxu0 %v2926
  %3722 = vmatprep.subr.mxu0 0.0
  %3723 = vmatpush1.msra.mxu0 %v2927
  %3724 = vmatprep.subr.mxu0 0.0
  %3725 = vmatpush1.msra.mxu0 %v2928
  %3726 = vmatprep.subr.mxu0 0.0
  %3727 = vmatpush1.msra.mxu0 %v2929
  %3728 = vmatprep.subr.mxu0 0.0
  %3729 = vmatpush1.msra.mxu0 %v2930
  %3730 = vmatprep.subr.mxu0 0.0
  %3731 = vmatpush1.msra.mxu0 %v2931
  %3732 = vmatprep.subr.mxu0 0.0
  %3733 = vmatpush1.msra.mxu0 %v2932
  %3734 = vmatprep.subr.mxu0 0.0
  %3735 = vmatpush1.msra.mxu0 %v2933
  %3736 = vmatprep.subr.mxu0 0.0
  %3737 = vmatpush1.msra.mxu0 %v2934
  %3738 = vmatprep.subr.mxu0 0.0
  %3739 = vmatpush1.msra.mxu0 %v2935
  %3740 = vmatprep.subr.mxu0 0.0
  %3741 = vmatpush1.msra.mxu0 %v2936
  %3742 = vmatprep.subr.mxu0 0.0
  %3743 = vmatpush1.msra.mxu0 %v2937
  %3744 = vmatprep.mubr.f32.mxu0 %v2569
  %3745 = vmatmul.mubr.f32.gmra.mrb[0].mxu0 %v2568
  %v3746 = vpop.f32.mrb[0].mxu0
  %v3747 = vadd.f32 %v3642, %v3746
  %v3748 = vpop.f32.mrb[0].mxu0
  %3749 = vmatprep.mubr.f32.mxu0 %v2585
  %3750 = vmatmul.mubr.f32.gmra.mrb[0].mxu0 %v2584
  %v3751 = vpop.f32.mrb[0].mxu0
  %v3752 = vadd.f32 %v3647, %v3751
  %v3753 = vpop.f32.mrb[0].mxu0
  %3754 = vmatprep.mubr.f32.mxu0 %v2601
  %3755 = vmatmul.mubr.f32.gmra.mrb[0].mxu0 %v2600
  %v3756 = vpop.f32.mrb[0].mxu0
  %v3757 = vadd.f32 %v3652, %v3756
  %v3758 = vpop.f32.mrb[0].mxu0
  %3759 = vmatprep.mubr.f32.mxu0 %v2617
  %3760 = vmatmul.mubr.f32.gmra.mrb[0].mxu0 %v2616
  %v3761 = vpop.f32.mrb[0].mxu0
  %v3762 = vadd.f32 %v3657, %v3761
  %v3763 = vpop.f32.mrb[0].mxu0
  %3764 = vmatprep.mubr.f32.mxu0 %v2633
  %3765 = vmatmul.mubr.f32.gmra.mrb[0].mxu0 %v2632
  %v3766 = vpop.f32.mrb[0].mxu0
  %v3767 = vadd.f32 %v3662, %v3766
  %v3768 = vpop.f32.mrb[0].mxu0
  %3769 = vmatprep.mubr.f32.mxu0 %v2649
  %3770 = vmatmul.mubr.f32.gmra.mrb[0].mxu0 %v2648
  %v3771 = vpop.f32.mrb[0].mxu0
  %v3772 = vadd.f32 %v3667, %v3771
  %v3773 = vpop.f32.mrb[0].mxu0
  %3774 = vmatprep.mubr.f32.mxu0 %v2665
  %3775 = vmatmul.mubr.f32.gmra.mrb[0].mxu0 %v2664
  %v3776 = vpop.f32.mrb[0].mxu0
  %v3777 = vadd.f32 %v3672, %v3776
  %v3778 = vpop.f32.mrb[0].mxu0
  %3779 = vmatprep.mubr.f32.mxu0 %v2681
  %3780 = vmatmul.mubr.f32.gmra.mrb[0].mxu0 %v2680
  %v3781 = vpop.f32.mrb[0].mxu0
  %v3782 = vadd.f32 %v3677, %v3781
  %v3783 = vpop.f32.mrb[0].mxu0
  %3784 = vdwg.mxu0
  %v3785 = vadd.f32 %v1470, %v3747
  %v3786 = vadd.f32 %v1471, %v3752
  %v3787 = vadd.f32 %v1472, %v3757
  %v3788 = vadd.f32 %v1473, %v3762
  %v3789 = vadd.f32 %v1474, %v3767
  %v3790 = vadd.f32 %v1475, %v3772
  %v3791 = vadd.f32 %v1476, %v3777
  %v3792 = vadd.f32 %v1477, %v3782
  %v3793 = vld [vmem:[%s12] sm:$0x1]
  %v3794 = vld [vmem:[%s13] sm:$0x1]
  %v3795 = vsel %vm74, %v3785, 0.0
  %3796 = vadd.xlane.f32.xlu0 %v3795
  %v3797 = vpop.xlane.xlu0 %3796
  %v3798 = vsel %vm74, %v3786, 0.0
  %3799 = vadd.xlane.f32.xlu0 %v3798
  %v3800 = vpop.xlane.xlu0 %3799
  %v3801 = vsel %vm74, %v3787, 0.0
  %3802 = vadd.xlane.f32.xlu0 %v3801
  %v3803 = vpop.xlane.xlu0 %3802
  %v3804 = vsel %vm74, %v3788, 0.0
  %3805 = vadd.xlane.f32.xlu0 %v3804
  %v3806 = vpop.xlane.xlu0 %3805
  %v3807 = vsel %vm74, %v3789, 0.0
  %3808 = vadd.xlane.f32.xlu0 %v3807
  %v3809 = vpop.xlane.xlu0 %3808
  %v3810 = vsel %vm74, %v3790, 0.0
  %3811 = vadd.xlane.f32.xlu0 %v3810
  %v3812 = vpop.xlane.xlu0 %3811
  %v3813 = vsel %vm74, %v3791, 0.0
  %3814 = vadd.xlane.f32.xlu0 %v3813
  %v3815 = vpop.xlane.xlu0 %3814
  %v3816 = vsel %vm74, %v3792, 0.0
  %3817 = vadd.xlane.f32.xlu0 %v3816
  %v3818 = vpop.xlane.xlu0 %3817
  %v3819 = vmul.f32 %v3797, %v1369
  %v3820 = vmul.f32 %v3800, %v1369
  %v3821 = vmul.f32 %v3803, %v1369
  %v3822 = vmul.f32 %v3806, %v1369
  %v3823 = vmul.f32 %v3809, %v1369
  %v3824 = vmul.f32 %v3812, %v1369
  %v3825 = vmul.f32 %v3815, %v1369
  %v3826 = vmul.f32 %v3818, %v1369
  %v3827 = vsub.f32 %v3785, %v3819
  %v3828 = vsub.f32 %v3786, %v3820
  %v3829 = vsub.f32 %v3787, %v3821
  %v3830 = vsub.f32 %v3788, %v3822
  %v3831 = vsub.f32 %v3789, %v3823
  %v3832 = vsub.f32 %v3790, %v3824
  %v3833 = vsub.f32 %v3791, %v3825
  %v3834 = vsub.f32 %v3792, %v3826
  %v3835 = vmul.f32 %v3827, %v3827
  %v3836 = vmul.f32 %v3828, %v3828
  %v3837 = vmul.f32 %v3829, %v3829
  %v3838 = vmul.f32 %v3830, %v3830
  %v3839 = vmul.f32 %v3831, %v3831
  %v3840 = vmul.f32 %v3832, %v3832
  %v3841 = vmul.f32 %v3833, %v3833
  %v3842 = vmul.f32 %v3834, %v3834
  %v3843 = vsel %vm74, %v3835, 0.0
  %3844 = vadd.xlane.f32.xlu0 %v3843
  %v3845 = vpop.xlane.xlu0 %3844
  %v3846 = vsel %vm74, %v3836, 0.0
  %3847 = vadd.xlane.f32.xlu0 %v3846
  %v3848 = vpop.xlane.xlu0 %3847
  %v3849 = vsel %vm74, %v3837, 0.0
  %3850 = vadd.xlane.f32.xlu0 %v3849
  %v3851 = vpop.xlane.xlu0 %3850
  %v3852 = vsel %vm74, %v3838, 0.0
  %3853 = vadd.xlane.f32.xlu0 %v3852
  %v3854 = vpop.xlane.xlu0 %3853
  %v3855 = vsel %vm74, %v3839, 0.0
  %3856 = vadd.xlane.f32.xlu0 %v3855
  %v3857 = vpop.xlane.xlu0 %3856
  %v3858 = vsel %vm74, %v3840, 0.0
  %3859 = vadd.xlane.f32.xlu0 %v3858
  %v3860 = vpop.xlane.xlu0 %3859
  %v3861 = vsel %vm74, %v3841, 0.0
  %3862 = vadd.xlane.f32.xlu0 %v3861
  %v3863 = vpop.xlane.xlu0 %3862
  %v3864 = vsel %vm74, %v3842, 0.0
  %3865 = vadd.xlane.f32.xlu0 %v3864
  %v3866 = vpop.xlane.xlu0 %3865
  %v3867 = vmul.f32 %v3845, %v1369
  %v3868 = vmul.f32 %v3848, %v1369
  %v3869 = vmul.f32 %v3851, %v1369
  %v3870 = vmul.f32 %v3854, %v1369
  %v3871 = vmul.f32 %v3857, %v1369
  %v3872 = vmul.f32 %v3860, %v1369
  %v3873 = vmul.f32 %v3863, %v1369
  %v3874 = vmul.f32 %v3866, %v1369
  %v3875 = vadd.f32 %v3867, 1e-05
  %v3876 = vadd.f32 %v3868, 1e-05
  %v3877 = vadd.f32 %v3869, 1e-05
  %v3878 = vadd.f32 %v3870, 1e-05
  %v3879 = vadd.f32 %v3871, 1e-05
  %v3880 = vadd.f32 %v3872, 1e-05
  %v3881 = vadd.f32 %v3873, 1e-05
  %v3882 = vadd.f32 %v3874, 1e-05
  %v3883 = vrsqrt.pop %v3875
  %v3884 = vrsqrt.pop %v3876
  %v3885 = vrsqrt.pop %v3877
  %v3886 = vrsqrt.pop %v3878
  %v3887 = vrsqrt.pop %v3879
  %v3888 = vrsqrt.pop %v3880
  %v3889 = vrsqrt.pop %v3881
  %v3890 = vrsqrt.pop %v3882
  %v3891 = vmul.f32 %v3827, %v3883
  %v3892 = vmul.f32 %v3828, %v3884
  %v3893 = vmul.f32 %v3829, %v3885
  %v3894 = vmul.f32 %v3830, %v3886
  %v3895 = vmul.f32 %v3831, %v3887
  %v3896 = vmul.f32 %v3832, %v3888
  %v3897 = vmul.f32 %v3833, %v3889
  %v3898 = vmul.f32 %v3834, %v3890
  %v3900 = vlaneseq
  %v3901 = vshrl.u32 %v3900, 7
  %v3902 = vsub.s32 0, %v3901
  %v3903 = vrot.slane %v3793, %v3902
  %v3905 = vmul.f32 %v3891, %v3903
  %v3906 = vmul.f32 %v3892, %v3903
  %v3907 = vmul.f32 %v3893, %v3903
  %v3908 = vmul.f32 %v3894, %v3903
  %v3909 = vmul.f32 %v3895, %v3903
  %v3910 = vmul.f32 %v3896, %v3903
  %v3911 = vmul.f32 %v3897, %v3903
  %v3912 = vmul.f32 %v3898, %v3903
  %v3914 = vlaneseq
  %v3915 = vshrl.u32 %v3914, 7
  %v3916 = vsub.s32 0, %v3915
  %v3917 = vrot.slane %v3794, %v3916
  %v3919 = vadd.f32 %v3905, %v3917
  %v3920 = vadd.f32 %v3906, %v3917
  %v3921 = vadd.f32 %v3907, %v3917
  %v3922 = vadd.f32 %v3908, %v3917
  %v3923 = vadd.f32 %v3909, %v3917
  %v3924 = vadd.f32 %v3910, %v3917
  %v3925 = vadd.f32 %v3911, %v3917
  %v3926 = vadd.f32 %v3912, %v3917
  %3927 = vst.msk [vmem:[%s14] sm:$0xff] %vm74, %v3919
  %3928 = vst.msk [vmem:[%s14 + $0x8] sm:$0xff] %vm74, %v3920
  %3929 = vst.msk [vmem:[%s14 + $0x10] sm:$0xff] %vm74, %v3921
  %3930 = vst.msk [vmem:[%s14 + $0x18] sm:$0xff] %vm74, %v3922
  %3931 = vst.msk [vmem:[%s14 + $0x20] sm:$0xff] %vm74, %v3923
  %3932 = vst.msk [vmem:[%s14 + $0x28] sm:$0xff] %vm74, %v3924
  %3933 = vst.msk [vmem:[%s14 + $0x30] sm:$0xff] %vm74, %v3925
  %3934 = vst.msk [vmem:[%s14 + $0x38] sm:$0xff] %vm74, %v3926
  // Predicated region
  $region58: #{transformer_net_forward.5} parent=0 // pred_check
    _
  $region59: #{transformer_net_forward.5} parent=0 // pred_check_branch
    %3936 = sbr.rel (0) target = $region61
  $region60: #{transformer_net_forward.5} parent=0 // pred_region
    _
  $region61: #{transformer_net_forward.5} parent=0 // pred_fallthru
    _
  // Predicated region
  $region62: #{transformer_net_forward.5} parent=0 // pred_check
    _
  $region63: #{transformer_net_forward.5} parent=0 // pred_check_branch
    %3938 = sbr.rel (0) target = $region65
  $region64: #{transformer_net_forward.5} parent=0 // pred_region
    _
  $region65: #{transformer_net_forward.5} parent=0 // pred_fallthru
    _

</llo_original>
